<compile_context>
chip_gen: v7x
topology: tpu7x:2x2x1
jax: 0.10.0
libtpu: 0.0.40
codegen_flags: <defaults>
</compile_context>

<pallas_src>
import functools

import numpy as np
import jax
import jax.numpy as jnp
from jax.experimental import pallas as pl
from jax.experimental.pallas import tpu as pltpu


VMEM_SPEC = pl.BlockSpec(memory_space=pltpu.MemorySpace.VMEM)


# ----------------------------------------------------------------- kernel ----
def _critic_kernel(x1_ref, w1_ref, b1_ref, w2_ref, b2_ref,
                   patches_ref, wc_ref, bc_ref,
                   w3_ref, b3_ref, w4_ref, b4_ref,
                   wv1_ref, wv2_ref, bv_ref, out_ref, *, n_sp, n_ch):
    def leaky(x):  # F.leaky_relu default negative_slope = 0.01
        return jnp.where(x >= 0, x, 0.01 * x)

    # ---- x1 branch: fc1 -> leaky_relu -> fc2 -> leaky_relu -----------------
    h1 = leaky(jnp.dot(x1_ref[...], w1_ref[...],
                       preferred_element_type=jnp.float32) + b1_ref[...])
    h2 = leaky(jnp.dot(h1, w2_ref[...],
                       preferred_element_type=jnp.float32) + b2_ref[...])      # (1, 16)

    # ---- x2 branch (batch element 0 only) ----------------------------------
    # conv as channel-major im2col matmul: (8, 32) @ (32, 4*n_sp) -> (8, 4*n_sp)
    conv = jnp.dot(wc_ref[...], patches_ref[...],
                   preferred_element_type=jnp.float32) + bc_ref[...]
    conv = jnp.maximum(conv, 0.0)
    # AvgPool2d(2): the four pooling taps are contiguous n_sp-lane blocks.
    pooled = 0.25 * (conv[:, 0 * n_sp:1 * n_sp] + conv[:, 1 * n_sp:2 * n_sp] +
                     conv[:, 2 * n_sp:3 * n_sp] + conv[:, 3 * n_sp:4 * n_sp])  # (8, n_sp)
    pooled_bf = pooled.astype(jnp.bfloat16)                                    # cast once

    # fc3: torch flattens NCHW, i.e. fc3 input index k = c*n_sp + s.  Fold the
    # flatten into the matmul: one (1, n_sp) x (n_sp, 1024) matvec per conv
    # channel against the matching row block of (bf16) w3, combined pairwise.
    parts = [jnp.dot(pooled_bf[c:c + 1, :], w3_ref[c * n_sp:(c + 1) * n_sp, :],
                     preferred_element_type=jnp.float32)
             for c in range(n_ch)]
    parts.append(b3_ref[...])                                                  # (1, 1024) f32
    while len(parts) > 1:                                                      # tree reduce
        parts = [parts[i] + parts[i + 1] for i in range(0, len(parts) - 1, 2)] \
                + parts[len(parts) - (len(parts) % 2):]
    h3 = jnp.maximum(parts[0], 0.0)                                            # (1, 1024)

    h4 = jnp.maximum(jnp.dot(h3.astype(jnp.bfloat16), w4_ref[...],
                             preferred_element_type=jnp.float32) + b4_ref[...],
                     0.0)                                                       # (1, 48)

    # value = cat((x1_feat, x2_feat), -1) @ Wv == x1_feat @ Wv[:16] + x2_feat @ Wv[16:]
    out_ref[...] = (jnp.dot(h2, wv1_ref[...], preferred_element_type=jnp.float32)
                    + jnp.dot(h4, wv2_ref[...], preferred_element_type=jnp.float32)
                    + bv_ref[...])


# ---------------------------------------------------------------- wrapper ----
def critic_forward(params, x1, x2_nchw):
    H, W = x2_nchw.shape[2], x2_nchw.shape[3]
    Hp, Wp = H // 2, W // 2
    n_sp = Hp * Wp          # pooled spatial size
    n_ch = 8                # conv output channels

    # --- glue (XLA): channel-major im2col for batch element 0 only ----------
    # patches[(kh*3+kw)*3+cin, ((i*2+j)*Hp+hp)*Wp+wp] = xpad[cin, 2hp+i+kh, 2wp+j+kw]
    x0 = x2_nchw[0]                                     # (3, H, W)  -- only x2[0] is used
    xpad = jnp.pad(x0, ((0, 0), (1, 1), (1, 1)))
    pieces = []
    for kh in range(3):
        for kw in range(3):
            win = xpad[:, kh:kh + H, kw:kw + W]         # (3, H, W)
            win = win.reshape(3, Hp, 2, Wp, 2)          # (cin, hp, i, wp, j)
            win = win.transpose(0, 2, 4, 1, 3)          # (cin, i, j, hp, wp)
            pieces.append(win.reshape(3, 4 * n_sp))
    patches = jnp.stack(pieces, axis=0).reshape(27, 4 * n_sp)
    patches = jnp.pad(patches, ((0, 5), (0, 0)))        # pad K: 27 -> 32 (sublane friendly)

    # conv weight OIHW -> (cout, kh*kw*cin) matching the patch row order; pad K to 32
    wc_mat = params["wc"].transpose(0, 2, 3, 1).reshape(n_ch, 27)
    wc_mat = jnp.pad(wc_mat, ((0, 0), (0, 5)))

    kernel = functools.partial(_critic_kernel, n_sp=n_sp, n_ch=n_ch)
    value = pl.pallas_call(
        kernel,
        out_shape=jax.ShapeDtypeStruct((1, 1), jnp.float32),
        in_specs=[VMEM_SPEC] * 15,
        out_specs=VMEM_SPEC,
    )(x1.reshape(1, -1),
      params["w1"], params["b1"].reshape(1, -1),
      params["w2"], params["b2"].reshape(1, -1),
      patches, wc_mat, params["bc"].reshape(n_ch, 1),
      params["w3"].astype(jnp.bfloat16), params["b3"].reshape(1, -1),
      params["w4"].astype(jnp.bfloat16), params["b4"].reshape(1, -1),
      params["wv"][:16], params["wv"][16:], params["bv"].reshape(1, 1))

    return value.reshape(1)  # torch returns shape (1,)


# -------------------------------------------------------------- parameters ---
def init_params(key, state_dim):
    s0 = state_dim[0]
    H, W = state_dim[1]
    ks = jax.random.split(key, 12)

    def lin(kw, kb, fan_in, fan_out):  # PyTorch default Linear init (uniform +-1/sqrt(fan_in))
        bound = 1.0 / np.sqrt(fan_in)
        w = jax.random.uniform(kw, (fan_in, fan_out), jnp.float32, -bound, bound)
        b = jax.random.uniform(kb, (fan_out,), jnp.float32, -bound, bound)
        return w, b

    p = {}
    p["w1"], p["b1"] = lin(ks[0], ks[1], s0, 64)
    p["w2"], p["b2"] = lin(ks[2], ks[3], 64, 16)
    cb = 1.0 / np.sqrt(3 * 3 * 3)
    p["wc"] = jax.random.uniform(ks[4], (8, 3, 3, 3), jnp.float32, -cb, cb)  # OIHW
    p["bc"] = jax.random.uniform(ks[5], (8,), jnp.float32, -cb, cb)
    p["w3"], p["b3"] = lin(ks[6], ks[7], H * W * 2, 1024)
    p["w4"], p["b4"] = lin(ks[8], ks[9], 1024, 48)
    p["wv"], p["bv"] = lin(ks[10], ks[11], 64, 1)
    return p


# ---------------------------------------------------------- pure-JAX check ---
def reference(params, x1, x2_nchw):
    def leaky(x):
        return jnp.where(x >= 0, x, 0.01 * x)
    h1 = leaky(x1 @ params["w1"] + params["b1"])
    h2 = leaky(h1 @ params["w2"] + params["b2"])
    y = jax.lax.conv_general_dilated(
        x2_nchw, params["wc"], window_strides=(1, 1), padding=((1, 1), (1, 1)),
        dimension_numbers=("NCHW", "OIHW", "NCHW"))
    y = jnp.maximum(y + params["bc"].reshape(1, 8, 1, 1), 0.0)
    B, C, H, W = y.shape
    y = y.reshape(B, C, H // 2, 2, W // 2, 2).mean(axis=(3, 5))
    flat = y.reshape(B, -1)
    # fc3 / fc4 weights are streamed as bf16 by the kernel; mirror that here.
    h3 = jnp.maximum(jnp.dot(flat.astype(jnp.bfloat16), params["w3"].astype(jnp.bfloat16),
                             preferred_element_type=jnp.float32) + params["b3"], 0.0)
    h4 = jnp.maximum(jnp.dot(h3.astype(jnp.bfloat16), params["w4"].astype(jnp.bfloat16),
                             preferred_element_type=jnp.float32) + params["b4"], 0.0)
    x3 = jnp.concatenate([h2, h4[0]], axis=-1)
    return x3 @ params["wv"] + params["bv"]


if __name__ == "__main__":
    state_dim = (32, (16, 16))                      # (vector dim, (H, W))
    key = jax.random.PRNGKey(0)
    kp, kx1, kx2 = jax.random.split(key, 3)
    params = init_params(kp, state_dim)

    x1 = jax.random.normal(kx1, (state_dim[0],), jnp.float32)
    x2 = jax.random.normal(kx2, (2, 3, state_dim[1][0], state_dim[1][1]), jnp.float32)

    value = critic_forward(params, x1, x2)
    value = jax.block_until_ready(value)

    ref = reference(params, x1, x2)
    np.testing.assert_allclose(np.asarray(value), np.asarray(ref), rtol=1e-2, atol=1e-2)
    print("KERNEL_OK")
</pallas_src>

<mosaic_0001>
module attributes {stable_mosaic.version = 11 : i64} {
  func.func @_critic_kernel(%arg0: memref<1x32xf32, #tpu.memory_space<vmem>>, %arg1: memref<32x64xf32, #tpu.memory_space<vmem>>, %arg2: memref<1x64xf32, #tpu.memory_space<vmem>>, %arg3: memref<64x16xf32, #tpu.memory_space<vmem>>, %arg4: memref<1x16xf32, #tpu.memory_space<vmem>>, %arg5: memref<32x256xf32, #tpu.memory_space<vmem>>, %arg6: memref<8x32xf32, #tpu.memory_space<vmem>>, %arg7: memref<8x1xf32, #tpu.memory_space<vmem>>, %arg8: memref<512x1024xbf16, #tpu.memory_space<vmem>>, %arg9: memref<1x1024xf32, #tpu.memory_space<vmem>>, %arg10: memref<1024x48xbf16, #tpu.memory_space<vmem>>, %arg11: memref<1x48xf32, #tpu.memory_space<vmem>>, %arg12: memref<16x1xf32, #tpu.memory_space<vmem>>, %arg13: memref<48x1xf32, #tpu.memory_space<vmem>>, %arg14: memref<1x1xf32, #tpu.memory_space<vmem>>, %arg15: memref<1x1xf32, #tpu.memory_space<vmem>>) attributes {dimension_semantics = [], scalar_prefetch = 0 : i64, scratch_operands = 0 : i64, tpu.core_type = #tpu.core_type<tc>} {
    %c0 = arith.constant 0 : index
    %c0_0 = arith.constant 0 : index
    %0 = vector.load %arg0[%c0, %c0_0] : memref<1x32xf32, #tpu.memory_space<vmem>>, vector<1x32xf32>
    %c0_1 = arith.constant 0 : index
    %c0_2 = arith.constant 0 : index
    %1 = vector.load %arg1[%c0_1, %c0_2] : memref<32x64xf32, #tpu.memory_space<vmem>>, vector<32x64xf32>
    %cst = arith.constant dense<0.000000e+00> : vector<1x64xf32>
    %2 = tpu.matmul %0, %1, %cst {dimension_numbers = #tpu.dot_dimension_numbers<[1], [0], [0], [1], [0, 0, 1, 1], [], []>} : vector<1x32xf32>, vector<32x64xf32>, vector<1x64xf32> -> vector<1x64xf32>
    %c0_3 = arith.constant 0 : index
    %c0_4 = arith.constant 0 : index
    %3 = vector.load %arg2[%c0_3, %c0_4] : memref<1x64xf32, #tpu.memory_space<vmem>>, vector<1x64xf32>
    %4 = arith.addf %2, %3 : vector<1x64xf32>
    %cst_5 = arith.constant 0.000000e+00 : f32
    %5 = vector.broadcast %cst_5 : f32 to vector<1x64xf32>
    %6 = arith.cmpf oge, %4, %5 : vector<1x64xf32>
    %cst_6 = arith.constant 0.00999999977 : f32
    %7 = vector.broadcast %cst_6 : f32 to vector<1x64xf32>
    %8 = arith.mulf %7, %4 : vector<1x64xf32>
    %9 = arith.select %6, %4, %8 : vector<1x64xi1>, vector<1x64xf32>
    %c0_7 = arith.constant 0 : index
    %c0_8 = arith.constant 0 : index
    %10 = vector.load %arg3[%c0_7, %c0_8] : memref<64x16xf32, #tpu.memory_space<vmem>>, vector<64x16xf32>
    %cst_9 = arith.constant dense<0.000000e+00> : vector<1x16xf32>
    %11 = tpu.matmul %9, %10, %cst_9 {dimension_numbers = #tpu.dot_dimension_numbers<[1], [0], [0], [1], [0, 0, 1, 1], [], []>} : vector<1x64xf32>, vector<64x16xf32>, vector<1x16xf32> -> vector<1x16xf32>
    %c0_10 = arith.constant 0 : index
    %c0_11 = arith.constant 0 : index
    %12 = vector.load %arg4[%c0_10, %c0_11] : memref<1x16xf32, #tpu.memory_space<vmem>>, vector<1x16xf32>
    %13 = arith.addf %11, %12 : vector<1x16xf32>
    %cst_12 = arith.constant 0.000000e+00 : f32
    %14 = vector.broadcast %cst_12 : f32 to vector<1x16xf32>
    %15 = arith.cmpf oge, %13, %14 : vector<1x16xf32>
    %cst_13 = arith.constant 0.00999999977 : f32
    %16 = vector.broadcast %cst_13 : f32 to vector<1x16xf32>
    %17 = arith.mulf %16, %13 : vector<1x16xf32>
    %18 = arith.select %15, %13, %17 : vector<1x16xi1>, vector<1x16xf32>
    %c0_14 = arith.constant 0 : index
    %c0_15 = arith.constant 0 : index
    %19 = vector.load %arg6[%c0_14, %c0_15] : memref<8x32xf32, #tpu.memory_space<vmem>>, vector<8x32xf32>
    %c0_16 = arith.constant 0 : index
    %c0_17 = arith.constant 0 : index
    %20 = vector.load %arg5[%c0_16, %c0_17] : memref<32x256xf32, #tpu.memory_space<vmem>>, vector<32x256xf32>
    %cst_18 = arith.constant dense<0.000000e+00> : vector<8x256xf32>
    %21 = tpu.matmul %19, %20, %cst_18 {dimension_numbers = #tpu.dot_dimension_numbers<[1], [0], [0], [1], [0, 0, 1, 1], [], []>} : vector<8x32xf32>, vector<32x256xf32>, vector<8x256xf32> -> vector<8x256xf32>
    %c0_19 = arith.constant 0 : index
    %c0_20 = arith.constant 0 : index
    %22 = vector.load %arg7[%c0_19, %c0_20] : memref<8x1xf32, #tpu.memory_space<vmem>>, vector<8x1xf32>
    %23 = vector.broadcast %22 : vector<8x1xf32> to vector<8x256xf32>
    %24 = arith.addf %21, %23 : vector<8x256xf32>
    %cst_21 = arith.constant 0.000000e+00 : f32
    %25 = vector.broadcast %cst_21 : f32 to vector<8x256xf32>
    %26 = arith.maximumf %24, %25 : vector<8x256xf32>
    %27 = vector.extract_strided_slice %26 {offsets = [0, 0], sizes = [8, 64], strides = [1, 1]} : vector<8x256xf32> to vector<8x64xf32>
    %28 = vector.extract_strided_slice %26 {offsets = [0, 64], sizes = [8, 64], strides = [1, 1]} : vector<8x256xf32> to vector<8x64xf32>
    %29 = arith.addf %27, %28 : vector<8x64xf32>
    %30 = vector.extract_strided_slice %26 {offsets = [0, 128], sizes = [8, 64], strides = [1, 1]} : vector<8x256xf32> to vector<8x64xf32>
    %31 = arith.addf %29, %30 : vector<8x64xf32>
    %32 = vector.extract_strided_slice %26 {offsets = [0, 192], sizes = [8, 64], strides = [1, 1]} : vector<8x256xf32> to vector<8x64xf32>
    %33 = arith.addf %31, %32 : vector<8x64xf32>
    %cst_22 = arith.constant 2.500000e-01 : f32
    %34 = vector.broadcast %cst_22 : f32 to vector<8x64xf32>
    %35 = arith.mulf %34, %33 : vector<8x64xf32>
    %36 = arith.truncf %35 : vector<8x64xf32> to vector<8x64xbf16>
    %37 = vector.extract_strided_slice %36 {offsets = [0, 0], sizes = [1, 64], strides = [1, 1]} : vector<8x64xbf16> to vector<1x64xbf16>
    %c0_23 = arith.constant 0 : index
    %c0_24 = arith.constant 0 : index
    %38 = vector.load %arg8[%c0_23, %c0_24] : memref<512x1024xbf16, #tpu.memory_space<vmem>>, vector<64x1024xbf16>
    %cst_25 = arith.constant dense<0.000000e+00> : vector<1x1024xf32>
    %39 = tpu.matmul %37, %38, %cst_25 {dimension_numbers = #tpu.dot_dimension_numbers<[1], [0], [0], [1], [0, 0, 1, 1], [], []>} : vector<1x64xbf16>, vector<64x1024xbf16>, vector<1x1024xf32> -> vector<1x1024xf32>
    %40 = vector.extract_strided_slice %36 {offsets = [1, 0], sizes = [1, 64], strides = [1, 1]} : vector<8x64xbf16> to vector<1x64xbf16>
    %c64 = arith.constant 64 : index
    %c0_26 = arith.constant 0 : index
    %41 = vector.load %arg8[%c64, %c0_26] : memref<512x1024xbf16, #tpu.memory_space<vmem>>, vector<64x1024xbf16>
    %cst_27 = arith.constant dense<0.000000e+00> : vector<1x1024xf32>
    %42 = tpu.matmul %40, %41, %cst_27 {dimension_numbers = #tpu.dot_dimension_numbers<[1], [0], [0], [1], [0, 0, 1, 1], [], []>} : vector<1x64xbf16>, vector<64x1024xbf16>, vector<1x1024xf32> -> vector<1x1024xf32>
    %43 = vector.extract_strided_slice %36 {offsets = [2, 0], sizes = [1, 64], strides = [1, 1]} : vector<8x64xbf16> to vector<1x64xbf16>
    %c128 = arith.constant 128 : index
    %c0_28 = arith.constant 0 : index
    %44 = vector.load %arg8[%c128, %c0_28] : memref<512x1024xbf16, #tpu.memory_space<vmem>>, vector<64x1024xbf16>
    %cst_29 = arith.constant dense<0.000000e+00> : vector<1x1024xf32>
    %45 = tpu.matmul %43, %44, %cst_29 {dimension_numbers = #tpu.dot_dimension_numbers<[1], [0], [0], [1], [0, 0, 1, 1], [], []>} : vector<1x64xbf16>, vector<64x1024xbf16>, vector<1x1024xf32> -> vector<1x1024xf32>
    %46 = vector.extract_strided_slice %36 {offsets = [3, 0], sizes = [1, 64], strides = [1, 1]} : vector<8x64xbf16> to vector<1x64xbf16>
    %c192 = arith.constant 192 : index
    %c0_30 = arith.constant 0 : index
    %47 = vector.load %arg8[%c192, %c0_30] : memref<512x1024xbf16, #tpu.memory_space<vmem>>, vector<64x1024xbf16>
    %cst_31 = arith.constant dense<0.000000e+00> : vector<1x1024xf32>
    %48 = tpu.matmul %46, %47, %cst_31 {dimension_numbers = #tpu.dot_dimension_numbers<[1], [0], [0], [1], [0, 0, 1, 1], [], []>} : vector<1x64xbf16>, vector<64x1024xbf16>, vector<1x1024xf32> -> vector<1x1024xf32>
    %49 = vector.extract_strided_slice %36 {offsets = [4, 0], sizes = [1, 64], strides = [1, 1]} : vector<8x64xbf16> to vector<1x64xbf16>
    %c256 = arith.constant 256 : index
    %c0_32 = arith.constant 0 : index
    %50 = vector.load %arg8[%c256, %c0_32] : memref<512x1024xbf16, #tpu.memory_space<vmem>>, vector<64x1024xbf16>
    %cst_33 = arith.constant dense<0.000000e+00> : vector<1x1024xf32>
    %51 = tpu.matmul %49, %50, %cst_33 {dimension_numbers = #tpu.dot_dimension_numbers<[1], [0], [0], [1], [0, 0, 1, 1], [], []>} : vector<1x64xbf16>, vector<64x1024xbf16>, vector<1x1024xf32> -> vector<1x1024xf32>
    %52 = vector.extract_strided_slice %36 {offsets = [5, 0], sizes = [1, 64], strides = [1, 1]} : vector<8x64xbf16> to vector<1x64xbf16>
    %c320 = arith.constant 320 : index
    %c0_34 = arith.constant 0 : index
    %53 = vector.load %arg8[%c320, %c0_34] : memref<512x1024xbf16, #tpu.memory_space<vmem>>, vector<64x1024xbf16>
    %cst_35 = arith.constant dense<0.000000e+00> : vector<1x1024xf32>
    %54 = tpu.matmul %52, %53, %cst_35 {dimension_numbers = #tpu.dot_dimension_numbers<[1], [0], [0], [1], [0, 0, 1, 1], [], []>} : vector<1x64xbf16>, vector<64x1024xbf16>, vector<1x1024xf32> -> vector<1x1024xf32>
    %55 = vector.extract_strided_slice %36 {offsets = [6, 0], sizes = [1, 64], strides = [1, 1]} : vector<8x64xbf16> to vector<1x64xbf16>
    %c384 = arith.constant 384 : index
    %c0_36 = arith.constant 0 : index
    %56 = vector.load %arg8[%c384, %c0_36] : memref<512x1024xbf16, #tpu.memory_space<vmem>>, vector<64x1024xbf16>
    %cst_37 = arith.constant dense<0.000000e+00> : vector<1x1024xf32>
    %57 = tpu.matmul %55, %56, %cst_37 {dimension_numbers = #tpu.dot_dimension_numbers<[1], [0], [0], [1], [0, 0, 1, 1], [], []>} : vector<1x64xbf16>, vector<64x1024xbf16>, vector<1x1024xf32> -> vector<1x1024xf32>
    %58 = vector.extract_strided_slice %36 {offsets = [7, 0], sizes = [1, 64], strides = [1, 1]} : vector<8x64xbf16> to vector<1x64xbf16>
    %c448 = arith.constant 448 : index
    %c0_38 = arith.constant 0 : index
    %59 = vector.load %arg8[%c448, %c0_38] : memref<512x1024xbf16, #tpu.memory_space<vmem>>, vector<64x1024xbf16>
    %cst_39 = arith.constant dense<0.000000e+00> : vector<1x1024xf32>
    %60 = tpu.matmul %58, %59, %cst_39 {dimension_numbers = #tpu.dot_dimension_numbers<[1], [0], [0], [1], [0, 0, 1, 1], [], []>} : vector<1x64xbf16>, vector<64x1024xbf16>, vector<1x1024xf32> -> vector<1x1024xf32>
    %c0_40 = arith.constant 0 : index
    %c0_41 = arith.constant 0 : index
    %61 = vector.load %arg9[%c0_40, %c0_41] : memref<1x1024xf32, #tpu.memory_space<vmem>>, vector<1x1024xf32>
    %62 = arith.addf %39, %42 : vector<1x1024xf32>
    %63 = arith.addf %45, %48 : vector<1x1024xf32>
    %64 = arith.addf %51, %54 : vector<1x1024xf32>
    %65 = arith.addf %57, %60 : vector<1x1024xf32>
    %66 = arith.addf %62, %63 : vector<1x1024xf32>
    %67 = arith.addf %64, %65 : vector<1x1024xf32>
    %68 = arith.addf %66, %67 : vector<1x1024xf32>
    %69 = arith.addf %68, %61 : vector<1x1024xf32>
    %cst_42 = arith.constant 0.000000e+00 : f32
    %70 = vector.broadcast %cst_42 : f32 to vector<1x1024xf32>
    %71 = arith.maximumf %69, %70 : vector<1x1024xf32>
    %72 = arith.truncf %71 : vector<1x1024xf32> to vector<1x1024xbf16>
    %c0_43 = arith.constant 0 : index
    %c0_44 = arith.constant 0 : index
    %73 = vector.load %arg10[%c0_43, %c0_44] : memref<1024x48xbf16, #tpu.memory_space<vmem>>, vector<1024x48xbf16>
    %cst_45 = arith.constant dense<0.000000e+00> : vector<1x48xf32>
    %74 = tpu.matmul %72, %73, %cst_45 {dimension_numbers = #tpu.dot_dimension_numbers<[1], [0], [0], [1], [0, 0, 1, 1], [], []>} : vector<1x1024xbf16>, vector<1024x48xbf16>, vector<1x48xf32> -> vector<1x48xf32>
    %c0_46 = arith.constant 0 : index
    %c0_47 = arith.constant 0 : index
    %75 = vector.load %arg11[%c0_46, %c0_47] : memref<1x48xf32, #tpu.memory_space<vmem>>, vector<1x48xf32>
    %76 = arith.addf %74, %75 : vector<1x48xf32>
    %cst_48 = arith.constant 0.000000e+00 : f32
    %77 = vector.broadcast %cst_48 : f32 to vector<1x48xf32>
    %78 = arith.maximumf %76, %77 : vector<1x48xf32>
    %c0_49 = arith.constant 0 : index
    %c0_50 = arith.constant 0 : index
    %79 = vector.load %arg12[%c0_49, %c0_50] : memref<16x1xf32, #tpu.memory_space<vmem>>, vector<16x1xf32>
    %cst_51 = arith.constant dense<0.000000e+00> : vector<1x1xf32>
    %80 = tpu.matmul %18, %79, %cst_51 {dimension_numbers = #tpu.dot_dimension_numbers<[1], [0], [0], [1], [0, 0, 1, 1], [], []>} : vector<1x16xf32>, vector<16x1xf32>, vector<1x1xf32> -> vector<1x1xf32>
    %c0_52 = arith.constant 0 : index
    %c0_53 = arith.constant 0 : index
    %81 = vector.load %arg13[%c0_52, %c0_53] : memref<48x1xf32, #tpu.memory_space<vmem>>, vector<48x1xf32>
    %cst_54 = arith.constant dense<0.000000e+00> : vector<1x1xf32>
    %82 = tpu.matmul %78, %81, %cst_54 {dimension_numbers = #tpu.dot_dimension_numbers<[1], [0], [0], [1], [0, 0, 1, 1], [], []>} : vector<1x48xf32>, vector<48x1xf32>, vector<1x1xf32> -> vector<1x1xf32>
    %83 = arith.addf %80, %82 : vector<1x1xf32>
    %c0_55 = arith.constant 0 : index
    %c0_56 = arith.constant 0 : index
    %84 = vector.load %arg14[%c0_55, %c0_56] : memref<1x1xf32, #tpu.memory_space<vmem>>, vector<1x1xf32>
    %85 = arith.addf %83, %84 : vector<1x1xf32>
    %c0_57 = arith.constant 0 : index
    %c0_58 = arith.constant 0 : index
    %86 = vector.load %arg15[%c0_57, %c0_58] : memref<1x1xf32, #tpu.memory_space<vmem>>, vector<1x1xf32>
    tpu.vector_store %arg15[%c0_57, %c0_58], %85 {strides = array<i32>} : memref<1x1xf32, #tpu.memory_space<vmem>>, vector<1x1xf32>,
    return
  }
}

</mosaic_0001>

<llo_original>
// kernel: tpu_custom_call.1
$region0: #{tpu_custom_call.1}
  #allocation0 [shape = 'u32[]', space=smem, size = 0x4, offset = 0x4, fixed_abs, tag = 'smem constant byte address 0x4 - core index']
  #allocation1 [shape = 'u32[144,128]{1,0:T(1,128)}', space=vmem, size = 0x12000, scoped, tag = 'internal scratch']
  #allocation2 [shape = 'f32[1,1]{1,0:T(1,128)S(1)}', space=vmem, size = 0x200, scoped, tag = 'scoped memory for tpu_custom_call.1']
  %s0 = inlined_call_operand.vmem [shape: f32[1,32], index: 0, kind: input, shape index: {}]
  %s1 = inlined_call_operand.vmem [shape: f32[32,64], index: 1, kind: input, shape index: {}]
  %s2 = inlined_call_operand.vmem [shape: f32[1,64], index: 2, kind: input, shape index: {}]
  %s3 = inlined_call_operand.vmem [shape: f32[64,16], index: 3, kind: input, shape index: {}]
  %s4 = inlined_call_operand.vmem [shape: f32[1,16], index: 4, kind: input, shape index: {}]
  %s5 = inlined_call_operand.vmem [shape: f32[32,256], index: 5, kind: input, shape index: {}]
  %s6 = inlined_call_operand.vmem [shape: f32[8,32], index: 6, kind: input, shape index: {}]
  %s7 = inlined_call_operand.vmem [shape: f32[8,1], index: 7, kind: input, shape index: {}]
  %s8 = inlined_call_operand.hbm [shape: bf16[512,1024], index: 8, kind: input, shape index: {}]
  %s9 = inlined_call_operand.vmem [shape: f32[1,1024], index: 9, kind: input, shape index: {}]
  %s10 = inlined_call_operand.vmem [shape: bf16[1024,48], index: 10, kind: input, shape index: {}]
  %s11 = inlined_call_operand.vmem [shape: f32[1,48], index: 11, kind: input, shape index: {}]
  %s12 = inlined_call_operand.vmem [shape: f32[16,1], index: 12, kind: input, shape index: {}]
  %s13 = inlined_call_operand.vmem [shape: f32[48,1], index: 13, kind: input, shape index: {}]
  %s14 = inlined_call_operand.<no memory space> [shape: f32[1,1], index: 14, kind: input, shape index: {}]
  %s15 = inlined_call_operand.hbm [shape: f32[1,1], index: 15, kind: output, shape index: {}]
  %s16 = sld [smem:[#allocation0]]
  $region74: #{tpu_custom_call.1} parent=0
    _
  %s18 = ssub.s32 1, %s16
  %s19 = scalar_select 0, %s18, %s16
  %v20 = vstv %s14
  %21 = vst [vmem:[#allocation2] sm:$0x1] %v20
  $region1: #{tpu_custom_call.1} parent=0
    #allocation3 [shape = 'u8[1048576]{0}', space=vmem, size = 0x100000, scoped, tag = 'input window, operand 8, single buffered']
    #allocation4 [shape = 's32[1]{0}', space=sflag, size = 0x4, scoped, tag = 'scoped memory for tpu_custom_call.1']
    #allocation5 [shape = 's32[1]{0}', space=sflag, size = 0x4, scoped, tag = 'scoped memory for tpu_custom_call.1']
    #allocation6 [shape = 'u8[512]{0}', space=vmem, size = 0x400, scoped, tag = 'output window, operand 0, single buffered']
    %22 = vsyncpa [#allocation4], 0
    %23 = vsyncpa [#allocation5], 0
    // Predicated region
    $region2: #{tpu_custom_call.1} parent=1 // pred_check
      _
    $region3: #{tpu_custom_call.1} parent=1 // pred_check_branch
      %25 = sbr.rel (0) target = $region5
    $region4: #{tpu_custom_call.1} parent=1 // pred_region
      _
    $region5: #{tpu_custom_call.1} parent=1 // pred_fallthru
      _
    // Predicated region
    $region6: #{tpu_custom_call.1} parent=1 // pred_check
      _
    $region7: #{tpu_custom_call.1} parent=1 // pred_check_branch
      %27 = sbr.rel (0) target = $region9
    $region8: #{tpu_custom_call.1} parent=1 // pred_region
      _
    $region9: #{tpu_custom_call.1} parent=1 // pred_fallthru
      _
    // Predicated region
    $region10: #{tpu_custom_call.1} parent=1 // pred_check
      _
    $region11: #{tpu_custom_call.1} parent=1 // pred_check_branch
      %29 = sbr.rel (0) target = $region13
    $region12: #{tpu_custom_call.1} parent=1 // pred_region
      _
    $region13: #{tpu_custom_call.1} parent=1 // pred_fallthru
      _
    // Predicated region
    $region14: #{tpu_custom_call.1} parent=1 // pred_check
      _
    $region15: #{tpu_custom_call.1} parent=1 // pred_check_branch
      %31 = sbr.rel (0) target = $region17
    $region16: #{tpu_custom_call.1} parent=1 // pred_region
      _
    $region17: #{tpu_custom_call.1} parent=1 // pred_fallthru
      _
    // Predicated region
    $region18: #{tpu_custom_call.1} parent=1 // pred_check
      _
    $region19: #{tpu_custom_call.1} parent=1 // pred_check_branch
      %33 = sbr.rel (0) target = $region21
    $region20: #{tpu_custom_call.1} parent=1 // pred_region
      _
    $region21: #{tpu_custom_call.1} parent=1 // pred_fallthru
      _
    // Predicated region
    $region22: #{tpu_custom_call.1} parent=1 // pred_check
      _
    $region23: #{tpu_custom_call.1} parent=1 // pred_check_branch
      %35 = sbr.rel (0) target = $region25
    $region24: #{tpu_custom_call.1} parent=1 // pred_region
      _
    $region25: #{tpu_custom_call.1} parent=1 // pred_fallthru
      _
    // Predicated region
    $region26: #{tpu_custom_call.1} parent=1 // pred_check
      _
    $region27: #{tpu_custom_call.1} parent=1 // pred_check_branch
      %37 = sbr.rel (0) target = $region29
    $region28: #{tpu_custom_call.1} parent=1 // pred_region
      _
    $region29: #{tpu_custom_call.1} parent=1 // pred_fallthru
      _
    // Predicated region
    $region30: #{tpu_custom_call.1} parent=1 // pred_check
      _
    $region31: #{tpu_custom_call.1} parent=1 // pred_check_branch
      %39 = sbr.rel (0) target = $region33
    $region32: #{tpu_custom_call.1} parent=1 // pred_region
      _
    $region33: #{tpu_custom_call.1} parent=1 // pred_fallthru
      _
    // Predicated region
    $region34: #{tpu_custom_call.1} parent=1 // pred_check
      _
    $region35: #{tpu_custom_call.1} parent=1 // pred_check_branch
      %41 = sbr.rel (0) target = $region37
    $region36: #{tpu_custom_call.1} parent=1 // pred_region
      %s43 = ssub.s32 32768, 32768
      %44 = vsyncadd [#allocation4], %s43
      %s45 = sshll.u32 [#allocation3], 4
      %s46 = int_to_ptr.vmem [resolvable:$true] %s45
      %51 = dma.hbm_to_vmem [thread:$0]  %s8, 32768, %s46, [#allocation4], 512, 512, 32
    $region37: #{tpu_custom_call.1} parent=1 // pred_fallthru
      _
    // Predicated region
    $region38: #{tpu_custom_call.1} parent=1 // pred_check
      _
    $region39: #{tpu_custom_call.1} parent=1 // pred_check_branch
      %53 = sbr.rel (0) target = $region41
    $region40: #{tpu_custom_call.1} parent=1 // pred_region
      _
    $region41: #{tpu_custom_call.1} parent=1 // pred_fallthru
      _
    // Predicated region
    $region42: #{tpu_custom_call.1} parent=1 // pred_check
      _
    $region43: #{tpu_custom_call.1} parent=1 // pred_check_branch
      %55 = sbr.rel (0) target = $region45
    $region44: #{tpu_custom_call.1} parent=1 // pred_region
      _
    $region45: #{tpu_custom_call.1} parent=1 // pred_fallthru
      _
    // Predicated region
    $region46: #{tpu_custom_call.1} parent=1 // pred_check
      _
    $region47: #{tpu_custom_call.1} parent=1 // pred_check_branch
      %57 = sbr.rel (0) target = $region49
    $region48: #{tpu_custom_call.1} parent=1 // pred_region
      _
    $region49: #{tpu_custom_call.1} parent=1 // pred_fallthru
      _
    // Predicated region
    $region50: #{tpu_custom_call.1} parent=1 // pred_check
      _
    $region51: #{tpu_custom_call.1} parent=1 // pred_check_branch
      %59 = sbr.rel (0) target = $region53
    $region52: #{tpu_custom_call.1} parent=1 // pred_region
      _
    $region53: #{tpu_custom_call.1} parent=1 // pred_fallthru
      _
    // Predicated region
    $region54: #{tpu_custom_call.1} parent=1 // pred_check
      _
    $region55: #{tpu_custom_call.1} parent=1 // pred_check_branch
      %61 = sbr.rel (0) target = $region57
    $region56: #{tpu_custom_call.1} parent=1 // pred_region
      _
    $region57: #{tpu_custom_call.1} parent=1 // pred_fallthru
      _
    // Predicated region
    $region58: #{tpu_custom_call.1} parent=1 // pred_check
      _
    $region59: #{tpu_custom_call.1} parent=1 // pred_check_branch
      %63 = sbr.rel (0) target = $region61
    $region60: #{tpu_custom_call.1} parent=1 // pred_region
      _
    $region61: #{tpu_custom_call.1} parent=1 // pred_fallthru
      _
    // Predicated region
    $region62: #{tpu_custom_call.1} parent=1 // pred_check
      _
    $region63: #{tpu_custom_call.1} parent=1 // pred_check_branch
      %65 = sbr.rel (0) target = $region65
    $region64: #{tpu_custom_call.1} parent=1 // pred_region
      %66 = dma.done [#allocation4], 32768
    $region65: #{tpu_custom_call.1} parent=1 // pred_fallthru
      _
    %v68 = vld [vmem:[%s0] sm:$0x1]
    %v69 = vld [vmem:[%s1] sm:$0xff]
    %v70 = vld [vmem:[%s1 + $0x8] sm:$0xff]
    %v71 = vld [vmem:[%s1 + $0x10] sm:$0xff]
    %v72 = vld [vmem:[%s1 + $0x18] sm:$0xff]
    %v73 = vld [vmem:[%s2] sm:$0x1]
    %vm74 = vcmask 261120
    %v76 = vsel %vm74, %v68, 0
    %78 = vmatprep.subr.mxu0 0.0
    %79 = vmatpush1.msra.mxu0 %v69
    %80 = vmatprep.subr.mxu0 0.0
    %81 = vmatpush1.msra.mxu0 %v70
    %82 = vmatprep.subr.mxu0 0.0
    %83 = vmatpush1.msra.mxu0 %v71
    %84 = vmatprep.subr.mxu0 0.0
    %85 = vmatpush1.msra.mxu0 %v72
    %86 = vmatprep.subr.mxu0 0.0
    %87 = vmatpush1.msra.mxu0 0.0
    %88 = vmatprep.subr.mxu0 0.0
    %89 = vmatpush1.msra.mxu0 0.0
    %90 = vmatprep.subr.mxu0 0.0
    %91 = vmatpush1.msra.mxu0 0.0
    %92 = vmatprep.subr.mxu0 0.0
    %93 = vmatpush1.msra.mxu0 0.0
    %94 = vmatprep.subr.mxu0 0.0
    %95 = vmatpush1.msra.mxu0 0.0
    %96 = vmatprep.subr.mxu0 0.0
    %97 = vmatpush1.msra.mxu0 0.0
    %98 = vmatprep.subr.mxu0 0.0
    %99 = vmatpush1.msra.mxu0 0.0
    %100 = vmatprep.subr.mxu0 0.0
    %101 = vmatpush1.msra.mxu0 0.0
    %102 = vmatprep.subr.mxu0 0.0
    %103 = vmatpush1.msra.mxu0 0.0
    %104 = vmatprep.subr.mxu0 0.0
    %105 = vmatpush1.msra.mxu0 0.0
    %106 = vmatprep.subr.mxu0 0.0
    %107 = vmatpush1.msra.mxu0 0.0
    %108 = vmatprep.subr.mxu0 0.0
    %109 = vmatpush1.msra.mxu0 0.0
    %110 = vmatprep.subr.mxu0 0.0
    %111 = vmatpush1.msra.mxu0 0.0
    %112 = vmatprep.subr.mxu0 0.0
    %113 = vmatpush1.msra.mxu0 0.0
    %114 = vmatprep.subr.mxu0 0.0
    %115 = vmatpush1.msra.mxu0 0.0
    %116 = vmatprep.subr.mxu0 0.0
    %117 = vmatpush1.msra.mxu0 0.0
    %118 = vmatprep.subr.mxu0 0.0
    %119 = vmatpush1.msra.mxu0 0.0
    %120 = vmatprep.subr.mxu0 0.0
    %121 = vmatpush1.msra.mxu0 0.0
    %122 = vmatprep.subr.mxu0 0.0
    %123 = vmatpush1.msra.mxu0 0.0
    %124 = vmatprep.subr.mxu0 0.0
    %125 = vmatpush1.msra.mxu0 0.0
    %126 = vmatprep.subr.mxu0 0.0
    %127 = vmatpush1.msra.mxu0 0.0
    %128 = vmatprep.subr.mxu0 0.0
    %129 = vmatpush1.msra.mxu0 0.0
    %130 = vmatprep.subr.mxu0 0.0
    %131 = vmatpush1.msra.mxu0 0.0
    %132 = vmatprep.subr.mxu0 0.0
    %133 = vmatpush1.msra.mxu0 0.0
    %134 = vmatprep.subr.mxu0 0.0
    %135 = vmatpush1.msra.mxu0 0.0
    %136 = vmatprep.subr.mxu0 0.0
    %137 = vmatpush1.msra.mxu0 0.0
    %138 = vmatprep.subr.mxu0 0.0
    %139 = vmatpush1.msra.mxu0 0.0
    %140 = vmatprep.subr.mxu0 0.0
    %141 = vmatpush1.msra.mxu0 0.0
    %142 = vmatprep.mubr.f32.mxu0 0.0
    %143 = vmatmul.mubr.f32.gmra.mrb[0].mxu0 %v76
    %v144 = vpop.f32.mrb[0].mxu0
    %v145 = vadd.f32 %v73, %v144
    %v146 = vpop.f32.mrb[0].mxu0
    %147 = vdwg.mxu0
    %vm148 = vcmp.ge.f32.partialorder %v145, 0.0
    %v149 = vmul.f32 %v145, 0.01
    %v150 = vsel %vm148, %v145, %v149
    %v151 = vld [vmem:[%s3] sm:$0xff]
    %v152 = vld [vmem:[%s3 + $0x8] sm:$0xff]
    %v153 = vld [vmem:[%s3 + $0x10] sm:$0xff]
    %v154 = vld [vmem:[%s3 + $0x18] sm:$0xff]
    %v155 = vld [vmem:[%s3 + $0x20] sm:$0xff]
    %v156 = vld [vmem:[%s3 + $0x28] sm:$0xff]
    %v157 = vld [vmem:[%s3 + $0x30] sm:$0xff]
    %v158 = vld [vmem:[%s3 + $0x38] sm:$0xff]
    %v159 = vld [vmem:[%s4] sm:$0x1]
    %vm160 = vcmask 523264
    %v162 = vsel %vm160, %v150, 0
    %164 = vmatprep.subr.mxu0 0.0
    %165 = vmatpush1.msra.mxu0 %v151
    %166 = vmatprep.subr.mxu0 0.0
    %167 = vmatpush1.msra.mxu0 %v152
    %168 = vmatprep.subr.mxu0 0.0
    %169 = vmatpush1.msra.mxu0 %v153
    %170 = vmatprep.subr.mxu0 0.0
    %171 = vmatpush1.msra.mxu0 %v154
    %172 = vmatprep.subr.mxu0 0.0
    %173 = vmatpush1.msra.mxu0 %v155
    %174 = vmatprep.subr.mxu0 0.0
    %175 = vmatpush1.msra.mxu0 %v156
    %176 = vmatprep.subr.mxu0 0.0
    %177 = vmatpush1.msra.mxu0 %v157
    %178 = vmatprep.subr.mxu0 0.0
    %179 = vmatpush1.msra.mxu0 %v158
    %180 = vmatprep.subr.mxu0 0.0
    %181 = vmatpush1.msra.mxu0 0.0
    %182 = vmatprep.subr.mxu0 0.0
    %183 = vmatpush1.msra.mxu0 0.0
    %184 = vmatprep.subr.mxu0 0.0
    %185 = vmatpush1.msra.mxu0 0.0
    %186 = vmatprep.subr.mxu0 0.0
    %187 = vmatpush1.msra.mxu0 0.0
    %188 = vmatprep.subr.mxu0 0.0
    %189 = vmatpush1.msra.mxu0 0.0
    %190 = vmatprep.subr.mxu0 0.0
    %191 = vmatpush1.msra.mxu0 0.0
    %192 = vmatprep.subr.mxu0 0.0
    %193 = vmatpush1.msra.mxu0 0.0
    %194 = vmatprep.subr.mxu0 0.0
    %195 = vmatpush1.msra.mxu0 0.0
    %196 = vmatprep.subr.mxu0 0.0
    %197 = vmatpush1.msra.mxu0 0.0
    %198 = vmatprep.subr.mxu0 0.0
    %199 = vmatpush1.msra.mxu0 0.0
    %200 = vmatprep.subr.mxu0 0.0
    %201 = vmatpush1.msra.mxu0 0.0
    %202 = vmatprep.subr.mxu0 0.0
    %203 = vmatpush1.msra.mxu0 0.0
    %204 = vmatprep.subr.mxu0 0.0
    %205 = vmatpush1.msra.mxu0 0.0
    %206 = vmatprep.subr.mxu0 0.0
    %207 = vmatpush1.msra.mxu0 0.0
    %208 = vmatprep.subr.mxu0 0.0
    %209 = vmatpush1.msra.mxu0 0.0
    %210 = vmatprep.subr.mxu0 0.0
    %211 = vmatpush1.msra.mxu0 0.0
    %212 = vmatprep.subr.mxu0 0.0
    %213 = vmatpush1.msra.mxu0 0.0
    %214 = vmatprep.subr.mxu0 0.0
    %215 = vmatpush1.msra.mxu0 0.0
    %216 = vmatprep.subr.mxu0 0.0
    %217 = vmatpush1.msra.mxu0 0.0
    %218 = vmatprep.subr.mxu0 0.0
    %219 = vmatpush1.msra.mxu0 0.0
    %220 = vmatprep.subr.mxu0 0.0
    %221 = vmatpush1.msra.mxu0 0.0
    %222 = vmatprep.subr.mxu0 0.0
    %223 = vmatpush1.msra.mxu0 0.0
    %224 = vmatprep.subr.mxu0 0.0
    %225 = vmatpush1.msra.mxu0 0.0
    %226 = vmatprep.subr.mxu0 0.0
    %227 = vmatpush1.msra.mxu0 0.0
    %228 = vmatprep.mubr.f32.mxu0 0.0
    %229 = vmatmul.mubr.f32.gmra.mrb[0].mxu0 %v162
    %v230 = vpop.f32.mrb[0].mxu0
    %v231 = vadd.f32 %v159, %v230
    %v232 = vpop.f32.mrb[0].mxu0
    %233 = vdwg.mxu0
    %vm234 = vcmp.ge.f32.partialorder %v231, 0.0
    %v235 = vmul.f32 %v231, 0.01
    %v236 = vsel %vm234, %v231, %v235
    %v237 = vld [vmem:[%s6] sm:$0xff]
    %v238 = vld [vmem:[%s5] sm:$0xff]
    %v239 = vld [vmem:[%s5 + $0x8] sm:$0xff]
    %v240 = vld [vmem:[%s5 + $0x10] sm:$0xff]
    %v241 = vld [vmem:[%s5 + $0x18] sm:$0xff]
    %v242 = vld [vmem:[%s5 + $0x20] sm:$0xff]
    %v243 = vld [vmem:[%s5 + $0x28] sm:$0xff]
    %v244 = vld [vmem:[%s5 + $0x30] sm:$0xff]
    %v245 = vld [vmem:[%s5 + $0x38] sm:$0xff]
    %v246 = vld [vmem:[%s7] sm:$0xff]
    %248 = vset.pattern.permute.xlu0 0
    %249 = vperm.xlu0 %248, %v246
    %v250 = vpop.permute.xlu0 %249
    %v253 = vsel %vm74, %v237, 0
    %255 = vmatprep.subr.mxu0 %v239
    %256 = vmatpush1.msra.mxu0 %v238
    %257 = vmatprep.subr.mxu0 %v241
    %258 = vmatpush1.msra.mxu0 %v240
    %259 = vmatprep.subr.mxu0 %v243
    %260 = vmatpush1.msra.mxu0 %v242
    %261 = vmatprep.subr.mxu0 %v245
    %262 = vmatpush1.msra.mxu0 %v244
    %263 = vmatprep.subr.mxu0 0.0
    %264 = vmatpush1.msra.mxu0 0.0
    %265 = vmatprep.subr.mxu0 0.0
    %266 = vmatpush1.msra.mxu0 0.0
    %267 = vmatprep.subr.mxu0 0.0
    %268 = vmatpush1.msra.mxu0 0.0
    %269 = vmatprep.subr.mxu0 0.0
    %270 = vmatpush1.msra.mxu0 0.0
    %271 = vmatprep.subr.mxu0 0.0
    %272 = vmatpush1.msra.mxu0 0.0
    %273 = vmatprep.subr.mxu0 0.0
    %274 = vmatpush1.msra.mxu0 0.0
    %275 = vmatprep.subr.mxu0 0.0
    %276 = vmatpush1.msra.mxu0 0.0
    %277 = vmatprep.subr.mxu0 0.0
    %278 = vmatpush1.msra.mxu0 0.0
    %279 = vmatprep.subr.mxu0 0.0
    %280 = vmatpush1.msra.mxu0 0.0
    %281 = vmatprep.subr.mxu0 0.0
    %282 = vmatpush1.msra.mxu0 0.0
    %283 = vmatprep.subr.mxu0 0.0
    %284 = vmatpush1.msra.mxu0 0.0
    %285 = vmatprep.subr.mxu0 0.0
    %286 = vmatpush1.msra.mxu0 0.0
    %287 = vmatprep.subr.mxu0 0.0
    %288 = vmatpush1.msra.mxu0 0.0
    %289 = vmatprep.subr.mxu0 0.0
    %290 = vmatpush1.msra.mxu0 0.0
    %291 = vmatprep.subr.mxu0 0.0
    %292 = vmatpush1.msra.mxu0 0.0
    %293 = vmatprep.subr.mxu0 0.0
    %294 = vmatpush1.msra.mxu0 0.0
    %295 = vmatprep.subr.mxu0 0.0
    %296 = vmatpush1.msra.mxu0 0.0
    %297 = vmatprep.subr.mxu0 0.0
    %298 = vmatpush1.msra.mxu0 0.0
    %299 = vmatprep.subr.mxu0 0.0
    %300 = vmatpush1.msra.mxu0 0.0
    %301 = vmatprep.subr.mxu0 0.0
    %302 = vmatpush1.msra.mxu0 0.0
    %303 = vmatprep.subr.mxu0 0.0
    %304 = vmatpush1.msra.mxu0 0.0
    %305 = vmatprep.subr.mxu0 0.0
    %306 = vmatpush1.msra.mxu0 0.0
    %307 = vmatprep.subr.mxu0 0.0
    %308 = vmatpush1.msra.mxu0 0.0
    %309 = vmatprep.subr.mxu0 0.0
    %310 = vmatpush1.msra.mxu0 0.0
    %311 = vmatprep.subr.mxu0 0.0
    %312 = vmatpush1.msra.mxu0 0.0
    %313 = vmatprep.subr.mxu0 0.0
    %314 = vmatpush1.msra.mxu0 0.0
    %315 = vmatprep.subr.mxu0 0.0
    %316 = vmatpush1.msra.mxu0 0.0
    %317 = vmatprep.subr.mxu0 0.0
    %318 = vmatpush1.msra.mxu0 0.0
    %319 = vmatprep.mubr.f32.mxu0 0.0
    %320 = vmatmul.mubr.f32.gmra.mrb[0].mxu0 %v253
    %v321 = vpop.f32.mrb[0].mxu0
    %v322 = vadd.f32 %v250, %v321
    %v323 = vpop.f32.mrb[0].mxu0
    %v324 = vadd.f32 %v250, %v323
    %325 = vdwg.mxu0
    %v326 = vmax.f32 %v322, 0.0
    %v327 = vmax.f32 %v324, 0.0
    %329 = vrot.lane.b32.xlu0 %v326, 64
    %v330 = vpop.permute.xlu0 %329
    %v332 = vadd.f32 %v326, %v330
    %v333 = vadd.f32 %v332, %v327
    %335 = vrot.lane.b32.xlu0 %v327, 64
    %v336 = vpop.permute.xlu0 %335
    %v338 = vadd.f32 %v333, %v336
    %v339 = vmul.f32 %v338, 0.25
    %v340 = vpack.c.bf16 %v339, %v339
    %v341 = vld [vmem:[#allocation3] sm:$0xff]
    %v342 = vld [vmem:[#allocation3 + $0x8] sm:$0xff]
    %v343 = vld [vmem:[#allocation3 + $0x10] sm:$0xff]
    %v344 = vld [vmem:[#allocation3 + $0x18] sm:$0xff]
    %v345 = vld [vmem:[#allocation3 + $0x20] sm:$0xff]
    %v346 = vld [vmem:[#allocation3 + $0x28] sm:$0xff]
    %v347 = vld [vmem:[#allocation3 + $0x30] sm:$0xff]
    %v348 = vld [vmem:[#allocation3 + $0x38] sm:$0xff]
    %v349 = vld [vmem:[#allocation3 + $0x40] sm:$0xff]
    %v350 = vld [vmem:[#allocation3 + $0x48] sm:$0xff]
    %v351 = vld [vmem:[#allocation3 + $0x50] sm:$0xff]
    %v352 = vld [vmem:[#allocation3 + $0x58] sm:$0xff]
    %v353 = vld [vmem:[#allocation3 + $0x60] sm:$0xff]
    %v354 = vld [vmem:[#allocation3 + $0x68] sm:$0xff]
    %v355 = vld [vmem:[#allocation3 + $0x70] sm:$0xff]
    %v356 = vld [vmem:[#allocation3 + $0x78] sm:$0xff]
    %v357 = vld [vmem:[#allocation3 + $0x80] sm:$0xff]
    %v358 = vld [vmem:[#allocation3 + $0x88] sm:$0xff]
    %v359 = vld [vmem:[#allocation3 + $0x90] sm:$0xff]
    %v360 = vld [vmem:[#allocation3 + $0x98] sm:$0xff]
    %v361 = vld [vmem:[#allocation3 + $0xa0] sm:$0xff]
    %v362 = vld [vmem:[#allocation3 + $0xa8] sm:$0xff]
    %v363 = vld [vmem:[#allocation3 + $0xb0] sm:$0xff]
    %v364 = vld [vmem:[#allocation3 + $0xb8] sm:$0xff]
    %v365 = vld [vmem:[#allocation3 + $0xc0] sm:$0xff]
    %v366 = vld [vmem:[#allocation3 + $0xc8] sm:$0xff]
    %v367 = vld [vmem:[#allocation3 + $0xd0] sm:$0xff]
    %v368 = vld [vmem:[#allocation3 + $0xd8] sm:$0xff]
    %v369 = vld [vmem:[#allocation3 + $0xe0] sm:$0xff]
    %v370 = vld [vmem:[#allocation3 + $0xe8] sm:$0xff]
    %v371 = vld [vmem:[#allocation3 + $0xf0] sm:$0xff]
    %v372 = vld [vmem:[#allocation3 + $0xf8] sm:$0xff]
    %v373 = vld [vmem:[#allocation3 + $0x100] sm:$0xff]
    %v374 = vld [vmem:[#allocation3 + $0x108] sm:$0xff]
    %v375 = vld [vmem:[#allocation3 + $0x110] sm:$0xff]
    %v376 = vld [vmem:[#allocation3 + $0x118] sm:$0xff]
    %v377 = vld [vmem:[#allocation3 + $0x120] sm:$0xff]
    %v378 = vld [vmem:[#allocation3 + $0x128] sm:$0xff]
    %v379 = vld [vmem:[#allocation3 + $0x130] sm:$0xff]
    %v380 = vld [vmem:[#allocation3 + $0x138] sm:$0xff]
    %v381 = vld [vmem:[#allocation3 + $0x140] sm:$0xff]
    %v382 = vld [vmem:[#allocation3 + $0x148] sm:$0xff]
    %v383 = vld [vmem:[#allocation3 + $0x150] sm:$0xff]
    %v384 = vld [vmem:[#allocation3 + $0x158] sm:$0xff]
    %v385 = vld [vmem:[#allocation3 + $0x160] sm:$0xff]
    %v386 = vld [vmem:[#allocation3 + $0x168] sm:$0xff]
    %v387 = vld [vmem:[#allocation3 + $0x170] sm:$0xff]
    %v388 = vld [vmem:[#allocation3 + $0x178] sm:$0xff]
    %v389 = vld [vmem:[#allocation3 + $0x180] sm:$0xff]
    %v390 = vld [vmem:[#allocation3 + $0x188] sm:$0xff]
    %v391 = vld [vmem:[#allocation3 + $0x190] sm:$0xff]
    %v392 = vld [vmem:[#allocation3 + $0x198] sm:$0xff]
    %v393 = vld [vmem:[#allocation3 + $0x1a0] sm:$0xff]
    %v394 = vld [vmem:[#allocation3 + $0x1a8] sm:$0xff]
    %v395 = vld [vmem:[#allocation3 + $0x1b0] sm:$0xff]
    %v396 = vld [vmem:[#allocation3 + $0x1b8] sm:$0xff]
    %v397 = vld [vmem:[#allocation3 + $0x1c0] sm:$0xff]
    %v398 = vld [vmem:[#allocation3 + $0x1c8] sm:$0xff]
    %v399 = vld [vmem:[#allocation3 + $0x1d0] sm:$0xff]
    %v400 = vld [vmem:[#allocation3 + $0x1d8] sm:$0xff]
    %v401 = vld [vmem:[#allocation3 + $0x1e0] sm:$0xff]
    %v402 = vld [vmem:[#allocation3 + $0x1e8] sm:$0xff]
    %v403 = vld [vmem:[#allocation3 + $0x1f0] sm:$0xff]
    %v404 = vld [vmem:[#allocation3 + $0x1f8] sm:$0xff]
    %v406 = vshrl.u32 %v340, 16
    %v440 = vunpack.c.l.b16 %v373
    %v441 = vunpack.c.h.b16 %v373
    %v442 = vunpack.c.l.b16 %v374
    %v443 = vunpack.c.h.b16 %v374
    %v444 = vunpack.c.l.b16 %v375
    %v445 = vunpack.c.h.b16 %v375
    %v446 = vunpack.c.l.b16 %v376
    %v447 = vunpack.c.h.b16 %v376
    %v448 = vunpack.c.l.b16 %v377
    %v449 = vunpack.c.h.b16 %v377
    %v450 = vunpack.c.l.b16 %v378
    %v451 = vunpack.c.h.b16 %v378
    %v452 = vunpack.c.l.b16 %v379
    %v453 = vunpack.c.h.b16 %v379
    %v454 = vunpack.c.l.b16 %v380
    %v455 = vunpack.c.h.b16 %v380
    %v456 = vunpack.c.l.b16 %v381
    %v457 = vunpack.c.h.b16 %v381
    %v458 = vunpack.c.l.b16 %v382
    %v459 = vunpack.c.h.b16 %v382
    %v460 = vunpack.c.l.b16 %v383
    %v461 = vunpack.c.h.b16 %v383
    %v462 = vunpack.c.l.b16 %v384
    %v463 = vunpack.c.h.b16 %v384
    %v464 = vunpack.c.l.b16 %v385
    %v465 = vunpack.c.h.b16 %v385
    %v466 = vunpack.c.l.b16 %v386
    %v467 = vunpack.c.h.b16 %v386
    %v468 = vunpack.c.l.b16 %v387
    %v469 = vunpack.c.h.b16 %v387
    %v470 = vunpack.c.l.b16 %v388
    %v471 = vunpack.c.h.b16 %v388
    %v472 = vunpack.c.l.b16 %v389
    %v473 = vunpack.c.h.b16 %v389
    %v474 = vunpack.c.l.b16 %v390
    %v475 = vunpack.c.h.b16 %v390
    %v476 = vunpack.c.l.b16 %v391
    %v477 = vunpack.c.h.b16 %v391
    %v478 = vunpack.c.l.b16 %v392
    %v479 = vunpack.c.h.b16 %v392
    %v480 = vunpack.c.l.b16 %v393
    %v481 = vunpack.c.h.b16 %v393
    %v482 = vunpack.c.l.b16 %v394
    %v483 = vunpack.c.h.b16 %v394
    %v484 = vunpack.c.l.b16 %v395
    %v485 = vunpack.c.h.b16 %v395
    %v486 = vunpack.c.l.b16 %v396
    %v487 = vunpack.c.h.b16 %v396
    %v488 = vunpack.c.l.b16 %v397
    %v489 = vunpack.c.h.b16 %v397
    %v490 = vunpack.c.l.b16 %v398
    %v491 = vunpack.c.h.b16 %v398
    %v492 = vunpack.c.l.b16 %v399
    %v493 = vunpack.c.h.b16 %v399
    %v494 = vunpack.c.l.b16 %v400
    %v495 = vunpack.c.h.b16 %v400
    %v496 = vunpack.c.l.b16 %v401
    %v497 = vunpack.c.h.b16 %v401
    %v498 = vunpack.c.l.b16 %v402
    %v499 = vunpack.c.h.b16 %v402
    %v500 = vunpack.c.l.b16 %v403
    %v501 = vunpack.c.h.b16 %v403
    %v502 = vunpack.c.l.b16 %v404
    %v503 = vunpack.c.h.b16 %v404
    %v504 = vpack.c.b16 %v448, %v440
    %v505 = vpack.c.b16 %v449, %v441
    %v506 = vpack.c.b16 %v450, %v442
    %v507 = vpack.c.b16 %v451, %v443
    %v508 = vpack.c.b16 %v452, %v444
    %v509 = vpack.c.b16 %v453, %v445
    %v510 = vpack.c.b16 %v454, %v446
    %v511 = vpack.c.b16 %v455, %v447
    %v512 = vpack.c.b16 %v464, %v456
    %v513 = vpack.c.b16 %v465, %v457
    %v514 = vpack.c.b16 %v466, %v458
    %v515 = vpack.c.b16 %v467, %v459
    %v516 = vpack.c.b16 %v468, %v460
    %v517 = vpack.c.b16 %v469, %v461
    %v518 = vpack.c.b16 %v470, %v462
    %v519 = vpack.c.b16 %v471, %v463
    %v520 = vpack.c.b16 %v480, %v472
    %v521 = vpack.c.b16 %v481, %v473
    %v522 = vpack.c.b16 %v482, %v474
    %v523 = vpack.c.b16 %v483, %v475
    %v524 = vpack.c.b16 %v484, %v476
    %v525 = vpack.c.b16 %v485, %v477
    %v526 = vpack.c.b16 %v486, %v478
    %v527 = vpack.c.b16 %v487, %v479
    %v528 = vpack.c.b16 %v496, %v488
    %v529 = vpack.c.b16 %v497, %v489
    %v530 = vpack.c.b16 %v498, %v490
    %v531 = vpack.c.b16 %v499, %v491
    %v532 = vpack.c.b16 %v500, %v492
    %v533 = vpack.c.b16 %v501, %v493
    %v534 = vpack.c.b16 %v502, %v494
    %v535 = vpack.c.b16 %v503, %v495
    %v569 = vsel %vm160, %v406, 0
    %571 = vmatprep.subr.bf16.mxu0 %v505
    %572 = vmatpush1.bf16.msra.mxu0 %v504
    %573 = vmatprep.subr.bf16.mxu0 %v513
    %574 = vmatpush1.bf16.msra.mxu0 %v512
    %575 = vmatprep.subr.bf16.mxu0 %v521
    %576 = vmatpush1.bf16.msra.mxu0 %v520
    %577 = vmatprep.subr.bf16.mxu0 %v529
    %578 = vmatpush1.bf16.msra.mxu0 %v528
    %579 = vmatprep.subr.bf16.mxu0 0
    %580 = vmatpush1.bf16.msra.mxu0 0
    %581 = vmatprep.subr.bf16.mxu0 0
    %582 = vmatpush1.bf16.msra.mxu0 0
    %583 = vmatprep.subr.bf16.mxu0 0
    %584 = vmatpush1.bf16.msra.mxu0 0
    %585 = vmatprep.subr.bf16.mxu0 0
    %586 = vmatpush1.bf16.msra.mxu0 0
    %587 = vmatprep.subr.bf16.mxu0 0
    %588 = vmatpush1.bf16.msra.mxu0 0
    %589 = vmatprep.subr.bf16.mxu0 0
    %590 = vmatpush1.bf16.msra.mxu0 0
    %591 = vmatprep.subr.bf16.mxu0 0
    %592 = vmatpush1.bf16.msra.mxu0 0
    %593 = vmatprep.subr.bf16.mxu0 0
    %594 = vmatpush1.bf16.msra.mxu0 0
    %595 = vmatprep.subr.bf16.mxu0 0
    %596 = vmatpush1.bf16.msra.mxu0 0
    %597 = vmatprep.subr.bf16.mxu0 0
    %598 = vmatpush1.bf16.msra.mxu0 0
    %599 = vmatprep.subr.bf16.mxu0 0
    %600 = vmatpush1.bf16.msra.mxu0 0
    %601 = vmatprep.subr.bf16.mxu0 0
    %602 = vmatpush1.bf16.msra.mxu0 0
    %603 = vmatprep.mubr.bf16.mxu0 0
    %604 = vmatmul.mubr.bf16.gmra.mrb[0].mxu0 %v569
    %v605 = vpop.f32.mrb[0].mxu0
    %v606 = vadd.f32 0.0, %v605
    %v607 = vpop.f32.mrb[0].mxu0
    %v608 = vadd.f32 0.0, %v607
    %v609 = vpop.f32.mrb[0].mxu0
    %v610 = vpop.f32.mrb[0].mxu0
    %611 = vdwg.mxu0
    %612 = vmatprep.subr.bf16.mxu0 %v507
    %613 = vmatpush1.bf16.msra.mxu0 %v506
    %614 = vmatprep.subr.bf16.mxu0 %v515
    %615 = vmatpush1.bf16.msra.mxu0 %v514
    %616 = vmatprep.subr.bf16.mxu0 %v523
    %617 = vmatpush1.bf16.msra.mxu0 %v522
    %618 = vmatprep.subr.bf16.mxu0 %v531
    %619 = vmatpush1.bf16.msra.mxu0 %v530
    %620 = vmatprep.subr.bf16.mxu0 0
    %621 = vmatpush1.bf16.msra.mxu0 0
    %622 = vmatprep.subr.bf16.mxu0 0
    %623 = vmatpush1.bf16.msra.mxu0 0
    %624 = vmatprep.subr.bf16.mxu0 0
    %625 = vmatpush1.bf16.msra.mxu0 0
    %626 = vmatprep.subr.bf16.mxu0 0
    %627 = vmatpush1.bf16.msra.mxu0 0
    %628 = vmatprep.subr.bf16.mxu0 0
    %629 = vmatpush1.bf16.msra.mxu0 0
    %630 = vmatprep.subr.bf16.mxu0 0
    %631 = vmatpush1.bf16.msra.mxu0 0
    %632 = vmatprep.subr.bf16.mxu0 0
    %633 = vmatpush1.bf16.msra.mxu0 0
    %634 = vmatprep.subr.bf16.mxu0 0
    %635 = vmatpush1.bf16.msra.mxu0 0
    %636 = vmatprep.subr.bf16.mxu0 0
    %637 = vmatpush1.bf16.msra.mxu0 0
    %638 = vmatprep.subr.bf16.mxu0 0
    %639 = vmatpush1.bf16.msra.mxu0 0
    %640 = vmatprep.subr.bf16.mxu0 0
    %641 = vmatpush1.bf16.msra.mxu0 0
    %642 = vmatprep.subr.bf16.mxu0 0
    %643 = vmatpush1.bf16.msra.mxu0 0
    %644 = vmatprep.mubr.bf16.mxu0 0
    %645 = vmatmul.mubr.bf16.gmra.mrb[0].mxu0 %v569
    %v646 = vpop.f32.mrb[0].mxu0
    %v647 = vadd.f32 0.0, %v646
    %v648 = vpop.f32.mrb[0].mxu0
    %v649 = vadd.f32 0.0, %v648
    %v650 = vpop.f32.mrb[0].mxu0
    %v651 = vpop.f32.mrb[0].mxu0
    %652 = vdwg.mxu0
    %653 = vmatprep.subr.bf16.mxu0 %v509
    %654 = vmatpush1.bf16.msra.mxu0 %v508
    %655 = vmatprep.subr.bf16.mxu0 %v517
    %656 = vmatpush1.bf16.msra.mxu0 %v516
    %657 = vmatprep.subr.bf16.mxu0 %v525
    %658 = vmatpush1.bf16.msra.mxu0 %v524
    %659 = vmatprep.subr.bf16.mxu0 %v533
    %660 = vmatpush1.bf16.msra.mxu0 %v532
    %661 = vmatprep.subr.bf16.mxu0 0
    %662 = vmatpush1.bf16.msra.mxu0 0
    %663 = vmatprep.subr.bf16.mxu0 0
    %664 = vmatpush1.bf16.msra.mxu0 0
    %665 = vmatprep.subr.bf16.mxu0 0
    %666 = vmatpush1.bf16.msra.mxu0 0
    %667 = vmatprep.subr.bf16.mxu0 0
    %668 = vmatpush1.bf16.msra.mxu0 0
    %669 = vmatprep.subr.bf16.mxu0 0
    %670 = vmatpush1.bf16.msra.mxu0 0
    %671 = vmatprep.subr.bf16.mxu0 0
    %672 = vmatpush1.bf16.msra.mxu0 0
    %673 = vmatprep.subr.bf16.mxu0 0
    %674 = vmatpush1.bf16.msra.mxu0 0
    %675 = vmatprep.subr.bf16.mxu0 0
    %676 = vmatpush1.bf16.msra.mxu0 0
    %677 = vmatprep.subr.bf16.mxu0 0
    %678 = vmatpush1.bf16.msra.mxu0 0
    %679 = vmatprep.subr.bf16.mxu0 0
    %680 = vmatpush1.bf16.msra.mxu0 0
    %681 = vmatprep.subr.bf16.mxu0 0
    %682 = vmatpush1.bf16.msra.mxu0 0
    %683 = vmatprep.subr.bf16.mxu0 0
    %684 = vmatpush1.bf16.msra.mxu0 0
    %685 = vmatprep.mubr.bf16.mxu0 0
    %686 = vmatmul.mubr.bf16.gmra.mrb[0].mxu0 %v569
    %v687 = vpop.f32.mrb[0].mxu0
    %v688 = vadd.f32 0.0, %v687
    %v689 = vpop.f32.mrb[0].mxu0
    %v690 = vadd.f32 0.0, %v689
    %v691 = vpop.f32.mrb[0].mxu0
    %v692 = vpop.f32.mrb[0].mxu0
    %693 = vdwg.mxu0
    %694 = vmatprep.subr.bf16.mxu0 %v511
    %695 = vmatpush1.bf16.msra.mxu0 %v510
    %696 = vmatprep.subr.bf16.mxu0 %v519
    %697 = vmatpush1.bf16.msra.mxu0 %v518
    %698 = vmatprep.subr.bf16.mxu0 %v527
    %699 = vmatpush1.bf16.msra.mxu0 %v526
    %700 = vmatprep.subr.bf16.mxu0 %v535
    %701 = vmatpush1.bf16.msra.mxu0 %v534
    %702 = vmatprep.subr.bf16.mxu0 0
    %703 = vmatpush1.bf16.msra.mxu0 0
    %704 = vmatprep.subr.bf16.mxu0 0
    %705 = vmatpush1.bf16.msra.mxu0 0
    %706 = vmatprep.subr.bf16.mxu0 0
    %707 = vmatpush1.bf16.msra.mxu0 0
    %708 = vmatprep.subr.bf16.mxu0 0
    %709 = vmatpush1.bf16.msra.mxu0 0
    %710 = vmatprep.subr.bf16.mxu0 0
    %711 = vmatpush1.bf16.msra.mxu0 0
    %712 = vmatprep.subr.bf16.mxu0 0
    %713 = vmatpush1.bf16.msra.mxu0 0
    %714 = vmatprep.subr.bf16.mxu0 0
    %715 = vmatpush1.bf16.msra.mxu0 0
    %716 = vmatprep.subr.bf16.mxu0 0
    %717 = vmatpush1.bf16.msra.mxu0 0
    %718 = vmatprep.subr.bf16.mxu0 0
    %719 = vmatpush1.bf16.msra.mxu0 0
    %720 = vmatprep.subr.bf16.mxu0 0
    %721 = vmatpush1.bf16.msra.mxu0 0
    %722 = vmatprep.subr.bf16.mxu0 0
    %723 = vmatpush1.bf16.msra.mxu0 0
    %724 = vmatprep.subr.bf16.mxu0 0
    %725 = vmatpush1.bf16.msra.mxu0 0
    %726 = vmatprep.mubr.bf16.mxu0 0
    %727 = vmatmul.mubr.bf16.gmra.mrb[0].mxu0 %v569
    %v728 = vpop.f32.mrb[0].mxu0
    %v729 = vadd.f32 0.0, %v728
    %v730 = vpop.f32.mrb[0].mxu0
    %v731 = vadd.f32 0.0, %v730
    %v732 = vpop.f32.mrb[0].mxu0
    %v733 = vpop.f32.mrb[0].mxu0
    %734 = vdwg.mxu0
    %v735 = vld [vmem:[#allocation3 + $0x200] sm:$0xff]
    %v736 = vld [vmem:[#allocation3 + $0x208] sm:$0xff]
    %v737 = vld [vmem:[#allocation3 + $0x210] sm:$0xff]
    %v738 = vld [vmem:[#allocation3 + $0x218] sm:$0xff]
    %v739 = vld [vmem:[#allocation3 + $0x220] sm:$0xff]
    %v740 = vld [vmem:[#allocation3 + $0x228] sm:$0xff]
    %v741 = vld [vmem:[#allocation3 + $0x230] sm:$0xff]
    %v742 = vld [vmem:[#allocation3 + $0x238] sm:$0xff]
    %v743 = vld [vmem:[#allocation3 + $0x240] sm:$0xff]
    %v744 = vld [vmem:[#allocation3 + $0x248] sm:$0xff]
    %v745 = vld [vmem:[#allocation3 + $0x250] sm:$0xff]
    %v746 = vld [vmem:[#allocation3 + $0x258] sm:$0xff]
    %v747 = vld [vmem:[#allocation3 + $0x260] sm:$0xff]
    %v748 = vld [vmem:[#allocation3 + $0x268] sm:$0xff]
    %v749 = vld [vmem:[#allocation3 + $0x270] sm:$0xff]
    %v750 = vld [vmem:[#allocation3 + $0x278] sm:$0xff]
    %v751 = vld [vmem:[#allocation3 + $0x280] sm:$0xff]
    %v752 = vld [vmem:[#allocation3 + $0x288] sm:$0xff]
    %v753 = vld [vmem:[#allocation3 + $0x290] sm:$0xff]
    %v754 = vld [vmem:[#allocation3 + $0x298] sm:$0xff]
    %v755 = vld [vmem:[#allocation3 + $0x2a0] sm:$0xff]
    %v756 = vld [vmem:[#allocation3 + $0x2a8] sm:$0xff]
    %v757 = vld [vmem:[#allocation3 + $0x2b0] sm:$0xff]
    %v758 = vld [vmem:[#allocation3 + $0x2b8] sm:$0xff]
    %v759 = vld [vmem:[#allocation3 + $0x2c0] sm:$0xff]
    %v760 = vld [vmem:[#allocation3 + $0x2c8] sm:$0xff]
    %v761 = vld [vmem:[#allocation3 + $0x2d0] sm:$0xff]
    %v762 = vld [vmem:[#allocation3 + $0x2d8] sm:$0xff]
    %v763 = vld [vmem:[#allocation3 + $0x2e0] sm:$0xff]
    %v764 = vld [vmem:[#allocation3 + $0x2e8] sm:$0xff]
    %v765 = vld [vmem:[#allocation3 + $0x2f0] sm:$0xff]
    %v766 = vld [vmem:[#allocation3 + $0x2f8] sm:$0xff]
    %v767 = vld [vmem:[#allocation3 + $0x300] sm:$0xff]
    %v768 = vld [vmem:[#allocation3 + $0x308] sm:$0xff]
    %v769 = vld [vmem:[#allocation3 + $0x310] sm:$0xff]
    %v770 = vld [vmem:[#allocation3 + $0x318] sm:$0xff]
    %v771 = vld [vmem:[#allocation3 + $0x320] sm:$0xff]
    %v772 = vld [vmem:[#allocation3 + $0x328] sm:$0xff]
    %v773 = vld [vmem:[#allocation3 + $0x330] sm:$0xff]
    %v774 = vld [vmem:[#allocation3 + $0x338] sm:$0xff]
    %v775 = vld [vmem:[#allocation3 + $0x340] sm:$0xff]
    %v776 = vld [vmem:[#allocation3 + $0x348] sm:$0xff]
    %v777 = vld [vmem:[#allocation3 + $0x350] sm:$0xff]
    %v778 = vld [vmem:[#allocation3 + $0x358] sm:$0xff]
    %v779 = vld [vmem:[#allocation3 + $0x360] sm:$0xff]
    %v780 = vld [vmem:[#allocation3 + $0x368] sm:$0xff]
    %v781 = vld [vmem:[#allocation3 + $0x370] sm:$0xff]
    %v782 = vld [vmem:[#allocation3 + $0x378] sm:$0xff]
    %v783 = vld [vmem:[#allocation3 + $0x380] sm:$0xff]
    %v784 = vld [vmem:[#allocation3 + $0x388] sm:$0xff]
    %v785 = vld [vmem:[#allocation3 + $0x390] sm:$0xff]
    %v786 = vld [vmem:[#allocation3 + $0x398] sm:$0xff]
    %v787 = vld [vmem:[#allocation3 + $0x3a0] sm:$0xff]
    %v788 = vld [vmem:[#allocation3 + $0x3a8] sm:$0xff]
    %v789 = vld [vmem:[#allocation3 + $0x3b0] sm:$0xff]
    %v790 = vld [vmem:[#allocation3 + $0x3b8] sm:$0xff]
    %v791 = vld [vmem:[#allocation3 + $0x3c0] sm:$0xff]
    %v792 = vld [vmem:[#allocation3 + $0x3c8] sm:$0xff]
    %v793 = vld [vmem:[#allocation3 + $0x3d0] sm:$0xff]
    %v794 = vld [vmem:[#allocation3 + $0x3d8] sm:$0xff]
    %v795 = vld [vmem:[#allocation3 + $0x3e0] sm:$0xff]
    %v796 = vld [vmem:[#allocation3 + $0x3e8] sm:$0xff]
    %v797 = vld [vmem:[#allocation3 + $0x3f0] sm:$0xff]
    %v798 = vld [vmem:[#allocation3 + $0x3f8] sm:$0xff]
    %v799 = vrot.slane %v406, 1
    %v832 = vunpack.c.l.b16 %v767
    %v833 = vunpack.c.h.b16 %v767
    %v834 = vunpack.c.l.b16 %v768
    %v835 = vunpack.c.h.b16 %v768
    %v836 = vunpack.c.l.b16 %v769
    %v837 = vunpack.c.h.b16 %v769
    %v838 = vunpack.c.l.b16 %v770
    %v839 = vunpack.c.h.b16 %v770
    %v840 = vunpack.c.l.b16 %v771
    %v841 = vunpack.c.h.b16 %v771
    %v842 = vunpack.c.l.b16 %v772
    %v843 = vunpack.c.h.b16 %v772
    %v844 = vunpack.c.l.b16 %v773
    %v845 = vunpack.c.h.b16 %v773
    %v846 = vunpack.c.l.b16 %v774
    %v847 = vunpack.c.h.b16 %v774
    %v848 = vunpack.c.l.b16 %v775
    %v849 = vunpack.c.h.b16 %v775
    %v850 = vunpack.c.l.b16 %v776
    %v851 = vunpack.c.h.b16 %v776
    %v852 = vunpack.c.l.b16 %v777
    %v853 = vunpack.c.h.b16 %v777
    %v854 = vunpack.c.l.b16 %v778
    %v855 = vunpack.c.h.b16 %v778
    %v856 = vunpack.c.l.b16 %v779
    %v857 = vunpack.c.h.b16 %v779
    %v858 = vunpack.c.l.b16 %v780
    %v859 = vunpack.c.h.b16 %v780
    %v860 = vunpack.c.l.b16 %v781
    %v861 = vunpack.c.h.b16 %v781
    %v862 = vunpack.c.l.b16 %v782
    %v863 = vunpack.c.h.b16 %v782
    %v864 = vunpack.c.l.b16 %v783
    %v865 = vunpack.c.h.b16 %v783
    %v866 = vunpack.c.l.b16 %v784
    %v867 = vunpack.c.h.b16 %v784
    %v868 = vunpack.c.l.b16 %v785
    %v869 = vunpack.c.h.b16 %v785
    %v870 = vunpack.c.l.b16 %v786
    %v871 = vunpack.c.h.b16 %v786
    %v872 = vunpack.c.l.b16 %v787
    %v873 = vunpack.c.h.b16 %v787
    %v874 = vunpack.c.l.b16 %v788
    %v875 = vunpack.c.h.b16 %v788
    %v876 = vunpack.c.l.b16 %v789
    %v877 = vunpack.c.h.b16 %v789
    %v878 = vunpack.c.l.b16 %v790
    %v879 = vunpack.c.h.b16 %v790
    %v880 = vunpack.c.l.b16 %v791
    %v881 = vunpack.c.h.b16 %v791
    %v882 = vunpack.c.l.b16 %v792
    %v883 = vunpack.c.h.b16 %v792
    %v884 = vunpack.c.l.b16 %v793
    %v885 = vunpack.c.h.b16 %v793
    %v886 = vunpack.c.l.b16 %v794
    %v887 = vunpack.c.h.b16 %v794
    %v888 = vunpack.c.l.b16 %v795
    %v889 = vunpack.c.h.b16 %v795
    %v890 = vunpack.c.l.b16 %v796
    %v891 = vunpack.c.h.b16 %v796
    %v892 = vunpack.c.l.b16 %v797
    %v893 = vunpack.c.h.b16 %v797
    %v894 = vunpack.c.l.b16 %v798
    %v895 = vunpack.c.h.b16 %v798
    %v896 = vpack.c.b16 %v840, %v832
    %v897 = vpack.c.b16 %v841, %v833
    %v898 = vpack.c.b16 %v842, %v834
    %v899 = vpack.c.b16 %v843, %v835
    %v900 = vpack.c.b16 %v844, %v836
    %v901 = vpack.c.b16 %v845, %v837
    %v902 = vpack.c.b16 %v846, %v838
    %v903 = vpack.c.b16 %v847, %v839
    %v904 = vpack.c.b16 %v856, %v848
    %v905 = vpack.c.b16 %v857, %v849
    %v906 = vpack.c.b16 %v858, %v850
    %v907 = vpack.c.b16 %v859, %v851
    %v908 = vpack.c.b16 %v860, %v852
    %v909 = vpack.c.b16 %v861, %v853
    %v910 = vpack.c.b16 %v862, %v854
    %v911 = vpack.c.b16 %v863, %v855
    %v912 = vpack.c.b16 %v872, %v864
    %v913 = vpack.c.b16 %v873, %v865
    %v914 = vpack.c.b16 %v874, %v866
    %v915 = vpack.c.b16 %v875, %v867
    %v916 = vpack.c.b16 %v876, %v868
    %v917 = vpack.c.b16 %v877, %v869
    %v918 = vpack.c.b16 %v878, %v870
    %v919 = vpack.c.b16 %v879, %v871
    %v920 = vpack.c.b16 %v888, %v880
    %v921 = vpack.c.b16 %v889, %v881
    %v922 = vpack.c.b16 %v890, %v882
    %v923 = vpack.c.b16 %v891, %v883
    %v924 = vpack.c.b16 %v892, %v884
    %v925 = vpack.c.b16 %v893, %v885
    %v926 = vpack.c.b16 %v894, %v886
    %v927 = vpack.c.b16 %v895, %v887
    %v961 = vsel %vm160, %v799, 0
    %963 = vmatprep.subr.bf16.mxu0 %v897
    %964 = vmatpush1.bf16.msra.mxu0 %v896
    %965 = vmatprep.subr.bf16.mxu0 %v905
    %966 = vmatpush1.bf16.msra.mxu0 %v904
    %967 = vmatprep.subr.bf16.mxu0 %v913
    %968 = vmatpush1.bf16.msra.mxu0 %v912
    %969 = vmatprep.subr.bf16.mxu0 %v921
    %970 = vmatpush1.bf16.msra.mxu0 %v920
    %971 = vmatprep.subr.bf16.mxu0 0
    %972 = vmatpush1.bf16.msra.mxu0 0
    %973 = vmatprep.subr.bf16.mxu0 0
    %974 = vmatpush1.bf16.msra.mxu0 0
    %975 = vmatprep.subr.bf16.mxu0 0
    %976 = vmatpush1.bf16.msra.mxu0 0
    %977 = vmatprep.subr.bf16.mxu0 0
    %978 = vmatpush1.bf16.msra.mxu0 0
    %979 = vmatprep.subr.bf16.mxu0 0
    %980 = vmatpush1.bf16.msra.mxu0 0
    %981 = vmatprep.subr.bf16.mxu0 0
    %982 = vmatpush1.bf16.msra.mxu0 0
    %983 = vmatprep.subr.bf16.mxu0 0
    %984 = vmatpush1.bf16.msra.mxu0 0
    %985 = vmatprep.subr.bf16.mxu0 0
    %986 = vmatpush1.bf16.msra.mxu0 0
    %987 = vmatprep.subr.bf16.mxu0 0
    %988 = vmatpush1.bf16.msra.mxu0 0
    %989 = vmatprep.subr.bf16.mxu0 0
    %990 = vmatpush1.bf16.msra.mxu0 0
    %991 = vmatprep.subr.bf16.mxu0 0
    %992 = vmatpush1.bf16.msra.mxu0 0
    %993 = vmatprep.subr.bf16.mxu0 0
    %994 = vmatpush1.bf16.msra.mxu0 0
    %995 = vmatprep.mubr.bf16.mxu0 0
    %996 = vmatmul.mubr.bf16.gmra.mrb[0].mxu0 %v961
    %v997 = vpop.f32.mrb[0].mxu0
    %v998 = vadd.f32 0.0, %v997
    %v999 = vpop.f32.mrb[0].mxu0
    %v1000 = vadd.f32 0.0, %v999
    %v1001 = vpop.f32.mrb[0].mxu0
    %v1002 = vpop.f32.mrb[0].mxu0
    %1003 = vdwg.mxu0
    %1004 = vmatprep.subr.bf16.mxu0 %v899
    %1005 = vmatpush1.bf16.msra.mxu0 %v898
    %1006 = vmatprep.subr.bf16.mxu0 %v907
    %1007 = vmatpush1.bf16.msra.mxu0 %v906
    %1008 = vmatprep.subr.bf16.mxu0 %v915
    %1009 = vmatpush1.bf16.msra.mxu0 %v914
    %1010 = vmatprep.subr.bf16.mxu0 %v923
    %1011 = vmatpush1.bf16.msra.mxu0 %v922
    %1012 = vmatprep.subr.bf16.mxu0 0
    %1013 = vmatpush1.bf16.msra.mxu0 0
    %1014 = vmatprep.subr.bf16.mxu0 0
    %1015 = vmatpush1.bf16.msra.mxu0 0
    %1016 = vmatprep.subr.bf16.mxu0 0
    %1017 = vmatpush1.bf16.msra.mxu0 0
    %1018 = vmatprep.subr.bf16.mxu0 0
    %1019 = vmatpush1.bf16.msra.mxu0 0
    %1020 = vmatprep.subr.bf16.mxu0 0
    %1021 = vmatpush1.bf16.msra.mxu0 0
    %1022 = vmatprep.subr.bf16.mxu0 0
    %1023 = vmatpush1.bf16.msra.mxu0 0
    %1024 = vmatprep.subr.bf16.mxu0 0
    %1025 = vmatpush1.bf16.msra.mxu0 0
    %1026 = vmatprep.subr.bf16.mxu0 0
    %1027 = vmatpush1.bf16.msra.mxu0 0
    %1028 = vmatprep.subr.bf16.mxu0 0
    %1029 = vmatpush1.bf16.msra.mxu0 0
    %1030 = vmatprep.subr.bf16.mxu0 0
    %1031 = vmatpush1.bf16.msra.mxu0 0
    %1032 = vmatprep.subr.bf16.mxu0 0
    %1033 = vmatpush1.bf16.msra.mxu0 0
    %1034 = vmatprep.subr.bf16.mxu0 0
    %1035 = vmatpush1.bf16.msra.mxu0 0
    %1036 = vmatprep.mubr.bf16.mxu0 0
    %1037 = vmatmul.mubr.bf16.gmra.mrb[0].mxu0 %v961
    %v1038 = vpop.f32.mrb[0].mxu0
    %v1039 = vadd.f32 0.0, %v1038
    %v1040 = vpop.f32.mrb[0].mxu0
    %v1041 = vadd.f32 0.0, %v1040
    %v1042 = vpop.f32.mrb[0].mxu0
    %v1043 = vpop.f32.mrb[0].mxu0
    %1044 = vdwg.mxu0
    %1045 = vmatprep.subr.bf16.mxu0 %v901
    %1046 = vmatpush1.bf16.msra.mxu0 %v900
    %1047 = vmatprep.subr.bf16.mxu0 %v909
    %1048 = vmatpush1.bf16.msra.mxu0 %v908
    %1049 = vmatprep.subr.bf16.mxu0 %v917
    %1050 = vmatpush1.bf16.msra.mxu0 %v916
    %1051 = vmatprep.subr.bf16.mxu0 %v925
    %1052 = vmatpush1.bf16.msra.mxu0 %v924
    %1053 = vmatprep.subr.bf16.mxu0 0
    %1054 = vmatpush1.bf16.msra.mxu0 0
    %1055 = vmatprep.subr.bf16.mxu0 0
    %1056 = vmatpush1.bf16.msra.mxu0 0
    %1057 = vmatprep.subr.bf16.mxu0 0
    %1058 = vmatpush1.bf16.msra.mxu0 0
    %1059 = vmatprep.subr.bf16.mxu0 0
    %1060 = vmatpush1.bf16.msra.mxu0 0
    %1061 = vmatprep.subr.bf16.mxu0 0
    %1062 = vmatpush1.bf16.msra.mxu0 0
    %1063 = vmatprep.subr.bf16.mxu0 0
    %1064 = vmatpush1.bf16.msra.mxu0 0
    %1065 = vmatprep.subr.bf16.mxu0 0
    %1066 = vmatpush1.bf16.msra.mxu0 0
    %1067 = vmatprep.subr.bf16.mxu0 0
    %1068 = vmatpush1.bf16.msra.mxu0 0
    %1069 = vmatprep.subr.bf16.mxu0 0
    %1070 = vmatpush1.bf16.msra.mxu0 0
    %1071 = vmatprep.subr.bf16.mxu0 0
    %1072 = vmatpush1.bf16.msra.mxu0 0
    %1073 = vmatprep.subr.bf16.mxu0 0
    %1074 = vmatpush1.bf16.msra.mxu0 0
    %1075 = vmatprep.subr.bf16.mxu0 0
    %1076 = vmatpush1.bf16.msra.mxu0 0
    %1077 = vmatprep.mubr.bf16.mxu0 0
    %1078 = vmatmul.mubr.bf16.gmra.mrb[0].mxu0 %v961
    %v1079 = vpop.f32.mrb[0].mxu0
    %v1080 = vadd.f32 0.0, %v1079
    %v1081 = vpop.f32.mrb[0].mxu0
    %v1082 = vadd.f32 0.0, %v1081
    %v1083 = vpop.f32.mrb[0].mxu0
    %v1084 = vpop.f32.mrb[0].mxu0
    %1085 = vdwg.mxu0
    %1086 = vmatprep.subr.bf16.mxu0 %v903
    %1087 = vmatpush1.bf16.msra.mxu0 %v902
    %1088 = vmatprep.subr.bf16.mxu0 %v911
    %1089 = vmatpush1.bf16.msra.mxu0 %v910
    %1090 = vmatprep.subr.bf16.mxu0 %v919
    %1091 = vmatpush1.bf16.msra.mxu0 %v918
    %1092 = vmatprep.subr.bf16.mxu0 %v927
    %1093 = vmatpush1.bf16.msra.mxu0 %v926
    %1094 = vmatprep.subr.bf16.mxu0 0
    %1095 = vmatpush1.bf16.msra.mxu0 0
    %1096 = vmatprep.subr.bf16.mxu0 0
    %1097 = vmatpush1.bf16.msra.mxu0 0
    %1098 = vmatprep.subr.bf16.mxu0 0
    %1099 = vmatpush1.bf16.msra.mxu0 0
    %1100 = vmatprep.subr.bf16.mxu0 0
    %1101 = vmatpush1.bf16.msra.mxu0 0
    %1102 = vmatprep.subr.bf16.mxu0 0
    %1103 = vmatpush1.bf16.msra.mxu0 0
    %1104 = vmatprep.subr.bf16.mxu0 0
    %1105 = vmatpush1.bf16.msra.mxu0 0
    %1106 = vmatprep.subr.bf16.mxu0 0
    %1107 = vmatpush1.bf16.msra.mxu0 0
    %1108 = vmatprep.subr.bf16.mxu0 0
    %1109 = vmatpush1.bf16.msra.mxu0 0
    %1110 = vmatprep.subr.bf16.mxu0 0
    %1111 = vmatpush1.bf16.msra.mxu0 0
    %1112 = vmatprep.subr.bf16.mxu0 0
    %1113 = vmatpush1.bf16.msra.mxu0 0
    %1114 = vmatprep.subr.bf16.mxu0 0
    %1115 = vmatpush1.bf16.msra.mxu0 0
    %1116 = vmatprep.subr.bf16.mxu0 0
    %1117 = vmatpush1.bf16.msra.mxu0 0
    %1118 = vmatprep.mubr.bf16.mxu0 0
    %1119 = vmatmul.mubr.bf16.gmra.mrb[0].mxu0 %v961
    %v1120 = vpop.f32.mrb[0].mxu0
    %v1121 = vadd.f32 0.0, %v1120
    %v1122 = vpop.f32.mrb[0].mxu0
    %v1123 = vadd.f32 0.0, %v1122
    %v1124 = vpop.f32.mrb[0].mxu0
    %v1125 = vpop.f32.mrb[0].mxu0
    %1126 = vdwg.mxu0
    %v1127 = vld [vmem:[#allocation3 + $0x400] sm:$0xff]
    %v1128 = vld [vmem:[#allocation3 + $0x408] sm:$0xff]
    %v1129 = vld [vmem:[#allocation3 + $0x410] sm:$0xff]
    %v1130 = vld [vmem:[#allocation3 + $0x418] sm:$0xff]
    %v1131 = vld [vmem:[#allocation3 + $0x420] sm:$0xff]
    %v1132 = vld [vmem:[#allocation3 + $0x428] sm:$0xff]
    %v1133 = vld [vmem:[#allocation3 + $0x430] sm:$0xff]
    %v1134 = vld [vmem:[#allocation3 + $0x438] sm:$0xff]
    %v1135 = vld [vmem:[#allocation3 + $0x440] sm:$0xff]
    %v1136 = vld [vmem:[#allocation3 + $0x448] sm:$0xff]
    %v1137 = vld [vmem:[#allocation3 + $0x450] sm:$0xff]
    %v1138 = vld [vmem:[#allocation3 + $0x458] sm:$0xff]
    %v1139 = vld [vmem:[#allocation3 + $0x460] sm:$0xff]
    %v1140 = vld [vmem:[#allocation3 + $0x468] sm:$0xff]
    %v1141 = vld [vmem:[#allocation3 + $0x470] sm:$0xff]
    %v1142 = vld [vmem:[#allocation3 + $0x478] sm:$0xff]
    %v1143 = vld [vmem:[#allocation3 + $0x480] sm:$0xff]
    %v1144 = vld [vmem:[#allocation3 + $0x488] sm:$0xff]
    %v1145 = vld [vmem:[#allocation3 + $0x490] sm:$0xff]
    %v1146 = vld [vmem:[#allocation3 + $0x498] sm:$0xff]
    %v1147 = vld [vmem:[#allocation3 + $0x4a0] sm:$0xff]
    %v1148 = vld [vmem:[#allocation3 + $0x4a8] sm:$0xff]
    %v1149 = vld [vmem:[#allocation3 + $0x4b0] sm:$0xff]
    %v1150 = vld [vmem:[#allocation3 + $0x4b8] sm:$0xff]
    %v1151 = vld [vmem:[#allocation3 + $0x4c0] sm:$0xff]
    %v1152 = vld [vmem:[#allocation3 + $0x4c8] sm:$0xff]
    %v1153 = vld [vmem:[#allocation3 + $0x4d0] sm:$0xff]
    %v1154 = vld [vmem:[#allocation3 + $0x4d8] sm:$0xff]
    %v1155 = vld [vmem:[#allocation3 + $0x4e0] sm:$0xff]
    %v1156 = vld [vmem:[#allocation3 + $0x4e8] sm:$0xff]
    %v1157 = vld [vmem:[#allocation3 + $0x4f0] sm:$0xff]
    %v1158 = vld [vmem:[#allocation3 + $0x4f8] sm:$0xff]
    %v1159 = vld [vmem:[#allocation3 + $0x500] sm:$0xff]
    %v1160 = vld [vmem:[#allocation3 + $0x508] sm:$0xff]
    %v1161 = vld [vmem:[#allocation3 + $0x510] sm:$0xff]
    %v1162 = vld [vmem:[#allocation3 + $0x518] sm:$0xff]
    %v1163 = vld [vmem:[#allocation3 + $0x520] sm:$0xff]
    %v1164 = vld [vmem:[#allocation3 + $0x528] sm:$0xff]
    %v1165 = vld [vmem:[#allocation3 + $0x530] sm:$0xff]
    %v1166 = vld [vmem:[#allocation3 + $0x538] sm:$0xff]
    %v1167 = vld [vmem:[#allocation3 + $0x540] sm:$0xff]
    %v1168 = vld [vmem:[#allocation3 + $0x548] sm:$0xff]
    %v1169 = vld [vmem:[#allocation3 + $0x550] sm:$0xff]
    %v1170 = vld [vmem:[#allocation3 + $0x558] sm:$0xff]
    %v1171 = vld [vmem:[#allocation3 + $0x560] sm:$0xff]
    %v1172 = vld [vmem:[#allocation3 + $0x568] sm:$0xff]
    %v1173 = vld [vmem:[#allocation3 + $0x570] sm:$0xff]
    %v1174 = vld [vmem:[#allocation3 + $0x578] sm:$0xff]
    %v1175 = vld [vmem:[#allocation3 + $0x580] sm:$0xff]
    %v1176 = vld [vmem:[#allocation3 + $0x588] sm:$0xff]
    %v1177 = vld [vmem:[#allocation3 + $0x590] sm:$0xff]
    %v1178 = vld [vmem:[#allocation3 + $0x598] sm:$0xff]
    %v1179 = vld [vmem:[#allocation3 + $0x5a0] sm:$0xff]
    %v1180 = vld [vmem:[#allocation3 + $0x5a8] sm:$0xff]
    %v1181 = vld [vmem:[#allocation3 + $0x5b0] sm:$0xff]
    %v1182 = vld [vmem:[#allocation3 + $0x5b8] sm:$0xff]
    %v1183 = vld [vmem:[#allocation3 + $0x5c0] sm:$0xff]
    %v1184 = vld [vmem:[#allocation3 + $0x5c8] sm:$0xff]
    %v1185 = vld [vmem:[#allocation3 + $0x5d0] sm:$0xff]
    %v1186 = vld [vmem:[#allocation3 + $0x5d8] sm:$0xff]
    %v1187 = vld [vmem:[#allocation3 + $0x5e0] sm:$0xff]
    %v1188 = vld [vmem:[#allocation3 + $0x5e8] sm:$0xff]
    %v1189 = vld [vmem:[#allocation3 + $0x5f0] sm:$0xff]
    %v1190 = vld [vmem:[#allocation3 + $0x5f8] sm:$0xff]
    %v1191 = vrot.slane %v406, 2
    %v1224 = vunpack.c.l.b16 %v1159
    %v1225 = vunpack.c.h.b16 %v1159
    %v1226 = vunpack.c.l.b16 %v1160
    %v1227 = vunpack.c.h.b16 %v1160
    %v1228 = vunpack.c.l.b16 %v1161
    %v1229 = vunpack.c.h.b16 %v1161
    %v1230 = vunpack.c.l.b16 %v1162
    %v1231 = vunpack.c.h.b16 %v1162
    %v1232 = vunpack.c.l.b16 %v1163
    %v1233 = vunpack.c.h.b16 %v1163
    %v1234 = vunpack.c.l.b16 %v1164
    %v1235 = vunpack.c.h.b16 %v1164
    %v1236 = vunpack.c.l.b16 %v1165
    %v1237 = vunpack.c.h.b16 %v1165
    %v1238 = vunpack.c.l.b16 %v1166
    %v1239 = vunpack.c.h.b16 %v1166
    %v1240 = vunpack.c.l.b16 %v1167
    %v1241 = vunpack.c.h.b16 %v1167
    %v1242 = vunpack.c.l.b16 %v1168
    %v1243 = vunpack.c.h.b16 %v1168
    %v1244 = vunpack.c.l.b16 %v1169
    %v1245 = vunpack.c.h.b16 %v1169
    %v1246 = vunpack.c.l.b16 %v1170
    %v1247 = vunpack.c.h.b16 %v1170
    %v1248 = vunpack.c.l.b16 %v1171
    %v1249 = vunpack.c.h.b16 %v1171
    %v1250 = vunpack.c.l.b16 %v1172
    %v1251 = vunpack.c.h.b16 %v1172
    %v1252 = vunpack.c.l.b16 %v1173
    %v1253 = vunpack.c.h.b16 %v1173
    %v1254 = vunpack.c.l.b16 %v1174
    %v1255 = vunpack.c.h.b16 %v1174
    %v1256 = vunpack.c.l.b16 %v1175
    %v1257 = vunpack.c.h.b16 %v1175
    %v1258 = vunpack.c.l.b16 %v1176
    %v1259 = vunpack.c.h.b16 %v1176
    %v1260 = vunpack.c.l.b16 %v1177
    %v1261 = vunpack.c.h.b16 %v1177
    %v1262 = vunpack.c.l.b16 %v1178
    %v1263 = vunpack.c.h.b16 %v1178
    %v1264 = vunpack.c.l.b16 %v1179
    %v1265 = vunpack.c.h.b16 %v1179
    %v1266 = vunpack.c.l.b16 %v1180
    %v1267 = vunpack.c.h.b16 %v1180
    %v1268 = vunpack.c.l.b16 %v1181
    %v1269 = vunpack.c.h.b16 %v1181
    %v1270 = vunpack.c.l.b16 %v1182
    %v1271 = vunpack.c.h.b16 %v1182
    %v1272 = vunpack.c.l.b16 %v1183
    %v1273 = vunpack.c.h.b16 %v1183
    %v1274 = vunpack.c.l.b16 %v1184
    %v1275 = vunpack.c.h.b16 %v1184
    %v1276 = vunpack.c.l.b16 %v1185
    %v1277 = vunpack.c.h.b16 %v1185
    %v1278 = vunpack.c.l.b16 %v1186
    %v1279 = vunpack.c.h.b16 %v1186
    %v1280 = vunpack.c.l.b16 %v1187
    %v1281 = vunpack.c.h.b16 %v1187
    %v1282 = vunpack.c.l.b16 %v1188
    %v1283 = vunpack.c.h.b16 %v1188
    %v1284 = vunpack.c.l.b16 %v1189
    %v1285 = vunpack.c.h.b16 %v1189
    %v1286 = vunpack.c.l.b16 %v1190
    %v1287 = vunpack.c.h.b16 %v1190
    %v1288 = vpack.c.b16 %v1232, %v1224
    %v1289 = vpack.c.b16 %v1233, %v1225
    %v1290 = vpack.c.b16 %v1234, %v1226
    %v1291 = vpack.c.b16 %v1235, %v1227
    %v1292 = vpack.c.b16 %v1236, %v1228
    %v1293 = vpack.c.b16 %v1237, %v1229
    %v1294 = vpack.c.b16 %v1238, %v1230
    %v1295 = vpack.c.b16 %v1239, %v1231
    %v1296 = vpack.c.b16 %v1248, %v1240
    %v1297 = vpack.c.b16 %v1249, %v1241
    %v1298 = vpack.c.b16 %v1250, %v1242
    %v1299 = vpack.c.b16 %v1251, %v1243
    %v1300 = vpack.c.b16 %v1252, %v1244
    %v1301 = vpack.c.b16 %v1253, %v1245
    %v1302 = vpack.c.b16 %v1254, %v1246
    %v1303 = vpack.c.b16 %v1255, %v1247
    %v1304 = vpack.c.b16 %v1264, %v1256
    %v1305 = vpack.c.b16 %v1265, %v1257
    %v1306 = vpack.c.b16 %v1266, %v1258
    %v1307 = vpack.c.b16 %v1267, %v1259
    %v1308 = vpack.c.b16 %v1268, %v1260
    %v1309 = vpack.c.b16 %v1269, %v1261
    %v1310 = vpack.c.b16 %v1270, %v1262
    %v1311 = vpack.c.b16 %v1271, %v1263
    %v1312 = vpack.c.b16 %v1280, %v1272
    %v1313 = vpack.c.b16 %v1281, %v1273
    %v1314 = vpack.c.b16 %v1282, %v1274
    %v1315 = vpack.c.b16 %v1283, %v1275
    %v1316 = vpack.c.b16 %v1284, %v1276
    %v1317 = vpack.c.b16 %v1285, %v1277
    %v1318 = vpack.c.b16 %v1286, %v1278
    %v1319 = vpack.c.b16 %v1287, %v1279
    %v1353 = vsel %vm160, %v1191, 0
    %1355 = vmatprep.subr.bf16.mxu0 %v1289
    %1356 = vmatpush1.bf16.msra.mxu0 %v1288
    %1357 = vmatprep.subr.bf16.mxu0 %v1297
    %1358 = vmatpush1.bf16.msra.mxu0 %v1296
    %1359 = vmatprep.subr.bf16.mxu0 %v1305
    %1360 = vmatpush1.bf16.msra.mxu0 %v1304
    %1361 = vmatprep.subr.bf16.mxu0 %v1313
    %1362 = vmatpush1.bf16.msra.mxu0 %v1312
    %1363 = vmatprep.subr.bf16.mxu0 0
    %1364 = vmatpush1.bf16.msra.mxu0 0
    %1365 = vmatprep.subr.bf16.mxu0 0
    %1366 = vmatpush1.bf16.msra.mxu0 0
    %1367 = vmatprep.subr.bf16.mxu0 0
    %1368 = vmatpush1.bf16.msra.mxu0 0
    %1369 = vmatprep.subr.bf16.mxu0 0
    %1370 = vmatpush1.bf16.msra.mxu0 0
    %1371 = vmatprep.subr.bf16.mxu0 0
    %1372 = vmatpush1.bf16.msra.mxu0 0
    %1373 = vmatprep.subr.bf16.mxu0 0
    %1374 = vmatpush1.bf16.msra.mxu0 0
    %1375 = vmatprep.subr.bf16.mxu0 0
    %1376 = vmatpush1.bf16.msra.mxu0 0
    %1377 = vmatprep.subr.bf16.mxu0 0
    %1378 = vmatpush1.bf16.msra.mxu0 0
    %1379 = vmatprep.subr.bf16.mxu0 0
    %1380 = vmatpush1.bf16.msra.mxu0 0
    %1381 = vmatprep.subr.bf16.mxu0 0
    %1382 = vmatpush1.bf16.msra.mxu0 0
    %1383 = vmatprep.subr.bf16.mxu0 0
    %1384 = vmatpush1.bf16.msra.mxu0 0
    %1385 = vmatprep.subr.bf16.mxu0 0
    %1386 = vmatpush1.bf16.msra.mxu0 0
    %1387 = vmatprep.mubr.bf16.mxu0 0
    %1388 = vmatmul.mubr.bf16.gmra.mrb[0].mxu0 %v1353
    %v1389 = vpop.f32.mrb[0].mxu0
    %v1390 = vadd.f32 0.0, %v1389
    %v1391 = vpop.f32.mrb[0].mxu0
    %v1392 = vadd.f32 0.0, %v1391
    %v1393 = vpop.f32.mrb[0].mxu0
    %v1394 = vpop.f32.mrb[0].mxu0
    %1395 = vdwg.mxu0
    %1396 = vmatprep.subr.bf16.mxu0 %v1291
    %1397 = vmatpush1.bf16.msra.mxu0 %v1290
    %1398 = vmatprep.subr.bf16.mxu0 %v1299
    %1399 = vmatpush1.bf16.msra.mxu0 %v1298
    %1400 = vmatprep.subr.bf16.mxu0 %v1307
    %1401 = vmatpush1.bf16.msra.mxu0 %v1306
    %1402 = vmatprep.subr.bf16.mxu0 %v1315
    %1403 = vmatpush1.bf16.msra.mxu0 %v1314
    %1404 = vmatprep.subr.bf16.mxu0 0
    %1405 = vmatpush1.bf16.msra.mxu0 0
    %1406 = vmatprep.subr.bf16.mxu0 0
    %1407 = vmatpush1.bf16.msra.mxu0 0
    %1408 = vmatprep.subr.bf16.mxu0 0
    %1409 = vmatpush1.bf16.msra.mxu0 0
    %1410 = vmatprep.subr.bf16.mxu0 0
    %1411 = vmatpush1.bf16.msra.mxu0 0
    %1412 = vmatprep.subr.bf16.mxu0 0
    %1413 = vmatpush1.bf16.msra.mxu0 0
    %1414 = vmatprep.subr.bf16.mxu0 0
    %1415 = vmatpush1.bf16.msra.mxu0 0
    %1416 = vmatprep.subr.bf16.mxu0 0
    %1417 = vmatpush1.bf16.msra.mxu0 0
    %1418 = vmatprep.subr.bf16.mxu0 0
    %1419 = vmatpush1.bf16.msra.mxu0 0
    %1420 = vmatprep.subr.bf16.mxu0 0
    %1421 = vmatpush1.bf16.msra.mxu0 0
    %1422 = vmatprep.subr.bf16.mxu0 0
    %1423 = vmatpush1.bf16.msra.mxu0 0
    %1424 = vmatprep.subr.bf16.mxu0 0
    %1425 = vmatpush1.bf16.msra.mxu0 0
    %1426 = vmatprep.subr.bf16.mxu0 0
    %1427 = vmatpush1.bf16.msra.mxu0 0
    %1428 = vmatprep.mubr.bf16.mxu0 0
    %1429 = vmatmul.mubr.bf16.gmra.mrb[0].mxu0 %v1353
    %v1430 = vpop.f32.mrb[0].mxu0
    %v1431 = vadd.f32 0.0, %v1430
    %v1432 = vpop.f32.mrb[0].mxu0
    %v1433 = vadd.f32 0.0, %v1432
    %v1434 = vpop.f32.mrb[0].mxu0
    %v1435 = vpop.f32.mrb[0].mxu0
    %1436 = vdwg.mxu0
    %1437 = vmatprep.subr.bf16.mxu0 %v1293
    %1438 = vmatpush1.bf16.msra.mxu0 %v1292
    %1439 = vmatprep.subr.bf16.mxu0 %v1301
    %1440 = vmatpush1.bf16.msra.mxu0 %v1300
    %1441 = vmatprep.subr.bf16.mxu0 %v1309
    %1442 = vmatpush1.bf16.msra.mxu0 %v1308
    %1443 = vmatprep.subr.bf16.mxu0 %v1317
    %1444 = vmatpush1.bf16.msra.mxu0 %v1316
    %1445 = vmatprep.subr.bf16.mxu0 0
    %1446 = vmatpush1.bf16.msra.mxu0 0
    %1447 = vmatprep.subr.bf16.mxu0 0
    %1448 = vmatpush1.bf16.msra.mxu0 0
    %1449 = vmatprep.subr.bf16.mxu0 0
    %1450 = vmatpush1.bf16.msra.mxu0 0
    %1451 = vmatprep.subr.bf16.mxu0 0
    %1452 = vmatpush1.bf16.msra.mxu0 0
    %1453 = vmatprep.subr.bf16.mxu0 0
    %1454 = vmatpush1.bf16.msra.mxu0 0
    %1455 = vmatprep.subr.bf16.mxu0 0
    %1456 = vmatpush1.bf16.msra.mxu0 0
    %1457 = vmatprep.subr.bf16.mxu0 0
    %1458 = vmatpush1.bf16.msra.mxu0 0
    %1459 = vmatprep.subr.bf16.mxu0 0
    %1460 = vmatpush1.bf16.msra.mxu0 0
    %1461 = vmatprep.subr.bf16.mxu0 0
    %1462 = vmatpush1.bf16.msra.mxu0 0
    %1463 = vmatprep.subr.bf16.mxu0 0
    %1464 = vmatpush1.bf16.msra.mxu0 0
    %1465 = vmatprep.subr.bf16.mxu0 0
    %1466 = vmatpush1.bf16.msra.mxu0 0
    %1467 = vmatprep.subr.bf16.mxu0 0
    %1468 = vmatpush1.bf16.msra.mxu0 0
    %1469 = vmatprep.mubr.bf16.mxu0 0
    %1470 = vmatmul.mubr.bf16.gmra.mrb[0].mxu0 %v1353
    %v1471 = vpop.f32.mrb[0].mxu0
    %v1472 = vadd.f32 0.0, %v1471
    %v1473 = vpop.f32.mrb[0].mxu0
    %v1474 = vadd.f32 0.0, %v1473
    %v1475 = vpop.f32.mrb[0].mxu0
    %v1476 = vpop.f32.mrb[0].mxu0
    %1477 = vdwg.mxu0
    %1478 = vmatprep.subr.bf16.mxu0 %v1295
    %1479 = vmatpush1.bf16.msra.mxu0 %v1294
    %1480 = vmatprep.subr.bf16.mxu0 %v1303
    %1481 = vmatpush1.bf16.msra.mxu0 %v1302
    %1482 = vmatprep.subr.bf16.mxu0 %v1311
    %1483 = vmatpush1.bf16.msra.mxu0 %v1310
    %1484 = vmatprep.subr.bf16.mxu0 %v1319
    %1485 = vmatpush1.bf16.msra.mxu0 %v1318
    %1486 = vmatprep.subr.bf16.mxu0 0
    %1487 = vmatpush1.bf16.msra.mxu0 0
    %1488 = vmatprep.subr.bf16.mxu0 0
    %1489 = vmatpush1.bf16.msra.mxu0 0
    %1490 = vmatprep.subr.bf16.mxu0 0
    %1491 = vmatpush1.bf16.msra.mxu0 0
    %1492 = vmatprep.subr.bf16.mxu0 0
    %1493 = vmatpush1.bf16.msra.mxu0 0
    %1494 = vmatprep.subr.bf16.mxu0 0
    %1495 = vmatpush1.bf16.msra.mxu0 0
    %1496 = vmatprep.subr.bf16.mxu0 0
    %1497 = vmatpush1.bf16.msra.mxu0 0
    %1498 = vmatprep.subr.bf16.mxu0 0
    %1499 = vmatpush1.bf16.msra.mxu0 0
    %1500 = vmatprep.subr.bf16.mxu0 0
    %1501 = vmatpush1.bf16.msra.mxu0 0
    %1502 = vmatprep.subr.bf16.mxu0 0
    %1503 = vmatpush1.bf16.msra.mxu0 0
    %1504 = vmatprep.subr.bf16.mxu0 0
    %1505 = vmatpush1.bf16.msra.mxu0 0
    %1506 = vmatprep.subr.bf16.mxu0 0
    %1507 = vmatpush1.bf16.msra.mxu0 0
    %1508 = vmatprep.subr.bf16.mxu0 0
    %1509 = vmatpush1.bf16.msra.mxu0 0
    %1510 = vmatprep.mubr.bf16.mxu0 0
    %1511 = vmatmul.mubr.bf16.gmra.mrb[0].mxu0 %v1353
    %v1512 = vpop.f32.mrb[0].mxu0
    %v1513 = vadd.f32 0.0, %v1512
    %v1514 = vpop.f32.mrb[0].mxu0
    %v1515 = vadd.f32 0.0, %v1514
    %v1516 = vpop.f32.mrb[0].mxu0
    %v1517 = vpop.f32.mrb[0].mxu0
    %1518 = vdwg.mxu0
    %v1519 = vld [vmem:[#allocation3 + $0x600] sm:$0xff]
    %v1520 = vld [vmem:[#allocation3 + $0x608] sm:$0xff]
    %v1521 = vld [vmem:[#allocation3 + $0x610] sm:$0xff]
    %v1522 = vld [vmem:[#allocation3 + $0x618] sm:$0xff]
    %v1523 = vld [vmem:[#allocation3 + $0x620] sm:$0xff]
    %v1524 = vld [vmem:[#allocation3 + $0x628] sm:$0xff]
    %v1525 = vld [vmem:[#allocation3 + $0x630] sm:$0xff]
    %v1526 = vld [vmem:[#allocation3 + $0x638] sm:$0xff]
    %v1527 = vld [vmem:[#allocation3 + $0x640] sm:$0xff]
    %v1528 = vld [vmem:[#allocation3 + $0x648] sm:$0xff]
    %v1529 = vld [vmem:[#allocation3 + $0x650] sm:$0xff]
    %v1530 = vld [vmem:[#allocation3 + $0x658] sm:$0xff]
    %v1531 = vld [vmem:[#allocation3 + $0x660] sm:$0xff]
    %v1532 = vld [vmem:[#allocation3 + $0x668] sm:$0xff]
    %v1533 = vld [vmem:[#allocation3 + $0x670] sm:$0xff]
    %v1534 = vld [vmem:[#allocation3 + $0x678] sm:$0xff]
    %v1535 = vld [vmem:[#allocation3 + $0x680] sm:$0xff]
    %v1536 = vld [vmem:[#allocation3 + $0x688] sm:$0xff]
    %v1537 = vld [vmem:[#allocation3 + $0x690] sm:$0xff]
    %v1538 = vld [vmem:[#allocation3 + $0x698] sm:$0xff]
    %v1539 = vld [vmem:[#allocation3 + $0x6a0] sm:$0xff]
    %v1540 = vld [vmem:[#allocation3 + $0x6a8] sm:$0xff]
    %v1541 = vld [vmem:[#allocation3 + $0x6b0] sm:$0xff]
    %v1542 = vld [vmem:[#allocation3 + $0x6b8] sm:$0xff]
    %v1543 = vld [vmem:[#allocation3 + $0x6c0] sm:$0xff]
    %v1544 = vld [vmem:[#allocation3 + $0x6c8] sm:$0xff]
    %v1545 = vld [vmem:[#allocation3 + $0x6d0] sm:$0xff]
    %v1546 = vld [vmem:[#allocation3 + $0x6d8] sm:$0xff]
    %v1547 = vld [vmem:[#allocation3 + $0x6e0] sm:$0xff]
    %v1548 = vld [vmem:[#allocation3 + $0x6e8] sm:$0xff]
    %v1549 = vld [vmem:[#allocation3 + $0x6f0] sm:$0xff]
    %v1550 = vld [vmem:[#allocation3 + $0x6f8] sm:$0xff]
    %v1551 = vld [vmem:[#allocation3 + $0x700] sm:$0xff]
    %v1552 = vld [vmem:[#allocation3 + $0x708] sm:$0xff]
    %v1553 = vld [vmem:[#allocation3 + $0x710] sm:$0xff]
    %v1554 = vld [vmem:[#allocation3 + $0x718] sm:$0xff]
    %v1555 = vld [vmem:[#allocation3 + $0x720] sm:$0xff]
    %v1556 = vld [vmem:[#allocation3 + $0x728] sm:$0xff]
    %v1557 = vld [vmem:[#allocation3 + $0x730] sm:$0xff]
    %v1558 = vld [vmem:[#allocation3 + $0x738] sm:$0xff]
    %v1559 = vld [vmem:[#allocation3 + $0x740] sm:$0xff]
    %v1560 = vld [vmem:[#allocation3 + $0x748] sm:$0xff]
    %v1561 = vld [vmem:[#allocation3 + $0x750] sm:$0xff]
    %v1562 = vld [vmem:[#allocation3 + $0x758] sm:$0xff]
    %v1563 = vld [vmem:[#allocation3 + $0x760] sm:$0xff]
    %v1564 = vld [vmem:[#allocation3 + $0x768] sm:$0xff]
    %v1565 = vld [vmem:[#allocation3 + $0x770] sm:$0xff]
    %v1566 = vld [vmem:[#allocation3 + $0x778] sm:$0xff]
    %v1567 = vld [vmem:[#allocation3 + $0x780] sm:$0xff]
    %v1568 = vld [vmem:[#allocation3 + $0x788] sm:$0xff]
    %v1569 = vld [vmem:[#allocation3 + $0x790] sm:$0xff]
    %v1570 = vld [vmem:[#allocation3 + $0x798] sm:$0xff]
    %v1571 = vld [vmem:[#allocation3 + $0x7a0] sm:$0xff]
    %v1572 = vld [vmem:[#allocation3 + $0x7a8] sm:$0xff]
    %v1573 = vld [vmem:[#allocation3 + $0x7b0] sm:$0xff]
    %v1574 = vld [vmem:[#allocation3 + $0x7b8] sm:$0xff]
    %v1575 = vld [vmem:[#allocation3 + $0x7c0] sm:$0xff]
    %v1576 = vld [vmem:[#allocation3 + $0x7c8] sm:$0xff]
    %v1577 = vld [vmem:[#allocation3 + $0x7d0] sm:$0xff]
    %v1578 = vld [vmem:[#allocation3 + $0x7d8] sm:$0xff]
    %v1579 = vld [vmem:[#allocation3 + $0x7e0] sm:$0xff]
    %v1580 = vld [vmem:[#allocation3 + $0x7e8] sm:$0xff]
    %v1581 = vld [vmem:[#allocation3 + $0x7f0] sm:$0xff]
    %v1582 = vld [vmem:[#allocation3 + $0x7f8] sm:$0xff]
    %v1583 = vrot.slane %v406, 3
    %v1616 = vunpack.c.l.b16 %v1551
    %v1617 = vunpack.c.h.b16 %v1551
    %v1618 = vunpack.c.l.b16 %v1552
    %v1619 = vunpack.c.h.b16 %v1552
    %v1620 = vunpack.c.l.b16 %v1553
    %v1621 = vunpack.c.h.b16 %v1553
    %v1622 = vunpack.c.l.b16 %v1554
    %v1623 = vunpack.c.h.b16 %v1554
    %v1624 = vunpack.c.l.b16 %v1555
    %v1625 = vunpack.c.h.b16 %v1555
    %v1626 = vunpack.c.l.b16 %v1556
    %v1627 = vunpack.c.h.b16 %v1556
    %v1628 = vunpack.c.l.b16 %v1557
    %v1629 = vunpack.c.h.b16 %v1557
    %v1630 = vunpack.c.l.b16 %v1558
    %v1631 = vunpack.c.h.b16 %v1558
    %v1632 = vunpack.c.l.b16 %v1559
    %v1633 = vunpack.c.h.b16 %v1559
    %v1634 = vunpack.c.l.b16 %v1560
    %v1635 = vunpack.c.h.b16 %v1560
    %v1636 = vunpack.c.l.b16 %v1561
    %v1637 = vunpack.c.h.b16 %v1561
    %v1638 = vunpack.c.l.b16 %v1562
    %v1639 = vunpack.c.h.b16 %v1562
    %v1640 = vunpack.c.l.b16 %v1563
    %v1641 = vunpack.c.h.b16 %v1563
    %v1642 = vunpack.c.l.b16 %v1564
    %v1643 = vunpack.c.h.b16 %v1564
    %v1644 = vunpack.c.l.b16 %v1565
    %v1645 = vunpack.c.h.b16 %v1565
    %v1646 = vunpack.c.l.b16 %v1566
    %v1647 = vunpack.c.h.b16 %v1566
    %v1648 = vunpack.c.l.b16 %v1567
    %v1649 = vunpack.c.h.b16 %v1567
    %v1650 = vunpack.c.l.b16 %v1568
    %v1651 = vunpack.c.h.b16 %v1568
    %v1652 = vunpack.c.l.b16 %v1569
    %v1653 = vunpack.c.h.b16 %v1569
    %v1654 = vunpack.c.l.b16 %v1570
    %v1655 = vunpack.c.h.b16 %v1570
    %v1656 = vunpack.c.l.b16 %v1571
    %v1657 = vunpack.c.h.b16 %v1571
    %v1658 = vunpack.c.l.b16 %v1572
    %v1659 = vunpack.c.h.b16 %v1572
    %v1660 = vunpack.c.l.b16 %v1573
    %v1661 = vunpack.c.h.b16 %v1573
    %v1662 = vunpack.c.l.b16 %v1574
    %v1663 = vunpack.c.h.b16 %v1574
    %v1664 = vunpack.c.l.b16 %v1575
    %v1665 = vunpack.c.h.b16 %v1575
    %v1666 = vunpack.c.l.b16 %v1576
    %v1667 = vunpack.c.h.b16 %v1576
    %v1668 = vunpack.c.l.b16 %v1577
    %v1669 = vunpack.c.h.b16 %v1577
    %v1670 = vunpack.c.l.b16 %v1578
    %v1671 = vunpack.c.h.b16 %v1578
    %v1672 = vunpack.c.l.b16 %v1579
    %v1673 = vunpack.c.h.b16 %v1579
    %v1674 = vunpack.c.l.b16 %v1580
    %v1675 = vunpack.c.h.b16 %v1580
    %v1676 = vunpack.c.l.b16 %v1581
    %v1677 = vunpack.c.h.b16 %v1581
    %v1678 = vunpack.c.l.b16 %v1582
    %v1679 = vunpack.c.h.b16 %v1582
    %v1680 = vpack.c.b16 %v1624, %v1616
    %v1681 = vpack.c.b16 %v1625, %v1617
    %v1682 = vpack.c.b16 %v1626, %v1618
    %v1683 = vpack.c.b16 %v1627, %v1619
    %v1684 = vpack.c.b16 %v1628, %v1620
    %v1685 = vpack.c.b16 %v1629, %v1621
    %v1686 = vpack.c.b16 %v1630, %v1622
    %v1687 = vpack.c.b16 %v1631, %v1623
    %v1688 = vpack.c.b16 %v1640, %v1632
    %v1689 = vpack.c.b16 %v1641, %v1633
    %v1690 = vpack.c.b16 %v1642, %v1634
    %v1691 = vpack.c.b16 %v1643, %v1635
    %v1692 = vpack.c.b16 %v1644, %v1636
    %v1693 = vpack.c.b16 %v1645, %v1637
    %v1694 = vpack.c.b16 %v1646, %v1638
    %v1695 = vpack.c.b16 %v1647, %v1639
    %v1696 = vpack.c.b16 %v1656, %v1648
    %v1697 = vpack.c.b16 %v1657, %v1649
    %v1698 = vpack.c.b16 %v1658, %v1650
    %v1699 = vpack.c.b16 %v1659, %v1651
    %v1700 = vpack.c.b16 %v1660, %v1652
    %v1701 = vpack.c.b16 %v1661, %v1653
    %v1702 = vpack.c.b16 %v1662, %v1654
    %v1703 = vpack.c.b16 %v1663, %v1655
    %v1704 = vpack.c.b16 %v1672, %v1664
    %v1705 = vpack.c.b16 %v1673, %v1665
    %v1706 = vpack.c.b16 %v1674, %v1666
    %v1707 = vpack.c.b16 %v1675, %v1667
    %v1708 = vpack.c.b16 %v1676, %v1668
    %v1709 = vpack.c.b16 %v1677, %v1669
    %v1710 = vpack.c.b16 %v1678, %v1670
    %v1711 = vpack.c.b16 %v1679, %v1671
    %v1745 = vsel %vm160, %v1583, 0
    %1747 = vmatprep.subr.bf16.mxu0 %v1681
    %1748 = vmatpush1.bf16.msra.mxu0 %v1680
    %1749 = vmatprep.subr.bf16.mxu0 %v1689
    %1750 = vmatpush1.bf16.msra.mxu0 %v1688
    %1751 = vmatprep.subr.bf16.mxu0 %v1697
    %1752 = vmatpush1.bf16.msra.mxu0 %v1696
    %1753 = vmatprep.subr.bf16.mxu0 %v1705
    %1754 = vmatpush1.bf16.msra.mxu0 %v1704
    %1755 = vmatprep.subr.bf16.mxu0 0
    %1756 = vmatpush1.bf16.msra.mxu0 0
    %1757 = vmatprep.subr.bf16.mxu0 0
    %1758 = vmatpush1.bf16.msra.mxu0 0
    %1759 = vmatprep.subr.bf16.mxu0 0
    %1760 = vmatpush1.bf16.msra.mxu0 0
    %1761 = vmatprep.subr.bf16.mxu0 0
    %1762 = vmatpush1.bf16.msra.mxu0 0
    %1763 = vmatprep.subr.bf16.mxu0 0
    %1764 = vmatpush1.bf16.msra.mxu0 0
    %1765 = vmatprep.subr.bf16.mxu0 0
    %1766 = vmatpush1.bf16.msra.mxu0 0
    %1767 = vmatprep.subr.bf16.mxu0 0
    %1768 = vmatpush1.bf16.msra.mxu0 0
    %1769 = vmatprep.subr.bf16.mxu0 0
    %1770 = vmatpush1.bf16.msra.mxu0 0
    %1771 = vmatprep.subr.bf16.mxu0 0
    %1772 = vmatpush1.bf16.msra.mxu0 0
    %1773 = vmatprep.subr.bf16.mxu0 0
    %1774 = vmatpush1.bf16.msra.mxu0 0
    %1775 = vmatprep.subr.bf16.mxu0 0
    %1776 = vmatpush1.bf16.msra.mxu0 0
    %1777 = vmatprep.subr.bf16.mxu0 0
    %1778 = vmatpush1.bf16.msra.mxu0 0
    %1779 = vmatprep.mubr.bf16.mxu0 0
    %1780 = vmatmul.mubr.bf16.gmra.mrb[0].mxu0 %v1745
    %v1781 = vpop.f32.mrb[0].mxu0
    %v1782 = vadd.f32 0.0, %v1781
    %v1783 = vpop.f32.mrb[0].mxu0
    %v1784 = vadd.f32 0.0, %v1783
    %v1785 = vpop.f32.mrb[0].mxu0
    %v1786 = vpop.f32.mrb[0].mxu0
    %1787 = vdwg.mxu0
    %1788 = vmatprep.subr.bf16.mxu0 %v1683
    %1789 = vmatpush1.bf16.msra.mxu0 %v1682
    %1790 = vmatprep.subr.bf16.mxu0 %v1691
    %1791 = vmatpush1.bf16.msra.mxu0 %v1690
    %1792 = vmatprep.subr.bf16.mxu0 %v1699
    %1793 = vmatpush1.bf16.msra.mxu0 %v1698
    %1794 = vmatprep.subr.bf16.mxu0 %v1707
    %1795 = vmatpush1.bf16.msra.mxu0 %v1706
    %1796 = vmatprep.subr.bf16.mxu0 0
    %1797 = vmatpush1.bf16.msra.mxu0 0
    %1798 = vmatprep.subr.bf16.mxu0 0
    %1799 = vmatpush1.bf16.msra.mxu0 0
    %1800 = vmatprep.subr.bf16.mxu0 0
    %1801 = vmatpush1.bf16.msra.mxu0 0
    %1802 = vmatprep.subr.bf16.mxu0 0
    %1803 = vmatpush1.bf16.msra.mxu0 0
    %1804 = vmatprep.subr.bf16.mxu0 0
    %1805 = vmatpush1.bf16.msra.mxu0 0
    %1806 = vmatprep.subr.bf16.mxu0 0
    %1807 = vmatpush1.bf16.msra.mxu0 0
    %1808 = vmatprep.subr.bf16.mxu0 0
    %1809 = vmatpush1.bf16.msra.mxu0 0
    %1810 = vmatprep.subr.bf16.mxu0 0
    %1811 = vmatpush1.bf16.msra.mxu0 0
    %1812 = vmatprep.subr.bf16.mxu0 0
    %1813 = vmatpush1.bf16.msra.mxu0 0
    %1814 = vmatprep.subr.bf16.mxu0 0
    %1815 = vmatpush1.bf16.msra.mxu0 0
    %1816 = vmatprep.subr.bf16.mxu0 0
    %1817 = vmatpush1.bf16.msra.mxu0 0
    %1818 = vmatprep.subr.bf16.mxu0 0
    %1819 = vmatpush1.bf16.msra.mxu0 0
    %1820 = vmatprep.mubr.bf16.mxu0 0
    %1821 = vmatmul.mubr.bf16.gmra.mrb[0].mxu0 %v1745
    %v1822 = vpop.f32.mrb[0].mxu0
    %v1823 = vadd.f32 0.0, %v1822
    %v1824 = vpop.f32.mrb[0].mxu0
    %v1825 = vadd.f32 0.0, %v1824
    %v1826 = vpop.f32.mrb[0].mxu0
    %v1827 = vpop.f32.mrb[0].mxu0
    %1828 = vdwg.mxu0
    %1829 = vmatprep.subr.bf16.mxu0 %v1685
    %1830 = vmatpush1.bf16.msra.mxu0 %v1684
    %1831 = vmatprep.subr.bf16.mxu0 %v1693
    %1832 = vmatpush1.bf16.msra.mxu0 %v1692
    %1833 = vmatprep.subr.bf16.mxu0 %v1701
    %1834 = vmatpush1.bf16.msra.mxu0 %v1700
    %1835 = vmatprep.subr.bf16.mxu0 %v1709
    %1836 = vmatpush1.bf16.msra.mxu0 %v1708
    %1837 = vmatprep.subr.bf16.mxu0 0
    %1838 = vmatpush1.bf16.msra.mxu0 0
    %1839 = vmatprep.subr.bf16.mxu0 0
    %1840 = vmatpush1.bf16.msra.mxu0 0
    %1841 = vmatprep.subr.bf16.mxu0 0
    %1842 = vmatpush1.bf16.msra.mxu0 0
    %1843 = vmatprep.subr.bf16.mxu0 0
    %1844 = vmatpush1.bf16.msra.mxu0 0
    %1845 = vmatprep.subr.bf16.mxu0 0
    %1846 = vmatpush1.bf16.msra.mxu0 0
    %1847 = vmatprep.subr.bf16.mxu0 0
    %1848 = vmatpush1.bf16.msra.mxu0 0
    %1849 = vmatprep.subr.bf16.mxu0 0
    %1850 = vmatpush1.bf16.msra.mxu0 0
    %1851 = vmatprep.subr.bf16.mxu0 0
    %1852 = vmatpush1.bf16.msra.mxu0 0
    %1853 = vmatprep.subr.bf16.mxu0 0
    %1854 = vmatpush1.bf16.msra.mxu0 0
    %1855 = vmatprep.subr.bf16.mxu0 0
    %1856 = vmatpush1.bf16.msra.mxu0 0
    %1857 = vmatprep.subr.bf16.mxu0 0
    %1858 = vmatpush1.bf16.msra.mxu0 0
    %1859 = vmatprep.subr.bf16.mxu0 0
    %1860 = vmatpush1.bf16.msra.mxu0 0
    %1861 = vmatprep.mubr.bf16.mxu0 0
    %1862 = vmatmul.mubr.bf16.gmra.mrb[0].mxu0 %v1745
    %v1863 = vpop.f32.mrb[0].mxu0
    %v1864 = vadd.f32 0.0, %v1863
    %v1865 = vpop.f32.mrb[0].mxu0
    %v1866 = vadd.f32 0.0, %v1865
    %v1867 = vpop.f32.mrb[0].mxu0
    %v1868 = vpop.f32.mrb[0].mxu0
    %1869 = vdwg.mxu0
    %1870 = vmatprep.subr.bf16.mxu0 %v1687
    %1871 = vmatpush1.bf16.msra.mxu0 %v1686
    %1872 = vmatprep.subr.bf16.mxu0 %v1695
    %1873 = vmatpush1.bf16.msra.mxu0 %v1694
    %1874 = vmatprep.subr.bf16.mxu0 %v1703
    %1875 = vmatpush1.bf16.msra.mxu0 %v1702
    %1876 = vmatprep.subr.bf16.mxu0 %v1711
    %1877 = vmatpush1.bf16.msra.mxu0 %v1710
    %1878 = vmatprep.subr.bf16.mxu0 0
    %1879 = vmatpush1.bf16.msra.mxu0 0
    %1880 = vmatprep.subr.bf16.mxu0 0
    %1881 = vmatpush1.bf16.msra.mxu0 0
    %1882 = vmatprep.subr.bf16.mxu0 0
    %1883 = vmatpush1.bf16.msra.mxu0 0
    %1884 = vmatprep.subr.bf16.mxu0 0
    %1885 = vmatpush1.bf16.msra.mxu0 0
    %1886 = vmatprep.subr.bf16.mxu0 0
    %1887 = vmatpush1.bf16.msra.mxu0 0
    %1888 = vmatprep.subr.bf16.mxu0 0
    %1889 = vmatpush1.bf16.msra.mxu0 0
    %1890 = vmatprep.subr.bf16.mxu0 0
    %1891 = vmatpush1.bf16.msra.mxu0 0
    %1892 = vmatprep.subr.bf16.mxu0 0
    %1893 = vmatpush1.bf16.msra.mxu0 0
    %1894 = vmatprep.subr.bf16.mxu0 0
    %1895 = vmatpush1.bf16.msra.mxu0 0
    %1896 = vmatprep.subr.bf16.mxu0 0
    %1897 = vmatpush1.bf16.msra.mxu0 0
    %1898 = vmatprep.subr.bf16.mxu0 0
    %1899 = vmatpush1.bf16.msra.mxu0 0
    %1900 = vmatprep.subr.bf16.mxu0 0
    %1901 = vmatpush1.bf16.msra.mxu0 0
    %1902 = vmatprep.mubr.bf16.mxu0 0
    %1903 = vmatmul.mubr.bf16.gmra.mrb[0].mxu0 %v1745
    %v1904 = vpop.f32.mrb[0].mxu0
    %v1905 = vadd.f32 0.0, %v1904
    %v1906 = vpop.f32.mrb[0].mxu0
    %v1907 = vadd.f32 0.0, %v1906
    %v1908 = vpop.f32.mrb[0].mxu0
    %v1909 = vpop.f32.mrb[0].mxu0
    %1910 = vdwg.mxu0
    %v1911 = vld [vmem:[%s9] sm:$0xff]
    %v1944 = vunpack.c.l.b16 %v341
    %v1945 = vunpack.c.h.b16 %v341
    %v1946 = vunpack.c.l.b16 %v342
    %v1947 = vunpack.c.h.b16 %v342
    %v1948 = vunpack.c.l.b16 %v343
    %v1949 = vunpack.c.h.b16 %v343
    %v1950 = vunpack.c.l.b16 %v344
    %v1951 = vunpack.c.h.b16 %v344
    %v1952 = vunpack.c.l.b16 %v345
    %v1953 = vunpack.c.h.b16 %v345
    %v1954 = vunpack.c.l.b16 %v346
    %v1955 = vunpack.c.h.b16 %v346
    %v1956 = vunpack.c.l.b16 %v347
    %v1957 = vunpack.c.h.b16 %v347
    %v1958 = vunpack.c.l.b16 %v348
    %v1959 = vunpack.c.h.b16 %v348
    %v1960 = vunpack.c.l.b16 %v349
    %v1961 = vunpack.c.h.b16 %v349
    %v1962 = vunpack.c.l.b16 %v350
    %v1963 = vunpack.c.h.b16 %v350
    %v1964 = vunpack.c.l.b16 %v351
    %v1965 = vunpack.c.h.b16 %v351
    %v1966 = vunpack.c.l.b16 %v352
    %v1967 = vunpack.c.h.b16 %v352
    %v1968 = vunpack.c.l.b16 %v353
    %v1969 = vunpack.c.h.b16 %v353
    %v1970 = vunpack.c.l.b16 %v354
    %v1971 = vunpack.c.h.b16 %v354
    %v1972 = vunpack.c.l.b16 %v355
    %v1973 = vunpack.c.h.b16 %v355
    %v1974 = vunpack.c.l.b16 %v356
    %v1975 = vunpack.c.h.b16 %v356
    %v1976 = vunpack.c.l.b16 %v357
    %v1977 = vunpack.c.h.b16 %v357
    %v1978 = vunpack.c.l.b16 %v358
    %v1979 = vunpack.c.h.b16 %v358
    %v1980 = vunpack.c.l.b16 %v359
    %v1981 = vunpack.c.h.b16 %v359
    %v1982 = vunpack.c.l.b16 %v360
    %v1983 = vunpack.c.h.b16 %v360
    %v1984 = vunpack.c.l.b16 %v361
    %v1985 = vunpack.c.h.b16 %v361
    %v1986 = vunpack.c.l.b16 %v362
    %v1987 = vunpack.c.h.b16 %v362
    %v1988 = vunpack.c.l.b16 %v363
    %v1989 = vunpack.c.h.b16 %v363
    %v1990 = vunpack.c.l.b16 %v364
    %v1991 = vunpack.c.h.b16 %v364
    %v1992 = vunpack.c.l.b16 %v365
    %v1993 = vunpack.c.h.b16 %v365
    %v1994 = vunpack.c.l.b16 %v366
    %v1995 = vunpack.c.h.b16 %v366
    %v1996 = vunpack.c.l.b16 %v367
    %v1997 = vunpack.c.h.b16 %v367
    %v1998 = vunpack.c.l.b16 %v368
    %v1999 = vunpack.c.h.b16 %v368
    %v2000 = vunpack.c.l.b16 %v369
    %v2001 = vunpack.c.h.b16 %v369
    %v2002 = vunpack.c.l.b16 %v370
    %v2003 = vunpack.c.h.b16 %v370
    %v2004 = vunpack.c.l.b16 %v371
    %v2005 = vunpack.c.h.b16 %v371
    %v2006 = vunpack.c.l.b16 %v372
    %v2007 = vunpack.c.h.b16 %v372
    %v2008 = vpack.c.b16 %v1952, %v1944
    %v2009 = vpack.c.b16 %v1953, %v1945
    %v2010 = vpack.c.b16 %v1954, %v1946
    %v2011 = vpack.c.b16 %v1955, %v1947
    %v2012 = vpack.c.b16 %v1956, %v1948
    %v2013 = vpack.c.b16 %v1957, %v1949
    %v2014 = vpack.c.b16 %v1958, %v1950
    %v2015 = vpack.c.b16 %v1959, %v1951
    %v2016 = vpack.c.b16 %v1968, %v1960
    %v2017 = vpack.c.b16 %v1969, %v1961
    %v2018 = vpack.c.b16 %v1970, %v1962
    %v2019 = vpack.c.b16 %v1971, %v1963
    %v2020 = vpack.c.b16 %v1972, %v1964
    %v2021 = vpack.c.b16 %v1973, %v1965
    %v2022 = vpack.c.b16 %v1974, %v1966
    %v2023 = vpack.c.b16 %v1975, %v1967
    %v2024 = vpack.c.b16 %v1984, %v1976
    %v2025 = vpack.c.b16 %v1985, %v1977
    %v2026 = vpack.c.b16 %v1986, %v1978
    %v2027 = vpack.c.b16 %v1987, %v1979
    %v2028 = vpack.c.b16 %v1988, %v1980
    %v2029 = vpack.c.b16 %v1989, %v1981
    %v2030 = vpack.c.b16 %v1990, %v1982
    %v2031 = vpack.c.b16 %v1991, %v1983
    %v2032 = vpack.c.b16 %v2000, %v1992
    %v2033 = vpack.c.b16 %v2001, %v1993
    %v2034 = vpack.c.b16 %v2002, %v1994
    %v2035 = vpack.c.b16 %v2003, %v1995
    %v2036 = vpack.c.b16 %v2004, %v1996
    %v2037 = vpack.c.b16 %v2005, %v1997
    %v2038 = vpack.c.b16 %v2006, %v1998
    %v2039 = vpack.c.b16 %v2007, %v1999
    %v2072 = vsel %vm160, %v340, 0
    %2074 = vmatprep.subr.bf16.mxu0 %v2009
    %2075 = vmatpush1.bf16.msra.mxu0 %v2008
    %2076 = vmatprep.subr.bf16.mxu0 %v2017
    %2077 = vmatpush1.bf16.msra.mxu0 %v2016
    %2078 = vmatprep.subr.bf16.mxu0 %v2025
    %2079 = vmatpush1.bf16.msra.mxu0 %v2024
    %2080 = vmatprep.subr.bf16.mxu0 %v2033
    %2081 = vmatpush1.bf16.msra.mxu0 %v2032
    %2082 = vmatprep.subr.bf16.mxu0 0
    %2083 = vmatpush1.bf16.msra.mxu0 0
    %2084 = vmatprep.subr.bf16.mxu0 0
    %2085 = vmatpush1.bf16.msra.mxu0 0
    %2086 = vmatprep.subr.bf16.mxu0 0
    %2087 = vmatpush1.bf16.msra.mxu0 0
    %2088 = vmatprep.subr.bf16.mxu0 0
    %2089 = vmatpush1.bf16.msra.mxu0 0
    %2090 = vmatprep.subr.bf16.mxu0 0
    %2091 = vmatpush1.bf16.msra.mxu0 0
    %2092 = vmatprep.subr.bf16.mxu0 0
    %2093 = vmatpush1.bf16.msra.mxu0 0
    %2094 = vmatprep.subr.bf16.mxu0 0
    %2095 = vmatpush1.bf16.msra.mxu0 0
    %2096 = vmatprep.subr.bf16.mxu0 0
    %2097 = vmatpush1.bf16.msra.mxu0 0
    %2098 = vmatprep.subr.bf16.mxu0 0
    %2099 = vmatpush1.bf16.msra.mxu0 0
    %2100 = vmatprep.subr.bf16.mxu0 0
    %2101 = vmatpush1.bf16.msra.mxu0 0
    %2102 = vmatprep.subr.bf16.mxu0 0
    %2103 = vmatpush1.bf16.msra.mxu0 0
    %2104 = vmatprep.subr.bf16.mxu0 0
    %2105 = vmatpush1.bf16.msra.mxu0 0
    %2106 = vmatprep.mubr.bf16.mxu0 0
    %2107 = vmatmul.mubr.bf16.gmra.mrb[0].mxu0 %v2072
    %v2108 = vpop.f32.mrb[0].mxu0
    %v2109 = vadd.f32 %v606, %v2108
    %v2110 = vpop.f32.mrb[0].mxu0
    %v2111 = vadd.f32 %v608, %v2110
    %v2112 = vpop.f32.mrb[0].mxu0
    %v2113 = vpop.f32.mrb[0].mxu0
    %2114 = vdwg.mxu0
    %2115 = vmatprep.subr.bf16.mxu0 %v2011
    %2116 = vmatpush1.bf16.msra.mxu0 %v2010
    %2117 = vmatprep.subr.bf16.mxu0 %v2019
    %2118 = vmatpush1.bf16.msra.mxu0 %v2018
    %2119 = vmatprep.subr.bf16.mxu0 %v2027
    %2120 = vmatpush1.bf16.msra.mxu0 %v2026
    %2121 = vmatprep.subr.bf16.mxu0 %v2035
    %2122 = vmatpush1.bf16.msra.mxu0 %v2034
    %2123 = vmatprep.subr.bf16.mxu0 0
    %2124 = vmatpush1.bf16.msra.mxu0 0
    %2125 = vmatprep.subr.bf16.mxu0 0
    %2126 = vmatpush1.bf16.msra.mxu0 0
    %2127 = vmatprep.subr.bf16.mxu0 0
    %2128 = vmatpush1.bf16.msra.mxu0 0
    %2129 = vmatprep.subr.bf16.mxu0 0
    %2130 = vmatpush1.bf16.msra.mxu0 0
    %2131 = vmatprep.subr.bf16.mxu0 0
    %2132 = vmatpush1.bf16.msra.mxu0 0
    %2133 = vmatprep.subr.bf16.mxu0 0
    %2134 = vmatpush1.bf16.msra.mxu0 0
    %2135 = vmatprep.subr.bf16.mxu0 0
    %2136 = vmatpush1.bf16.msra.mxu0 0
    %2137 = vmatprep.subr.bf16.mxu0 0
    %2138 = vmatpush1.bf16.msra.mxu0 0
    %2139 = vmatprep.subr.bf16.mxu0 0
    %2140 = vmatpush1.bf16.msra.mxu0 0
    %2141 = vmatprep.subr.bf16.mxu0 0
    %2142 = vmatpush1.bf16.msra.mxu0 0
    %2143 = vmatprep.subr.bf16.mxu0 0
    %2144 = vmatpush1.bf16.msra.mxu0 0
    %2145 = vmatprep.subr.bf16.mxu0 0
    %2146 = vmatpush1.bf16.msra.mxu0 0
    %2147 = vmatprep.mubr.bf16.mxu0 0
    %2148 = vmatmul.mubr.bf16.gmra.mrb[0].mxu0 %v2072
    %v2149 = vpop.f32.mrb[0].mxu0
    %v2150 = vadd.f32 %v647, %v2149
    %v2151 = vpop.f32.mrb[0].mxu0
    %v2152 = vadd.f32 %v649, %v2151
    %v2153 = vpop.f32.mrb[0].mxu0
    %v2154 = vpop.f32.mrb[0].mxu0
    %2155 = vdwg.mxu0
    %2156 = vmatprep.subr.bf16.mxu0 %v2013
    %2157 = vmatpush1.bf16.msra.mxu0 %v2012
    %2158 = vmatprep.subr.bf16.mxu0 %v2021
    %2159 = vmatpush1.bf16.msra.mxu0 %v2020
    %2160 = vmatprep.subr.bf16.mxu0 %v2029
    %2161 = vmatpush1.bf16.msra.mxu0 %v2028
    %2162 = vmatprep.subr.bf16.mxu0 %v2037
    %2163 = vmatpush1.bf16.msra.mxu0 %v2036
    %2164 = vmatprep.subr.bf16.mxu0 0
    %2165 = vmatpush1.bf16.msra.mxu0 0
    %2166 = vmatprep.subr.bf16.mxu0 0
    %2167 = vmatpush1.bf16.msra.mxu0 0
    %2168 = vmatprep.subr.bf16.mxu0 0
    %2169 = vmatpush1.bf16.msra.mxu0 0
    %2170 = vmatprep.subr.bf16.mxu0 0
    %2171 = vmatpush1.bf16.msra.mxu0 0
    %2172 = vmatprep.subr.bf16.mxu0 0
    %2173 = vmatpush1.bf16.msra.mxu0 0
    %2174 = vmatprep.subr.bf16.mxu0 0
    %2175 = vmatpush1.bf16.msra.mxu0 0
    %2176 = vmatprep.subr.bf16.mxu0 0
    %2177 = vmatpush1.bf16.msra.mxu0 0
    %2178 = vmatprep.subr.bf16.mxu0 0
    %2179 = vmatpush1.bf16.msra.mxu0 0
    %2180 = vmatprep.subr.bf16.mxu0 0
    %2181 = vmatpush1.bf16.msra.mxu0 0
    %2182 = vmatprep.subr.bf16.mxu0 0
    %2183 = vmatpush1.bf16.msra.mxu0 0
    %2184 = vmatprep.subr.bf16.mxu0 0
    %2185 = vmatpush1.bf16.msra.mxu0 0
    %2186 = vmatprep.subr.bf16.mxu0 0
    %2187 = vmatpush1.bf16.msra.mxu0 0
    %2188 = vmatprep.mubr.bf16.mxu0 0
    %2189 = vmatmul.mubr.bf16.gmra.mrb[0].mxu0 %v2072
    %v2190 = vpop.f32.mrb[0].mxu0
    %v2191 = vadd.f32 %v688, %v2190
    %v2192 = vpop.f32.mrb[0].mxu0
    %v2193 = vadd.f32 %v690, %v2192
    %v2194 = vpop.f32.mrb[0].mxu0
    %v2195 = vpop.f32.mrb[0].mxu0
    %2196 = vdwg.mxu0
    %2197 = vmatprep.subr.bf16.mxu0 %v2015
    %2198 = vmatpush1.bf16.msra.mxu0 %v2014
    %2199 = vmatprep.subr.bf16.mxu0 %v2023
    %2200 = vmatpush1.bf16.msra.mxu0 %v2022
    %2201 = vmatprep.subr.bf16.mxu0 %v2031
    %2202 = vmatpush1.bf16.msra.mxu0 %v2030
    %2203 = vmatprep.subr.bf16.mxu0 %v2039
    %2204 = vmatpush1.bf16.msra.mxu0 %v2038
    %2205 = vmatprep.subr.bf16.mxu0 0
    %2206 = vmatpush1.bf16.msra.mxu0 0
    %2207 = vmatprep.subr.bf16.mxu0 0
    %2208 = vmatpush1.bf16.msra.mxu0 0
    %2209 = vmatprep.subr.bf16.mxu0 0
    %2210 = vmatpush1.bf16.msra.mxu0 0
    %2211 = vmatprep.subr.bf16.mxu0 0
    %2212 = vmatpush1.bf16.msra.mxu0 0
    %2213 = vmatprep.subr.bf16.mxu0 0
    %2214 = vmatpush1.bf16.msra.mxu0 0
    %2215 = vmatprep.subr.bf16.mxu0 0
    %2216 = vmatpush1.bf16.msra.mxu0 0
    %2217 = vmatprep.subr.bf16.mxu0 0
    %2218 = vmatpush1.bf16.msra.mxu0 0
    %2219 = vmatprep.subr.bf16.mxu0 0
    %2220 = vmatpush1.bf16.msra.mxu0 0
    %2221 = vmatprep.subr.bf16.mxu0 0
    %2222 = vmatpush1.bf16.msra.mxu0 0
    %2223 = vmatprep.subr.bf16.mxu0 0
    %2224 = vmatpush1.bf16.msra.mxu0 0
    %2225 = vmatprep.subr.bf16.mxu0 0
    %2226 = vmatpush1.bf16.msra.mxu0 0
    %2227 = vmatprep.subr.bf16.mxu0 0
    %2228 = vmatpush1.bf16.msra.mxu0 0
    %2229 = vmatprep.mubr.bf16.mxu0 0
    %2230 = vmatmul.mubr.bf16.gmra.mrb[0].mxu0 %v2072
    %v2231 = vpop.f32.mrb[0].mxu0
    %v2232 = vadd.f32 %v729, %v2231
    %v2233 = vpop.f32.mrb[0].mxu0
    %v2234 = vadd.f32 %v731, %v2233
    %v2235 = vpop.f32.mrb[0].mxu0
    %v2236 = vpop.f32.mrb[0].mxu0
    %2237 = vdwg.mxu0
    %v2239 = vrot.slane %v340, 1
    %v2272 = vunpack.c.l.b16 %v735
    %v2273 = vunpack.c.h.b16 %v735
    %v2274 = vunpack.c.l.b16 %v736
    %v2275 = vunpack.c.h.b16 %v736
    %v2276 = vunpack.c.l.b16 %v737
    %v2277 = vunpack.c.h.b16 %v737
    %v2278 = vunpack.c.l.b16 %v738
    %v2279 = vunpack.c.h.b16 %v738
    %v2280 = vunpack.c.l.b16 %v739
    %v2281 = vunpack.c.h.b16 %v739
    %v2282 = vunpack.c.l.b16 %v740
    %v2283 = vunpack.c.h.b16 %v740
    %v2284 = vunpack.c.l.b16 %v741
    %v2285 = vunpack.c.h.b16 %v741
    %v2286 = vunpack.c.l.b16 %v742
    %v2287 = vunpack.c.h.b16 %v742
    %v2288 = vunpack.c.l.b16 %v743
    %v2289 = vunpack.c.h.b16 %v743
    %v2290 = vunpack.c.l.b16 %v744
    %v2291 = vunpack.c.h.b16 %v744
    %v2292 = vunpack.c.l.b16 %v745
    %v2293 = vunpack.c.h.b16 %v745
    %v2294 = vunpack.c.l.b16 %v746
    %v2295 = vunpack.c.h.b16 %v746
    %v2296 = vunpack.c.l.b16 %v747
    %v2297 = vunpack.c.h.b16 %v747
    %v2298 = vunpack.c.l.b16 %v748
    %v2299 = vunpack.c.h.b16 %v748
    %v2300 = vunpack.c.l.b16 %v749
    %v2301 = vunpack.c.h.b16 %v749
    %v2302 = vunpack.c.l.b16 %v750
    %v2303 = vunpack.c.h.b16 %v750
    %v2304 = vunpack.c.l.b16 %v751
    %v2305 = vunpack.c.h.b16 %v751
    %v2306 = vunpack.c.l.b16 %v752
    %v2307 = vunpack.c.h.b16 %v752
    %v2308 = vunpack.c.l.b16 %v753
    %v2309 = vunpack.c.h.b16 %v753
    %v2310 = vunpack.c.l.b16 %v754
    %v2311 = vunpack.c.h.b16 %v754
    %v2312 = vunpack.c.l.b16 %v755
    %v2313 = vunpack.c.h.b16 %v755
    %v2314 = vunpack.c.l.b16 %v756
    %v2315 = vunpack.c.h.b16 %v756
    %v2316 = vunpack.c.l.b16 %v757
    %v2317 = vunpack.c.h.b16 %v757
    %v2318 = vunpack.c.l.b16 %v758
    %v2319 = vunpack.c.h.b16 %v758
    %v2320 = vunpack.c.l.b16 %v759
    %v2321 = vunpack.c.h.b16 %v759
    %v2322 = vunpack.c.l.b16 %v760
    %v2323 = vunpack.c.h.b16 %v760
    %v2324 = vunpack.c.l.b16 %v761
    %v2325 = vunpack.c.h.b16 %v761
    %v2326 = vunpack.c.l.b16 %v762
    %v2327 = vunpack.c.h.b16 %v762
    %v2328 = vunpack.c.l.b16 %v763
    %v2329 = vunpack.c.h.b16 %v763
    %v2330 = vunpack.c.l.b16 %v764
    %v2331 = vunpack.c.h.b16 %v764
    %v2332 = vunpack.c.l.b16 %v765
    %v2333 = vunpack.c.h.b16 %v765
    %v2334 = vunpack.c.l.b16 %v766
    %v2335 = vunpack.c.h.b16 %v766
    %v2336 = vpack.c.b16 %v2280, %v2272
    %v2337 = vpack.c.b16 %v2281, %v2273
    %v2338 = vpack.c.b16 %v2282, %v2274
    %v2339 = vpack.c.b16 %v2283, %v2275
    %v2340 = vpack.c.b16 %v2284, %v2276
    %v2341 = vpack.c.b16 %v2285, %v2277
    %v2342 = vpack.c.b16 %v2286, %v2278
    %v2343 = vpack.c.b16 %v2287, %v2279
    %v2344 = vpack.c.b16 %v2296, %v2288
    %v2345 = vpack.c.b16 %v2297, %v2289
    %v2346 = vpack.c.b16 %v2298, %v2290
    %v2347 = vpack.c.b16 %v2299, %v2291
    %v2348 = vpack.c.b16 %v2300, %v2292
    %v2349 = vpack.c.b16 %v2301, %v2293
    %v2350 = vpack.c.b16 %v2302, %v2294
    %v2351 = vpack.c.b16 %v2303, %v2295
    %v2352 = vpack.c.b16 %v2312, %v2304
    %v2353 = vpack.c.b16 %v2313, %v2305
    %v2354 = vpack.c.b16 %v2314, %v2306
    %v2355 = vpack.c.b16 %v2315, %v2307
    %v2356 = vpack.c.b16 %v2316, %v2308
    %v2357 = vpack.c.b16 %v2317, %v2309
    %v2358 = vpack.c.b16 %v2318, %v2310
    %v2359 = vpack.c.b16 %v2319, %v2311
    %v2360 = vpack.c.b16 %v2328, %v2320
    %v2361 = vpack.c.b16 %v2329, %v2321
    %v2362 = vpack.c.b16 %v2330, %v2322
    %v2363 = vpack.c.b16 %v2331, %v2323
    %v2364 = vpack.c.b16 %v2332, %v2324
    %v2365 = vpack.c.b16 %v2333, %v2325
    %v2366 = vpack.c.b16 %v2334, %v2326
    %v2367 = vpack.c.b16 %v2335, %v2327
    %v2401 = vsel %vm160, %v2239, 0
    %2403 = vmatprep.subr.bf16.mxu0 %v2337
    %2404 = vmatpush1.bf16.msra.mxu0 %v2336
    %2405 = vmatprep.subr.bf16.mxu0 %v2345
    %2406 = vmatpush1.bf16.msra.mxu0 %v2344
    %2407 = vmatprep.subr.bf16.mxu0 %v2353
    %2408 = vmatpush1.bf16.msra.mxu0 %v2352
    %2409 = vmatprep.subr.bf16.mxu0 %v2361
    %2410 = vmatpush1.bf16.msra.mxu0 %v2360
    %2411 = vmatprep.subr.bf16.mxu0 0
    %2412 = vmatpush1.bf16.msra.mxu0 0
    %2413 = vmatprep.subr.bf16.mxu0 0
    %2414 = vmatpush1.bf16.msra.mxu0 0
    %2415 = vmatprep.subr.bf16.mxu0 0
    %2416 = vmatpush1.bf16.msra.mxu0 0
    %2417 = vmatprep.subr.bf16.mxu0 0
    %2418 = vmatpush1.bf16.msra.mxu0 0
    %2419 = vmatprep.subr.bf16.mxu0 0
    %2420 = vmatpush1.bf16.msra.mxu0 0
    %2421 = vmatprep.subr.bf16.mxu0 0
    %2422 = vmatpush1.bf16.msra.mxu0 0
    %2423 = vmatprep.subr.bf16.mxu0 0
    %2424 = vmatpush1.bf16.msra.mxu0 0
    %2425 = vmatprep.subr.bf16.mxu0 0
    %2426 = vmatpush1.bf16.msra.mxu0 0
    %2427 = vmatprep.subr.bf16.mxu0 0
    %2428 = vmatpush1.bf16.msra.mxu0 0
    %2429 = vmatprep.subr.bf16.mxu0 0
    %2430 = vmatpush1.bf16.msra.mxu0 0
    %2431 = vmatprep.subr.bf16.mxu0 0
    %2432 = vmatpush1.bf16.msra.mxu0 0
    %2433 = vmatprep.subr.bf16.mxu0 0
    %2434 = vmatpush1.bf16.msra.mxu0 0
    %2435 = vmatprep.mubr.bf16.mxu0 0
    %2436 = vmatmul.mubr.bf16.gmra.mrb[0].mxu0 %v2401
    %v2437 = vpop.f32.mrb[0].mxu0
    %v2438 = vadd.f32 %v998, %v2437
    %v2439 = vpop.f32.mrb[0].mxu0
    %v2440 = vadd.f32 %v1000, %v2439
    %v2441 = vpop.f32.mrb[0].mxu0
    %v2442 = vpop.f32.mrb[0].mxu0
    %2443 = vdwg.mxu0
    %2444 = vmatprep.subr.bf16.mxu0 %v2339
    %2445 = vmatpush1.bf16.msra.mxu0 %v2338
    %2446 = vmatprep.subr.bf16.mxu0 %v2347
    %2447 = vmatpush1.bf16.msra.mxu0 %v2346
    %2448 = vmatprep.subr.bf16.mxu0 %v2355
    %2449 = vmatpush1.bf16.msra.mxu0 %v2354
    %2450 = vmatprep.subr.bf16.mxu0 %v2363
    %2451 = vmatpush1.bf16.msra.mxu0 %v2362
    %2452 = vmatprep.subr.bf16.mxu0 0
    %2453 = vmatpush1.bf16.msra.mxu0 0
    %2454 = vmatprep.subr.bf16.mxu0 0
    %2455 = vmatpush1.bf16.msra.mxu0 0
    %2456 = vmatprep.subr.bf16.mxu0 0
    %2457 = vmatpush1.bf16.msra.mxu0 0
    %2458 = vmatprep.subr.bf16.mxu0 0
    %2459 = vmatpush1.bf16.msra.mxu0 0
    %2460 = vmatprep.subr.bf16.mxu0 0
    %2461 = vmatpush1.bf16.msra.mxu0 0
    %2462 = vmatprep.subr.bf16.mxu0 0
    %2463 = vmatpush1.bf16.msra.mxu0 0
    %2464 = vmatprep.subr.bf16.mxu0 0
    %2465 = vmatpush1.bf16.msra.mxu0 0
    %2466 = vmatprep.subr.bf16.mxu0 0
    %2467 = vmatpush1.bf16.msra.mxu0 0
    %2468 = vmatprep.subr.bf16.mxu0 0
    %2469 = vmatpush1.bf16.msra.mxu0 0
    %2470 = vmatprep.subr.bf16.mxu0 0
    %2471 = vmatpush1.bf16.msra.mxu0 0
    %2472 = vmatprep.subr.bf16.mxu0 0
    %2473 = vmatpush1.bf16.msra.mxu0 0
    %2474 = vmatprep.subr.bf16.mxu0 0
    %2475 = vmatpush1.bf16.msra.mxu0 0
    %2476 = vmatprep.mubr.bf16.mxu0 0
    %2477 = vmatmul.mubr.bf16.gmra.mrb[0].mxu0 %v2401
    %v2478 = vpop.f32.mrb[0].mxu0
    %v2479 = vadd.f32 %v1039, %v2478
    %v2480 = vpop.f32.mrb[0].mxu0
    %v2481 = vadd.f32 %v1041, %v2480
    %v2482 = vpop.f32.mrb[0].mxu0
    %v2483 = vpop.f32.mrb[0].mxu0
    %2484 = vdwg.mxu0
    %2485 = vmatprep.subr.bf16.mxu0 %v2341
    %2486 = vmatpush1.bf16.msra.mxu0 %v2340
    %2487 = vmatprep.subr.bf16.mxu0 %v2349
    %2488 = vmatpush1.bf16.msra.mxu0 %v2348
    %2489 = vmatprep.subr.bf16.mxu0 %v2357
    %2490 = vmatpush1.bf16.msra.mxu0 %v2356
    %2491 = vmatprep.subr.bf16.mxu0 %v2365
    %2492 = vmatpush1.bf16.msra.mxu0 %v2364
    %2493 = vmatprep.subr.bf16.mxu0 0
    %2494 = vmatpush1.bf16.msra.mxu0 0
    %2495 = vmatprep.subr.bf16.mxu0 0
    %2496 = vmatpush1.bf16.msra.mxu0 0
    %2497 = vmatprep.subr.bf16.mxu0 0
    %2498 = vmatpush1.bf16.msra.mxu0 0
    %2499 = vmatprep.subr.bf16.mxu0 0
    %2500 = vmatpush1.bf16.msra.mxu0 0
    %2501 = vmatprep.subr.bf16.mxu0 0
    %2502 = vmatpush1.bf16.msra.mxu0 0
    %2503 = vmatprep.subr.bf16.mxu0 0
    %2504 = vmatpush1.bf16.msra.mxu0 0
    %2505 = vmatprep.subr.bf16.mxu0 0
    %2506 = vmatpush1.bf16.msra.mxu0 0
    %2507 = vmatprep.subr.bf16.mxu0 0
    %2508 = vmatpush1.bf16.msra.mxu0 0
    %2509 = vmatprep.subr.bf16.mxu0 0
    %2510 = vmatpush1.bf16.msra.mxu0 0
    %2511 = vmatprep.subr.bf16.mxu0 0
    %2512 = vmatpush1.bf16.msra.mxu0 0
    %2513 = vmatprep.subr.bf16.mxu0 0
    %2514 = vmatpush1.bf16.msra.mxu0 0
    %2515 = vmatprep.subr.bf16.mxu0 0
    %2516 = vmatpush1.bf16.msra.mxu0 0
    %2517 = vmatprep.mubr.bf16.mxu0 0
    %2518 = vmatmul.mubr.bf16.gmra.mrb[0].mxu0 %v2401
    %v2519 = vpop.f32.mrb[0].mxu0
    %v2520 = vadd.f32 %v1080, %v2519
    %v2521 = vpop.f32.mrb[0].mxu0
    %v2522 = vadd.f32 %v1082, %v2521
    %v2523 = vpop.f32.mrb[0].mxu0
    %v2524 = vpop.f32.mrb[0].mxu0
    %2525 = vdwg.mxu0
    %2526 = vmatprep.subr.bf16.mxu0 %v2343
    %2527 = vmatpush1.bf16.msra.mxu0 %v2342
    %2528 = vmatprep.subr.bf16.mxu0 %v2351
    %2529 = vmatpush1.bf16.msra.mxu0 %v2350
    %2530 = vmatprep.subr.bf16.mxu0 %v2359
    %2531 = vmatpush1.bf16.msra.mxu0 %v2358
    %2532 = vmatprep.subr.bf16.mxu0 %v2367
    %2533 = vmatpush1.bf16.msra.mxu0 %v2366
    %2534 = vmatprep.subr.bf16.mxu0 0
    %2535 = vmatpush1.bf16.msra.mxu0 0
    %2536 = vmatprep.subr.bf16.mxu0 0
    %2537 = vmatpush1.bf16.msra.mxu0 0
    %2538 = vmatprep.subr.bf16.mxu0 0
    %2539 = vmatpush1.bf16.msra.mxu0 0
    %2540 = vmatprep.subr.bf16.mxu0 0
    %2541 = vmatpush1.bf16.msra.mxu0 0
    %2542 = vmatprep.subr.bf16.mxu0 0
    %2543 = vmatpush1.bf16.msra.mxu0 0
    %2544 = vmatprep.subr.bf16.mxu0 0
    %2545 = vmatpush1.bf16.msra.mxu0 0
    %2546 = vmatprep.subr.bf16.mxu0 0
    %2547 = vmatpush1.bf16.msra.mxu0 0
    %2548 = vmatprep.subr.bf16.mxu0 0
    %2549 = vmatpush1.bf16.msra.mxu0 0
    %2550 = vmatprep.subr.bf16.mxu0 0
    %2551 = vmatpush1.bf16.msra.mxu0 0
    %2552 = vmatprep.subr.bf16.mxu0 0
    %2553 = vmatpush1.bf16.msra.mxu0 0
    %2554 = vmatprep.subr.bf16.mxu0 0
    %2555 = vmatpush1.bf16.msra.mxu0 0
    %2556 = vmatprep.subr.bf16.mxu0 0
    %2557 = vmatpush1.bf16.msra.mxu0 0
    %2558 = vmatprep.mubr.bf16.mxu0 0
    %2559 = vmatmul.mubr.bf16.gmra.mrb[0].mxu0 %v2401
    %v2560 = vpop.f32.mrb[0].mxu0
    %v2561 = vadd.f32 %v1121, %v2560
    %v2562 = vpop.f32.mrb[0].mxu0
    %v2563 = vadd.f32 %v1123, %v2562
    %v2564 = vpop.f32.mrb[0].mxu0
    %v2565 = vpop.f32.mrb[0].mxu0
    %2566 = vdwg.mxu0
    %v2567 = vrot.slane %v340, 2
    %v2600 = vunpack.c.l.b16 %v1127
    %v2601 = vunpack.c.h.b16 %v1127
    %v2602 = vunpack.c.l.b16 %v1128
    %v2603 = vunpack.c.h.b16 %v1128
    %v2604 = vunpack.c.l.b16 %v1129
    %v2605 = vunpack.c.h.b16 %v1129
    %v2606 = vunpack.c.l.b16 %v1130
    %v2607 = vunpack.c.h.b16 %v1130
    %v2608 = vunpack.c.l.b16 %v1131
    %v2609 = vunpack.c.h.b16 %v1131
    %v2610 = vunpack.c.l.b16 %v1132
    %v2611 = vunpack.c.h.b16 %v1132
    %v2612 = vunpack.c.l.b16 %v1133
    %v2613 = vunpack.c.h.b16 %v1133
    %v2614 = vunpack.c.l.b16 %v1134
    %v2615 = vunpack.c.h.b16 %v1134
    %v2616 = vunpack.c.l.b16 %v1135
    %v2617 = vunpack.c.h.b16 %v1135
    %v2618 = vunpack.c.l.b16 %v1136
    %v2619 = vunpack.c.h.b16 %v1136
    %v2620 = vunpack.c.l.b16 %v1137
    %v2621 = vunpack.c.h.b16 %v1137
    %v2622 = vunpack.c.l.b16 %v1138
    %v2623 = vunpack.c.h.b16 %v1138
    %v2624 = vunpack.c.l.b16 %v1139
    %v2625 = vunpack.c.h.b16 %v1139
    %v2626 = vunpack.c.l.b16 %v1140
    %v2627 = vunpack.c.h.b16 %v1140
    %v2628 = vunpack.c.l.b16 %v1141
    %v2629 = vunpack.c.h.b16 %v1141
    %v2630 = vunpack.c.l.b16 %v1142
    %v2631 = vunpack.c.h.b16 %v1142
    %v2632 = vunpack.c.l.b16 %v1143
    %v2633 = vunpack.c.h.b16 %v1143
    %v2634 = vunpack.c.l.b16 %v1144
    %v2635 = vunpack.c.h.b16 %v1144
    %v2636 = vunpack.c.l.b16 %v1145
    %v2637 = vunpack.c.h.b16 %v1145
    %v2638 = vunpack.c.l.b16 %v1146
    %v2639 = vunpack.c.h.b16 %v1146
    %v2640 = vunpack.c.l.b16 %v1147
    %v2641 = vunpack.c.h.b16 %v1147
    %v2642 = vunpack.c.l.b16 %v1148
    %v2643 = vunpack.c.h.b16 %v1148
    %v2644 = vunpack.c.l.b16 %v1149
    %v2645 = vunpack.c.h.b16 %v1149
    %v2646 = vunpack.c.l.b16 %v1150
    %v2647 = vunpack.c.h.b16 %v1150
    %v2648 = vunpack.c.l.b16 %v1151
    %v2649 = vunpack.c.h.b16 %v1151
    %v2650 = vunpack.c.l.b16 %v1152
    %v2651 = vunpack.c.h.b16 %v1152
    %v2652 = vunpack.c.l.b16 %v1153
    %v2653 = vunpack.c.h.b16 %v1153
    %v2654 = vunpack.c.l.b16 %v1154
    %v2655 = vunpack.c.h.b16 %v1154
    %v2656 = vunpack.c.l.b16 %v1155
    %v2657 = vunpack.c.h.b16 %v1155
    %v2658 = vunpack.c.l.b16 %v1156
    %v2659 = vunpack.c.h.b16 %v1156
    %v2660 = vunpack.c.l.b16 %v1157
    %v2661 = vunpack.c.h.b16 %v1157
    %v2662 = vunpack.c.l.b16 %v1158
    %v2663 = vunpack.c.h.b16 %v1158
    %v2664 = vpack.c.b16 %v2608, %v2600
    %v2665 = vpack.c.b16 %v2609, %v2601
    %v2666 = vpack.c.b16 %v2610, %v2602
    %v2667 = vpack.c.b16 %v2611, %v2603
    %v2668 = vpack.c.b16 %v2612, %v2604
    %v2669 = vpack.c.b16 %v2613, %v2605
    %v2670 = vpack.c.b16 %v2614, %v2606
    %v2671 = vpack.c.b16 %v2615, %v2607
    %v2672 = vpack.c.b16 %v2624, %v2616
    %v2673 = vpack.c.b16 %v2625, %v2617
    %v2674 = vpack.c.b16 %v2626, %v2618
    %v2675 = vpack.c.b16 %v2627, %v2619
    %v2676 = vpack.c.b16 %v2628, %v2620
    %v2677 = vpack.c.b16 %v2629, %v2621
    %v2678 = vpack.c.b16 %v2630, %v2622
    %v2679 = vpack.c.b16 %v2631, %v2623
    %v2680 = vpack.c.b16 %v2640, %v2632
    %v2681 = vpack.c.b16 %v2641, %v2633
    %v2682 = vpack.c.b16 %v2642, %v2634
    %v2683 = vpack.c.b16 %v2643, %v2635
    %v2684 = vpack.c.b16 %v2644, %v2636
    %v2685 = vpack.c.b16 %v2645, %v2637
    %v2686 = vpack.c.b16 %v2646, %v2638
    %v2687 = vpack.c.b16 %v2647, %v2639
    %v2688 = vpack.c.b16 %v2656, %v2648
    %v2689 = vpack.c.b16 %v2657, %v2649
    %v2690 = vpack.c.b16 %v2658, %v2650
    %v2691 = vpack.c.b16 %v2659, %v2651
    %v2692 = vpack.c.b16 %v2660, %v2652
    %v2693 = vpack.c.b16 %v2661, %v2653
    %v2694 = vpack.c.b16 %v2662, %v2654
    %v2695 = vpack.c.b16 %v2663, %v2655
    %v2729 = vsel %vm160, %v2567, 0
    %2731 = vmatprep.subr.bf16.mxu0 %v2665
    %2732 = vmatpush1.bf16.msra.mxu0 %v2664
    %2733 = vmatprep.subr.bf16.mxu0 %v2673
    %2734 = vmatpush1.bf16.msra.mxu0 %v2672
    %2735 = vmatprep.subr.bf16.mxu0 %v2681
    %2736 = vmatpush1.bf16.msra.mxu0 %v2680
    %2737 = vmatprep.subr.bf16.mxu0 %v2689
    %2738 = vmatpush1.bf16.msra.mxu0 %v2688
    %2739 = vmatprep.subr.bf16.mxu0 0
    %2740 = vmatpush1.bf16.msra.mxu0 0
    %2741 = vmatprep.subr.bf16.mxu0 0
    %2742 = vmatpush1.bf16.msra.mxu0 0
    %2743 = vmatprep.subr.bf16.mxu0 0
    %2744 = vmatpush1.bf16.msra.mxu0 0
    %2745 = vmatprep.subr.bf16.mxu0 0
    %2746 = vmatpush1.bf16.msra.mxu0 0
    %2747 = vmatprep.subr.bf16.mxu0 0
    %2748 = vmatpush1.bf16.msra.mxu0 0
    %2749 = vmatprep.subr.bf16.mxu0 0
    %2750 = vmatpush1.bf16.msra.mxu0 0
    %2751 = vmatprep.subr.bf16.mxu0 0
    %2752 = vmatpush1.bf16.msra.mxu0 0
    %2753 = vmatprep.subr.bf16.mxu0 0
    %2754 = vmatpush1.bf16.msra.mxu0 0
    %2755 = vmatprep.subr.bf16.mxu0 0
    %2756 = vmatpush1.bf16.msra.mxu0 0
    %2757 = vmatprep.subr.bf16.mxu0 0
    %2758 = vmatpush1.bf16.msra.mxu0 0
    %2759 = vmatprep.subr.bf16.mxu0 0
    %2760 = vmatpush1.bf16.msra.mxu0 0
    %2761 = vmatprep.subr.bf16.mxu0 0
    %2762 = vmatpush1.bf16.msra.mxu0 0
    %2763 = vmatprep.mubr.bf16.mxu0 0
    %2764 = vmatmul.mubr.bf16.gmra.mrb[0].mxu0 %v2729
    %v2765 = vpop.f32.mrb[0].mxu0
    %v2766 = vadd.f32 %v1390, %v2765
    %v2767 = vpop.f32.mrb[0].mxu0
    %v2768 = vadd.f32 %v1392, %v2767
    %v2769 = vpop.f32.mrb[0].mxu0
    %v2770 = vpop.f32.mrb[0].mxu0
    %2771 = vdwg.mxu0
    %2772 = vmatprep.subr.bf16.mxu0 %v2667
    %2773 = vmatpush1.bf16.msra.mxu0 %v2666
    %2774 = vmatprep.subr.bf16.mxu0 %v2675
    %2775 = vmatpush1.bf16.msra.mxu0 %v2674
    %2776 = vmatprep.subr.bf16.mxu0 %v2683
    %2777 = vmatpush1.bf16.msra.mxu0 %v2682
    %2778 = vmatprep.subr.bf16.mxu0 %v2691
    %2779 = vmatpush1.bf16.msra.mxu0 %v2690
    %2780 = vmatprep.subr.bf16.mxu0 0
    %2781 = vmatpush1.bf16.msra.mxu0 0
    %2782 = vmatprep.subr.bf16.mxu0 0
    %2783 = vmatpush1.bf16.msra.mxu0 0
    %2784 = vmatprep.subr.bf16.mxu0 0
    %2785 = vmatpush1.bf16.msra.mxu0 0
    %2786 = vmatprep.subr.bf16.mxu0 0
    %2787 = vmatpush1.bf16.msra.mxu0 0
    %2788 = vmatprep.subr.bf16.mxu0 0
    %2789 = vmatpush1.bf16.msra.mxu0 0
    %2790 = vmatprep.subr.bf16.mxu0 0
    %2791 = vmatpush1.bf16.msra.mxu0 0
    %2792 = vmatprep.subr.bf16.mxu0 0
    %2793 = vmatpush1.bf16.msra.mxu0 0
    %2794 = vmatprep.subr.bf16.mxu0 0
    %2795 = vmatpush1.bf16.msra.mxu0 0
    %2796 = vmatprep.subr.bf16.mxu0 0
    %2797 = vmatpush1.bf16.msra.mxu0 0
    %2798 = vmatprep.subr.bf16.mxu0 0
    %2799 = vmatpush1.bf16.msra.mxu0 0
    %2800 = vmatprep.subr.bf16.mxu0 0
    %2801 = vmatpush1.bf16.msra.mxu0 0
    %2802 = vmatprep.subr.bf16.mxu0 0
    %2803 = vmatpush1.bf16.msra.mxu0 0
    %2804 = vmatprep.mubr.bf16.mxu0 0
    %2805 = vmatmul.mubr.bf16.gmra.mrb[0].mxu0 %v2729
    %v2806 = vpop.f32.mrb[0].mxu0
    %v2807 = vadd.f32 %v1431, %v2806
    %v2808 = vpop.f32.mrb[0].mxu0
    %v2809 = vadd.f32 %v1433, %v2808
    %v2810 = vpop.f32.mrb[0].mxu0
    %v2811 = vpop.f32.mrb[0].mxu0
    %2812 = vdwg.mxu0
    %2813 = vmatprep.subr.bf16.mxu0 %v2669
    %2814 = vmatpush1.bf16.msra.mxu0 %v2668
    %2815 = vmatprep.subr.bf16.mxu0 %v2677
    %2816 = vmatpush1.bf16.msra.mxu0 %v2676
    %2817 = vmatprep.subr.bf16.mxu0 %v2685
    %2818 = vmatpush1.bf16.msra.mxu0 %v2684
    %2819 = vmatprep.subr.bf16.mxu0 %v2693
    %2820 = vmatpush1.bf16.msra.mxu0 %v2692
    %2821 = vmatprep.subr.bf16.mxu0 0
    %2822 = vmatpush1.bf16.msra.mxu0 0
    %2823 = vmatprep.subr.bf16.mxu0 0
    %2824 = vmatpush1.bf16.msra.mxu0 0
    %2825 = vmatprep.subr.bf16.mxu0 0
    %2826 = vmatpush1.bf16.msra.mxu0 0
    %2827 = vmatprep.subr.bf16.mxu0 0
    %2828 = vmatpush1.bf16.msra.mxu0 0
    %2829 = vmatprep.subr.bf16.mxu0 0
    %2830 = vmatpush1.bf16.msra.mxu0 0
    %2831 = vmatprep.subr.bf16.mxu0 0
    %2832 = vmatpush1.bf16.msra.mxu0 0
    %2833 = vmatprep.subr.bf16.mxu0 0
    %2834 = vmatpush1.bf16.msra.mxu0 0
    %2835 = vmatprep.subr.bf16.mxu0 0
    %2836 = vmatpush1.bf16.msra.mxu0 0
    %2837 = vmatprep.subr.bf16.mxu0 0
    %2838 = vmatpush1.bf16.msra.mxu0 0
    %2839 = vmatprep.subr.bf16.mxu0 0
    %2840 = vmatpush1.bf16.msra.mxu0 0
    %2841 = vmatprep.subr.bf16.mxu0 0
    %2842 = vmatpush1.bf16.msra.mxu0 0
    %2843 = vmatprep.subr.bf16.mxu0 0
    %2844 = vmatpush1.bf16.msra.mxu0 0
    %2845 = vmatprep.mubr.bf16.mxu0 0
    %2846 = vmatmul.mubr.bf16.gmra.mrb[0].mxu0 %v2729
    %v2847 = vpop.f32.mrb[0].mxu0
    %v2848 = vadd.f32 %v1472, %v2847
    %v2849 = vpop.f32.mrb[0].mxu0
    %v2850 = vadd.f32 %v1474, %v2849
    %v2851 = vpop.f32.mrb[0].mxu0
    %v2852 = vpop.f32.mrb[0].mxu0
    %2853 = vdwg.mxu0
    %2854 = vmatprep.subr.bf16.mxu0 %v2671
    %2855 = vmatpush1.bf16.msra.mxu0 %v2670
    %2856 = vmatprep.subr.bf16.mxu0 %v2679
    %2857 = vmatpush1.bf16.msra.mxu0 %v2678
    %2858 = vmatprep.subr.bf16.mxu0 %v2687
    %2859 = vmatpush1.bf16.msra.mxu0 %v2686
    %2860 = vmatprep.subr.bf16.mxu0 %v2695
    %2861 = vmatpush1.bf16.msra.mxu0 %v2694
    %2862 = vmatprep.subr.bf16.mxu0 0
    %2863 = vmatpush1.bf16.msra.mxu0 0
    %2864 = vmatprep.subr.bf16.mxu0 0
    %2865 = vmatpush1.bf16.msra.mxu0 0
    %2866 = vmatprep.subr.bf16.mxu0 0
    %2867 = vmatpush1.bf16.msra.mxu0 0
    %2868 = vmatprep.subr.bf16.mxu0 0
    %2869 = vmatpush1.bf16.msra.mxu0 0
    %2870 = vmatprep.subr.bf16.mxu0 0
    %2871 = vmatpush1.bf16.msra.mxu0 0
    %2872 = vmatprep.subr.bf16.mxu0 0
    %2873 = vmatpush1.bf16.msra.mxu0 0
    %2874 = vmatprep.subr.bf16.mxu0 0
    %2875 = vmatpush1.bf16.msra.mxu0 0
    %2876 = vmatprep.subr.bf16.mxu0 0
    %2877 = vmatpush1.bf16.msra.mxu0 0
    %2878 = vmatprep.subr.bf16.mxu0 0
    %2879 = vmatpush1.bf16.msra.mxu0 0
    %2880 = vmatprep.subr.bf16.mxu0 0
    %2881 = vmatpush1.bf16.msra.mxu0 0
    %2882 = vmatprep.subr.bf16.mxu0 0
    %2883 = vmatpush1.bf16.msra.mxu0 0
    %2884 = vmatprep.subr.bf16.mxu0 0
    %2885 = vmatpush1.bf16.msra.mxu0 0
    %2886 = vmatprep.mubr.bf16.mxu0 0
    %2887 = vmatmul.mubr.bf16.gmra.mrb[0].mxu0 %v2729
    %v2888 = vpop.f32.mrb[0].mxu0
    %v2889 = vadd.f32 %v1513, %v2888
    %v2890 = vpop.f32.mrb[0].mxu0
    %v2891 = vadd.f32 %v1515, %v2890
    %v2892 = vpop.f32.mrb[0].mxu0
    %v2893 = vpop.f32.mrb[0].mxu0
    %2894 = vdwg.mxu0
    %v2895 = vrot.slane %v340, 3
    %v2928 = vunpack.c.l.b16 %v1519
    %v2929 = vunpack.c.h.b16 %v1519
    %v2930 = vunpack.c.l.b16 %v1520
    %v2931 = vunpack.c.h.b16 %v1520
    %v2932 = vunpack.c.l.b16 %v1521
    %v2933 = vunpack.c.h.b16 %v1521
    %v2934 = vunpack.c.l.b16 %v1522
    %v2935 = vunpack.c.h.b16 %v1522
    %v2936 = vunpack.c.l.b16 %v1523
    %v2937 = vunpack.c.h.b16 %v1523
    %v2938 = vunpack.c.l.b16 %v1524
    %v2939 = vunpack.c.h.b16 %v1524
    %v2940 = vunpack.c.l.b16 %v1525
    %v2941 = vunpack.c.h.b16 %v1525
    %v2942 = vunpack.c.l.b16 %v1526
    %v2943 = vunpack.c.h.b16 %v1526
    %v2944 = vunpack.c.l.b16 %v1527
    %v2945 = vunpack.c.h.b16 %v1527
    %v2946 = vunpack.c.l.b16 %v1528
    %v2947 = vunpack.c.h.b16 %v1528
    %v2948 = vunpack.c.l.b16 %v1529
    %v2949 = vunpack.c.h.b16 %v1529
    %v2950 = vunpack.c.l.b16 %v1530
    %v2951 = vunpack.c.h.b16 %v1530
    %v2952 = vunpack.c.l.b16 %v1531
    %v2953 = vunpack.c.h.b16 %v1531
    %v2954 = vunpack.c.l.b16 %v1532
    %v2955 = vunpack.c.h.b16 %v1532
    %v2956 = vunpack.c.l.b16 %v1533
    %v2957 = vunpack.c.h.b16 %v1533
    %v2958 = vunpack.c.l.b16 %v1534
    %v2959 = vunpack.c.h.b16 %v1534
    %v2960 = vunpack.c.l.b16 %v1535
    %v2961 = vunpack.c.h.b16 %v1535
    %v2962 = vunpack.c.l.b16 %v1536
    %v2963 = vunpack.c.h.b16 %v1536
    %v2964 = vunpack.c.l.b16 %v1537
    %v2965 = vunpack.c.h.b16 %v1537
    %v2966 = vunpack.c.l.b16 %v1538
    %v2967 = vunpack.c.h.b16 %v1538
    %v2968 = vunpack.c.l.b16 %v1539
    %v2969 = vunpack.c.h.b16 %v1539
    %v2970 = vunpack.c.l.b16 %v1540
    %v2971 = vunpack.c.h.b16 %v1540
    %v2972 = vunpack.c.l.b16 %v1541
    %v2973 = vunpack.c.h.b16 %v1541
    %v2974 = vunpack.c.l.b16 %v1542
    %v2975 = vunpack.c.h.b16 %v1542
    %v2976 = vunpack.c.l.b16 %v1543
    %v2977 = vunpack.c.h.b16 %v1543
    %v2978 = vunpack.c.l.b16 %v1544
    %v2979 = vunpack.c.h.b16 %v1544
    %v2980 = vunpack.c.l.b16 %v1545
    %v2981 = vunpack.c.h.b16 %v1545
    %v2982 = vunpack.c.l.b16 %v1546
    %v2983 = vunpack.c.h.b16 %v1546
    %v2984 = vunpack.c.l.b16 %v1547
    %v2985 = vunpack.c.h.b16 %v1547
    %v2986 = vunpack.c.l.b16 %v1548
    %v2987 = vunpack.c.h.b16 %v1548
    %v2988 = vunpack.c.l.b16 %v1549
    %v2989 = vunpack.c.h.b16 %v1549
    %v2990 = vunpack.c.l.b16 %v1550
    %v2991 = vunpack.c.h.b16 %v1550
    %v2992 = vpack.c.b16 %v2936, %v2928
    %v2993 = vpack.c.b16 %v2937, %v2929
    %v2994 = vpack.c.b16 %v2938, %v2930
    %v2995 = vpack.c.b16 %v2939, %v2931
    %v2996 = vpack.c.b16 %v2940, %v2932
    %v2997 = vpack.c.b16 %v2941, %v2933
    %v2998 = vpack.c.b16 %v2942, %v2934
    %v2999 = vpack.c.b16 %v2943, %v2935
    %v3000 = vpack.c.b16 %v2952, %v2944
    %v3001 = vpack.c.b16 %v2953, %v2945
    %v3002 = vpack.c.b16 %v2954, %v2946
    %v3003 = vpack.c.b16 %v2955, %v2947
    %v3004 = vpack.c.b16 %v2956, %v2948
    %v3005 = vpack.c.b16 %v2957, %v2949
    %v3006 = vpack.c.b16 %v2958, %v2950
    %v3007 = vpack.c.b16 %v2959, %v2951
    %v3008 = vpack.c.b16 %v2968, %v2960
    %v3009 = vpack.c.b16 %v2969, %v2961
    %v3010 = vpack.c.b16 %v2970, %v2962
    %v3011 = vpack.c.b16 %v2971, %v2963
    %v3012 = vpack.c.b16 %v2972, %v2964
    %v3013 = vpack.c.b16 %v2973, %v2965
    %v3014 = vpack.c.b16 %v2974, %v2966
    %v3015 = vpack.c.b16 %v2975, %v2967
    %v3016 = vpack.c.b16 %v2984, %v2976
    %v3017 = vpack.c.b16 %v2985, %v2977
    %v3018 = vpack.c.b16 %v2986, %v2978
    %v3019 = vpack.c.b16 %v2987, %v2979
    %v3020 = vpack.c.b16 %v2988, %v2980
    %v3021 = vpack.c.b16 %v2989, %v2981
    %v3022 = vpack.c.b16 %v2990, %v2982
    %v3023 = vpack.c.b16 %v2991, %v2983
    %v3057 = vsel %vm160, %v2895, 0
    %3059 = vmatprep.subr.bf16.mxu0 %v2993
    %3060 = vmatpush1.bf16.msra.mxu0 %v2992
    %3061 = vmatprep.subr.bf16.mxu0 %v3001
    %3062 = vmatpush1.bf16.msra.mxu0 %v3000
    %3063 = vmatprep.subr.bf16.mxu0 %v3009
    %3064 = vmatpush1.bf16.msra.mxu0 %v3008
    %3065 = vmatprep.subr.bf16.mxu0 %v3017
    %3066 = vmatpush1.bf16.msra.mxu0 %v3016
    %3067 = vmatprep.subr.bf16.mxu0 0
    %3068 = vmatpush1.bf16.msra.mxu0 0
    %3069 = vmatprep.subr.bf16.mxu0 0
    %3070 = vmatpush1.bf16.msra.mxu0 0
    %3071 = vmatprep.subr.bf16.mxu0 0
    %3072 = vmatpush1.bf16.msra.mxu0 0
    %3073 = vmatprep.subr.bf16.mxu0 0
    %3074 = vmatpush1.bf16.msra.mxu0 0
    %3075 = vmatprep.subr.bf16.mxu0 0
    %3076 = vmatpush1.bf16.msra.mxu0 0
    %3077 = vmatprep.subr.bf16.mxu0 0
    %3078 = vmatpush1.bf16.msra.mxu0 0
    %3079 = vmatprep.subr.bf16.mxu0 0
    %3080 = vmatpush1.bf16.msra.mxu0 0
    %3081 = vmatprep.subr.bf16.mxu0 0
    %3082 = vmatpush1.bf16.msra.mxu0 0
    %3083 = vmatprep.subr.bf16.mxu0 0
    %3084 = vmatpush1.bf16.msra.mxu0 0
    %3085 = vmatprep.subr.bf16.mxu0 0
    %3086 = vmatpush1.bf16.msra.mxu0 0
    %3087 = vmatprep.subr.bf16.mxu0 0
    %3088 = vmatpush1.bf16.msra.mxu0 0
    %3089 = vmatprep.subr.bf16.mxu0 0
    %3090 = vmatpush1.bf16.msra.mxu0 0
    %3091 = vmatprep.mubr.bf16.mxu0 0
    %3092 = vmatmul.mubr.bf16.gmra.mrb[0].mxu0 %v3057
    %v3093 = vpop.f32.mrb[0].mxu0
    %v3094 = vadd.f32 %v1782, %v3093
    %v3095 = vpop.f32.mrb[0].mxu0
    %v3096 = vadd.f32 %v1784, %v3095
    %v3097 = vpop.f32.mrb[0].mxu0
    %v3098 = vpop.f32.mrb[0].mxu0
    %3099 = vdwg.mxu0
    %3100 = vmatprep.subr.bf16.mxu0 %v2995
    %3101 = vmatpush1.bf16.msra.mxu0 %v2994
    %3102 = vmatprep.subr.bf16.mxu0 %v3003
    %3103 = vmatpush1.bf16.msra.mxu0 %v3002
    %3104 = vmatprep.subr.bf16.mxu0 %v3011
    %3105 = vmatpush1.bf16.msra.mxu0 %v3010
    %3106 = vmatprep.subr.bf16.mxu0 %v3019
    %3107 = vmatpush1.bf16.msra.mxu0 %v3018
    %3108 = vmatprep.subr.bf16.mxu0 0
    %3109 = vmatpush1.bf16.msra.mxu0 0
    %3110 = vmatprep.subr.bf16.mxu0 0
    %3111 = vmatpush1.bf16.msra.mxu0 0
    %3112 = vmatprep.subr.bf16.mxu0 0
    %3113 = vmatpush1.bf16.msra.mxu0 0
    %3114 = vmatprep.subr.bf16.mxu0 0
    %3115 = vmatpush1.bf16.msra.mxu0 0
    %3116 = vmatprep.subr.bf16.mxu0 0
    %3117 = vmatpush1.bf16.msra.mxu0 0
    %3118 = vmatprep.subr.bf16.mxu0 0
    %3119 = vmatpush1.bf16.msra.mxu0 0
    %3120 = vmatprep.subr.bf16.mxu0 0
    %3121 = vmatpush1.bf16.msra.mxu0 0
    %3122 = vmatprep.subr.bf16.mxu0 0
    %3123 = vmatpush1.bf16.msra.mxu0 0
    %3124 = vmatprep.subr.bf16.mxu0 0
    %3125 = vmatpush1.bf16.msra.mxu0 0
    %3126 = vmatprep.subr.bf16.mxu0 0
    %3127 = vmatpush1.bf16.msra.mxu0 0
    %3128 = vmatprep.subr.bf16.mxu0 0
    %3129 = vmatpush1.bf16.msra.mxu0 0
    %3130 = vmatprep.subr.bf16.mxu0 0
    %3131 = vmatpush1.bf16.msra.mxu0 0
    %3132 = vmatprep.mubr.bf16.mxu0 0
    %3133 = vmatmul.mubr.bf16.gmra.mrb[0].mxu0 %v3057
    %v3134 = vpop.f32.mrb[0].mxu0
    %v3135 = vadd.f32 %v1823, %v3134
    %v3136 = vpop.f32.mrb[0].mxu0
    %v3137 = vadd.f32 %v1825, %v3136
    %v3138 = vpop.f32.mrb[0].mxu0
    %v3139 = vpop.f32.mrb[0].mxu0
    %3140 = vdwg.mxu0
    %3141 = vmatprep.subr.bf16.mxu0 %v2997
    %3142 = vmatpush1.bf16.msra.mxu0 %v2996
    %3143 = vmatprep.subr.bf16.mxu0 %v3005
    %3144 = vmatpush1.bf16.msra.mxu0 %v3004
    %3145 = vmatprep.subr.bf16.mxu0 %v3013
    %3146 = vmatpush1.bf16.msra.mxu0 %v3012
    %3147 = vmatprep.subr.bf16.mxu0 %v3021
    %3148 = vmatpush1.bf16.msra.mxu0 %v3020
    %3149 = vmatprep.subr.bf16.mxu0 0
    %3150 = vmatpush1.bf16.msra.mxu0 0
    %3151 = vmatprep.subr.bf16.mxu0 0
    %3152 = vmatpush1.bf16.msra.mxu0 0
    %3153 = vmatprep.subr.bf16.mxu0 0
    %3154 = vmatpush1.bf16.msra.mxu0 0
    %3155 = vmatprep.subr.bf16.mxu0 0
    %3156 = vmatpush1.bf16.msra.mxu0 0
    %3157 = vmatprep.subr.bf16.mxu0 0
    %3158 = vmatpush1.bf16.msra.mxu0 0
    %3159 = vmatprep.subr.bf16.mxu0 0
    %3160 = vmatpush1.bf16.msra.mxu0 0
    %3161 = vmatprep.subr.bf16.mxu0 0
    %3162 = vmatpush1.bf16.msra.mxu0 0
    %3163 = vmatprep.subr.bf16.mxu0 0
    %3164 = vmatpush1.bf16.msra.mxu0 0
    %3165 = vmatprep.subr.bf16.mxu0 0
    %3166 = vmatpush1.bf16.msra.mxu0 0
    %3167 = vmatprep.subr.bf16.mxu0 0
    %3168 = vmatpush1.bf16.msra.mxu0 0
    %3169 = vmatprep.subr.bf16.mxu0 0
    %3170 = vmatpush1.bf16.msra.mxu0 0
    %3171 = vmatprep.subr.bf16.mxu0 0
    %3172 = vmatpush1.bf16.msra.mxu0 0
    %3173 = vmatprep.mubr.bf16.mxu0 0
    %3174 = vmatmul.mubr.bf16.gmra.mrb[0].mxu0 %v3057
    %v3175 = vpop.f32.mrb[0].mxu0
    %v3176 = vadd.f32 %v1864, %v3175
    %v3177 = vpop.f32.mrb[0].mxu0
    %v3178 = vadd.f32 %v1866, %v3177
    %v3179 = vpop.f32.mrb[0].mxu0
    %v3180 = vpop.f32.mrb[0].mxu0
    %3181 = vdwg.mxu0
    %3182 = vmatprep.subr.bf16.mxu0 %v2999
    %3183 = vmatpush1.bf16.msra.mxu0 %v2998
    %3184 = vmatprep.subr.bf16.mxu0 %v3007
    %3185 = vmatpush1.bf16.msra.mxu0 %v3006
    %3186 = vmatprep.subr.bf16.mxu0 %v3015
    %3187 = vmatpush1.bf16.msra.mxu0 %v3014
    %3188 = vmatprep.subr.bf16.mxu0 %v3023
    %3189 = vmatpush1.bf16.msra.mxu0 %v3022
    %3190 = vmatprep.subr.bf16.mxu0 0
    %3191 = vmatpush1.bf16.msra.mxu0 0
    %3192 = vmatprep.subr.bf16.mxu0 0
    %3193 = vmatpush1.bf16.msra.mxu0 0
    %3194 = vmatprep.subr.bf16.mxu0 0
    %3195 = vmatpush1.bf16.msra.mxu0 0
    %3196 = vmatprep.subr.bf16.mxu0 0
    %3197 = vmatpush1.bf16.msra.mxu0 0
    %3198 = vmatprep.subr.bf16.mxu0 0
    %3199 = vmatpush1.bf16.msra.mxu0 0
    %3200 = vmatprep.subr.bf16.mxu0 0
    %3201 = vmatpush1.bf16.msra.mxu0 0
    %3202 = vmatprep.subr.bf16.mxu0 0
    %3203 = vmatpush1.bf16.msra.mxu0 0
    %3204 = vmatprep.subr.bf16.mxu0 0
    %3205 = vmatpush1.bf16.msra.mxu0 0
    %3206 = vmatprep.subr.bf16.mxu0 0
    %3207 = vmatpush1.bf16.msra.mxu0 0
    %3208 = vmatprep.subr.bf16.mxu0 0
    %3209 = vmatpush1.bf16.msra.mxu0 0
    %3210 = vmatprep.subr.bf16.mxu0 0
    %3211 = vmatpush1.bf16.msra.mxu0 0
    %3212 = vmatprep.subr.bf16.mxu0 0
    %3213 = vmatpush1.bf16.msra.mxu0 0
    %3214 = vmatprep.mubr.bf16.mxu0 0
    %3215 = vmatmul.mubr.bf16.gmra.mrb[0].mxu0 %v3057
    %v3216 = vpop.f32.mrb[0].mxu0
    %v3217 = vadd.f32 %v1905, %v3216
    %v3218 = vpop.f32.mrb[0].mxu0
    %v3219 = vadd.f32 %v1907, %v3218
    %v3220 = vpop.f32.mrb[0].mxu0
    %v3221 = vpop.f32.mrb[0].mxu0
    %3222 = vdwg.mxu0
    %v3223 = vadd.f32 %v2109, %v2438
    %v3224 = vadd.f32 %v2111, %v2440
    %v3225 = vadd.f32 %v2150, %v2479
    %v3226 = vadd.f32 %v2152, %v2481
    %v3227 = vadd.f32 %v2191, %v2520
    %v3228 = vadd.f32 %v2193, %v2522
    %v3229 = vadd.f32 %v2232, %v2561
    %v3230 = vadd.f32 %v2234, %v2563
    %v3231 = vadd.f32 %v2766, %v3094
    %v3232 = vadd.f32 %v2768, %v3096
    %v3233 = vadd.f32 %v2807, %v3135
    %v3234 = vadd.f32 %v2809, %v3137
    %v3235 = vadd.f32 %v2848, %v3176
    %v3236 = vadd.f32 %v2850, %v3178
    %v3237 = vadd.f32 %v2889, %v3217
    %v3238 = vadd.f32 %v2891, %v3219
    %v3239 = vadd.f32 %v3223, %v3231
    %v3240 = vadd.f32 %v3224, %v3232
    %v3241 = vadd.f32 %v3225, %v3233
    %v3242 = vadd.f32 %v3226, %v3234
    %v3243 = vadd.f32 %v3227, %v3235
    %v3244 = vadd.f32 %v3228, %v3236
    %v3245 = vadd.f32 %v3229, %v3237
    %v3246 = vadd.f32 %v3230, %v3238
    %v3248 = vlaneseq
    %v3249 = vshrl.u32 %v3248, 7
    %v3250 = vsub.s32 0, %v3249
    %v3251 = vrot.slane %v1911, %v3250
    %v3252 = vlaneseq
    %v3253 = vshrl.u32 %v3252, 7
    %v3254 = vsub.s32 1, %v3253
    %v3255 = vrot.slane %v1911, %v3254
    %v3256 = vlaneseq
    %v3257 = vshrl.u32 %v3256, 7
    %v3258 = vsub.s32 2, %v3257
    %v3259 = vrot.slane %v1911, %v3258
    %v3260 = vlaneseq
    %v3261 = vshrl.u32 %v3260, 7
    %v3262 = vsub.s32 3, %v3261
    %v3263 = vrot.slane %v1911, %v3262
    %v3264 = vlaneseq
    %v3265 = vshrl.u32 %v3264, 7
    %v3266 = vsub.s32 4, %v3265
    %v3267 = vrot.slane %v1911, %v3266
    %v3268 = vlaneseq
    %v3269 = vshrl.u32 %v3268, 7
    %v3270 = vsub.s32 5, %v3269
    %v3271 = vrot.slane %v1911, %v3270
    %v3272 = vlaneseq
    %v3273 = vshrl.u32 %v3272, 7
    %v3274 = vsub.s32 6, %v3273
    %v3275 = vrot.slane %v1911, %v3274
    %v3276 = vlaneseq
    %v3277 = vshrl.u32 %v3276, 7
    %v3278 = vsub.s32 7, %v3277
    %v3279 = vrot.slane %v1911, %v3278
    %v3288 = vadd.f32 %v3239, %v3251
    %v3289 = vadd.f32 %v3240, %v3255
    %v3290 = vadd.f32 %v3241, %v3259
    %v3291 = vadd.f32 %v3242, %v3263
    %v3292 = vadd.f32 %v3243, %v3267
    %v3293 = vadd.f32 %v3244, %v3271
    %v3294 = vadd.f32 %v3245, %v3275
    %v3295 = vadd.f32 %v3246, %v3279
    %v3296 = vmax.f32 %v3288, 0.0
    %v3297 = vmax.f32 %v3289, 0.0
    %v3298 = vmax.f32 %v3290, 0.0
    %v3299 = vmax.f32 %v3291, 0.0
    %v3300 = vmax.f32 %v3292, 0.0
    %v3301 = vmax.f32 %v3293, 0.0
    %v3302 = vmax.f32 %v3294, 0.0
    %v3303 = vmax.f32 %v3295, 0.0
    %v3304 = vpack.c.bf16 %v3296, %v3296
    %v3305 = vpack.c.bf16 %v3297, %v3297
    %v3306 = vpack.c.bf16 %v3298, %v3298
    %v3307 = vpack.c.bf16 %v3299, %v3299
    %v3308 = vpack.c.bf16 %v3300, %v3300
    %v3309 = vpack.c.bf16 %v3301, %v3301
    %v3310 = vpack.c.bf16 %v3302, %v3302
    %v3311 = vpack.c.bf16 %v3303, %v3303
    %v3312 = vld [vmem:[%s10] sm:$0xf]
    %v3313 = vld [vmem:[%s10 + $0x4] sm:$0xf]
    %v3314 = vld [vmem:[%s10 + $0x8] sm:$0xf]
    %v3315 = vld [vmem:[%s10 + $0xc] sm:$0xf]
    %v3316 = vld [vmem:[%s10 + $0x10] sm:$0xf]
    %v3317 = vld [vmem:[%s10 + $0x14] sm:$0xf]
    %v3318 = vld [vmem:[%s10 + $0x18] sm:$0xf]
    %v3319 = vld [vmem:[%s10 + $0x1c] sm:$0xf]
    %v3320 = vld [vmem:[%s10 + $0x20] sm:$0xf]
    %v3321 = vld [vmem:[%s10 + $0x24] sm:$0xf]
    %v3322 = vld [vmem:[%s10 + $0x28] sm:$0xf]
    %v3323 = vld [vmem:[%s10 + $0x2c] sm:$0xf]
    %v3324 = vld [vmem:[%s10 + $0x30] sm:$0xf]
    %v3325 = vld [vmem:[%s10 + $0x34] sm:$0xf]
    %v3326 = vld [vmem:[%s10 + $0x38] sm:$0xf]
    %v3327 = vld [vmem:[%s10 + $0x3c] sm:$0xf]
    %v3328 = vld [vmem:[%s10 + $0x40] sm:$0xf]
    %v3329 = vld [vmem:[%s10 + $0x44] sm:$0xf]
    %v3330 = vld [vmem:[%s10 + $0x48] sm:$0xf]
    %v3331 = vld [vmem:[%s10 + $0x4c] sm:$0xf]
    %v3332 = vld [vmem:[%s10 + $0x50] sm:$0xf]
    %v3333 = vld [vmem:[%s10 + $0x54] sm:$0xf]
    %v3334 = vld [vmem:[%s10 + $0x58] sm:$0xf]
    %v3335 = vld [vmem:[%s10 + $0x5c] sm:$0xf]
    %v3336 = vld [vmem:[%s10 + $0x60] sm:$0xf]
    %v3337 = vld [vmem:[%s10 + $0x64] sm:$0xf]
    %v3338 = vld [vmem:[%s10 + $0x68] sm:$0xf]
    %v3339 = vld [vmem:[%s10 + $0x6c] sm:$0xf]
    %v3340 = vld [vmem:[%s10 + $0x70] sm:$0xf]
    %v3341 = vld [vmem:[%s10 + $0x74] sm:$0xf]
    %v3342 = vld [vmem:[%s10 + $0x78] sm:$0xf]
    %v3343 = vld [vmem:[%s10 + $0x7c] sm:$0xf]
    %v3344 = vld [vmem:[%s10 + $0x80] sm:$0xf]
    %v3345 = vld [vmem:[%s10 + $0x84] sm:$0xf]
    %v3346 = vld [vmem:[%s10 + $0x88] sm:$0xf]
    %v3347 = vld [vmem:[%s10 + $0x8c] sm:$0xf]
    %v3348 = vld [vmem:[%s10 + $0x90] sm:$0xf]
    %v3349 = vld [vmem:[%s10 + $0x94] sm:$0xf]
    %v3350 = vld [vmem:[%s10 + $0x98] sm:$0xf]
    %v3351 = vld [vmem:[%s10 + $0x9c] sm:$0xf]
    %v3352 = vld [vmem:[%s10 + $0xa0] sm:$0xf]
    %v3353 = vld [vmem:[%s10 + $0xa4] sm:$0xf]
    %v3354 = vld [vmem:[%s10 + $0xa8] sm:$0xf]
    %v3355 = vld [vmem:[%s10 + $0xac] sm:$0xf]
    %v3356 = vld [vmem:[%s10 + $0xb0] sm:$0xf]
    %v3357 = vld [vmem:[%s10 + $0xb4] sm:$0xf]
    %v3358 = vld [vmem:[%s10 + $0xb8] sm:$0xf]
    %v3359 = vld [vmem:[%s10 + $0xbc] sm:$0xf]
    %v3360 = vld [vmem:[%s10 + $0xc0] sm:$0xf]
    %v3361 = vld [vmem:[%s10 + $0xc4] sm:$0xf]
    %v3362 = vld [vmem:[%s10 + $0xc8] sm:$0xf]
    %v3363 = vld [vmem:[%s10 + $0xcc] sm:$0xf]
    %v3364 = vld [vmem:[%s10 + $0xd0] sm:$0xf]
    %v3365 = vld [vmem:[%s10 + $0xd4] sm:$0xf]
    %v3366 = vld [vmem:[%s10 + $0xd8] sm:$0xf]
    %v3367 = vld [vmem:[%s10 + $0xdc] sm:$0xf]
    %v3368 = vld [vmem:[%s10 + $0xe0] sm:$0xf]
    %v3369 = vld [vmem:[%s10 + $0xe4] sm:$0xf]
    %v3370 = vld [vmem:[%s10 + $0xe8] sm:$0xf]
    %v3371 = vld [vmem:[%s10 + $0xec] sm:$0xf]
    %v3372 = vld [vmem:[%s10 + $0xf0] sm:$0xf]
    %v3373 = vld [vmem:[%s10 + $0xf4] sm:$0xf]
    %v3374 = vld [vmem:[%s10 + $0xf8] sm:$0xf]
    %v3375 = vld [vmem:[%s10 + $0xfc] sm:$0xf]
    %v3376 = vld [vmem:[%s10 + $0x100] sm:$0xf]
    %v3377 = vld [vmem:[%s10 + $0x104] sm:$0xf]
    %v3378 = vld [vmem:[%s10 + $0x108] sm:$0xf]
    %v3379 = vld [vmem:[%s10 + $0x10c] sm:$0xf]
    %v3380 = vld [vmem:[%s10 + $0x110] sm:$0xf]
    %v3381 = vld [vmem:[%s10 + $0x114] sm:$0xf]
    %v3382 = vld [vmem:[%s10 + $0x118] sm:$0xf]
    %v3383 = vld [vmem:[%s10 + $0x11c] sm:$0xf]
    %v3384 = vld [vmem:[%s10 + $0x120] sm:$0xf]
    %v3385 = vld [vmem:[%s10 + $0x124] sm:$0xf]
    %v3386 = vld [vmem:[%s10 + $0x128] sm:$0xf]
    %v3387 = vld [vmem:[%s10 + $0x12c] sm:$0xf]
    %v3388 = vld [vmem:[%s10 + $0x130] sm:$0xf]
    %v3389 = vld [vmem:[%s10 + $0x134] sm:$0xf]
    %v3390 = vld [vmem:[%s10 + $0x138] sm:$0xf]
    %v3391 = vld [vmem:[%s10 + $0x13c] sm:$0xf]
    %v3392 = vld [vmem:[%s10 + $0x140] sm:$0xf]
    %v3393 = vld [vmem:[%s10 + $0x144] sm:$0xf]
    %v3394 = vld [vmem:[%s10 + $0x148] sm:$0xf]
    %v3395 = vld [vmem:[%s10 + $0x14c] sm:$0xf]
    %v3396 = vld [vmem:[%s10 + $0x150] sm:$0xf]
    %v3397 = vld [vmem:[%s10 + $0x154] sm:$0xf]
    %v3398 = vld [vmem:[%s10 + $0x158] sm:$0xf]
    %v3399 = vld [vmem:[%s10 + $0x15c] sm:$0xf]
    %v3400 = vld [vmem:[%s10 + $0x160] sm:$0xf]
    %v3401 = vld [vmem:[%s10 + $0x164] sm:$0xf]
    %v3402 = vld [vmem:[%s10 + $0x168] sm:$0xf]
    %v3403 = vld [vmem:[%s10 + $0x16c] sm:$0xf]
    %v3404 = vld [vmem:[%s10 + $0x170] sm:$0xf]
    %v3405 = vld [vmem:[%s10 + $0x174] sm:$0xf]
    %v3406 = vld [vmem:[%s10 + $0x178] sm:$0xf]
    %v3407 = vld [vmem:[%s10 + $0x17c] sm:$0xf]
    %v3408 = vld [vmem:[%s10 + $0x180] sm:$0xf]
    %v3409 = vld [vmem:[%s10 + $0x184] sm:$0xf]
    %v3410 = vld [vmem:[%s10 + $0x188] sm:$0xf]
    %v3411 = vld [vmem:[%s10 + $0x18c] sm:$0xf]
    %v3412 = vld [vmem:[%s10 + $0x190] sm:$0xf]
    %v3413 = vld [vmem:[%s10 + $0x194] sm:$0xf]
    %v3414 = vld [vmem:[%s10 + $0x198] sm:$0xf]
    %v3415 = vld [vmem:[%s10 + $0x19c] sm:$0xf]
    %v3416 = vld [vmem:[%s10 + $0x1a0] sm:$0xf]
    %v3417 = vld [vmem:[%s10 + $0x1a4] sm:$0xf]
    %v3418 = vld [vmem:[%s10 + $0x1a8] sm:$0xf]
    %v3419 = vld [vmem:[%s10 + $0x1ac] sm:$0xf]
    %v3420 = vld [vmem:[%s10 + $0x1b0] sm:$0xf]
    %v3421 = vld [vmem:[%s10 + $0x1b4] sm:$0xf]
    %v3422 = vld [vmem:[%s10 + $0x1b8] sm:$0xf]
    %v3423 = vld [vmem:[%s10 + $0x1bc] sm:$0xf]
    %v3424 = vld [vmem:[%s10 + $0x1c0] sm:$0xf]
    %v3425 = vld [vmem:[%s10 + $0x1c4] sm:$0xf]
    %v3426 = vld [vmem:[%s10 + $0x1c8] sm:$0xf]
    %v3427 = vld [vmem:[%s10 + $0x1cc] sm:$0xf]
    %v3428 = vld [vmem:[%s10 + $0x1d0] sm:$0xf]
    %v3429 = vld [vmem:[%s10 + $0x1d4] sm:$0xf]
    %v3430 = vld [vmem:[%s10 + $0x1d8] sm:$0xf]
    %v3431 = vld [vmem:[%s10 + $0x1dc] sm:$0xf]
    %v3432 = vld [vmem:[%s10 + $0x1e0] sm:$0xf]
    %v3433 = vld [vmem:[%s10 + $0x1e4] sm:$0xf]
    %v3434 = vld [vmem:[%s10 + $0x1e8] sm:$0xf]
    %v3435 = vld [vmem:[%s10 + $0x1ec] sm:$0xf]
    %v3436 = vld [vmem:[%s10 + $0x1f0] sm:$0xf]
    %v3437 = vld [vmem:[%s10 + $0x1f4] sm:$0xf]
    %v3438 = vld [vmem:[%s10 + $0x1f8] sm:$0xf]
    %v3439 = vld [vmem:[%s10 + $0x1fc] sm:$0xf]
    %v3440 = vld [vmem:[%s11] sm:$0x1]
    %v3569 = vunpack.c.l.b16 %v3312
    %v3570 = vunpack.c.l.b16 %v3313
    %v3571 = vunpack.c.l.b16 %v3314
    %v3572 = vunpack.c.l.b16 %v3315
    %v3573 = vunpack.c.l.b16 %v3316
    %v3574 = vunpack.c.l.b16 %v3317
    %v3575 = vunpack.c.l.b16 %v3318
    %v3576 = vunpack.c.l.b16 %v3319
    %v3577 = vunpack.c.l.b16 %v3320
    %v3578 = vunpack.c.l.b16 %v3321
    %v3579 = vunpack.c.l.b16 %v3322
    %v3580 = vunpack.c.l.b16 %v3323
    %v3581 = vunpack.c.l.b16 %v3324
    %v3582 = vunpack.c.l.b16 %v3325
    %v3583 = vunpack.c.l.b16 %v3326
    %v3584 = vunpack.c.l.b16 %v3327
    %v3585 = vunpack.c.l.b16 %v3328
    %v3586 = vunpack.c.l.b16 %v3329
    %v3587 = vunpack.c.l.b16 %v3330
    %v3588 = vunpack.c.l.b16 %v3331
    %v3589 = vunpack.c.l.b16 %v3332
    %v3590 = vunpack.c.l.b16 %v3333
    %v3591 = vunpack.c.l.b16 %v3334
    %v3592 = vunpack.c.l.b16 %v3335
    %v3593 = vunpack.c.l.b16 %v3336
    %v3594 = vunpack.c.l.b16 %v3337
    %v3595 = vunpack.c.l.b16 %v3338
    %v3596 = vunpack.c.l.b16 %v3339
    %v3597 = vunpack.c.l.b16 %v3340
    %v3598 = vunpack.c.l.b16 %v3341
    %v3599 = vunpack.c.l.b16 %v3342
    %v3600 = vunpack.c.l.b16 %v3343
    %v3601 = vunpack.c.l.b16 %v3344
    %v3602 = vunpack.c.l.b16 %v3345
    %v3603 = vunpack.c.l.b16 %v3346
    %v3604 = vunpack.c.l.b16 %v3347
    %v3605 = vunpack.c.l.b16 %v3348
    %v3606 = vunpack.c.l.b16 %v3349
    %v3607 = vunpack.c.l.b16 %v3350
    %v3608 = vunpack.c.l.b16 %v3351
    %v3609 = vunpack.c.l.b16 %v3352
    %v3610 = vunpack.c.l.b16 %v3353
    %v3611 = vunpack.c.l.b16 %v3354
    %v3612 = vunpack.c.l.b16 %v3355
    %v3613 = vunpack.c.l.b16 %v3356
    %v3614 = vunpack.c.l.b16 %v3357
    %v3615 = vunpack.c.l.b16 %v3358
    %v3616 = vunpack.c.l.b16 %v3359
    %v3617 = vunpack.c.l.b16 %v3360
    %v3618 = vunpack.c.l.b16 %v3361
    %v3619 = vunpack.c.l.b16 %v3362
    %v3620 = vunpack.c.l.b16 %v3363
    %v3621 = vunpack.c.l.b16 %v3364
    %v3622 = vunpack.c.l.b16 %v3365
    %v3623 = vunpack.c.l.b16 %v3366
    %v3624 = vunpack.c.l.b16 %v3367
    %v3625 = vunpack.c.l.b16 %v3368
    %v3626 = vunpack.c.l.b16 %v3369
    %v3627 = vunpack.c.l.b16 %v3370
    %v3628 = vunpack.c.l.b16 %v3371
    %v3629 = vunpack.c.l.b16 %v3372
    %v3630 = vunpack.c.l.b16 %v3373
    %v3631 = vunpack.c.l.b16 %v3374
    %v3632 = vunpack.c.l.b16 %v3375
    %v3633 = vunpack.c.l.b16 %v3376
    %v3634 = vunpack.c.l.b16 %v3377
    %v3635 = vunpack.c.l.b16 %v3378
    %v3636 = vunpack.c.l.b16 %v3379
    %v3637 = vunpack.c.l.b16 %v3380
    %v3638 = vunpack.c.l.b16 %v3381
    %v3639 = vunpack.c.l.b16 %v3382
    %v3640 = vunpack.c.l.b16 %v3383
    %v3641 = vunpack.c.l.b16 %v3384
    %v3642 = vunpack.c.l.b16 %v3385
    %v3643 = vunpack.c.l.b16 %v3386
    %v3644 = vunpack.c.l.b16 %v3387
    %v3645 = vunpack.c.l.b16 %v3388
    %v3646 = vunpack.c.l.b16 %v3389
    %v3647 = vunpack.c.l.b16 %v3390
    %v3648 = vunpack.c.l.b16 %v3391
    %v3649 = vunpack.c.l.b16 %v3392
    %v3650 = vunpack.c.l.b16 %v3393
    %v3651 = vunpack.c.l.b16 %v3394
    %v3652 = vunpack.c.l.b16 %v3395
    %v3653 = vunpack.c.l.b16 %v3396
    %v3654 = vunpack.c.l.b16 %v3397
    %v3655 = vunpack.c.l.b16 %v3398
    %v3656 = vunpack.c.l.b16 %v3399
    %v3657 = vunpack.c.l.b16 %v3400
    %v3658 = vunpack.c.l.b16 %v3401
    %v3659 = vunpack.c.l.b16 %v3402
    %v3660 = vunpack.c.l.b16 %v3403
    %v3661 = vunpack.c.l.b16 %v3404
    %v3662 = vunpack.c.l.b16 %v3405
    %v3663 = vunpack.c.l.b16 %v3406
    %v3664 = vunpack.c.l.b16 %v3407
    %v3665 = vunpack.c.l.b16 %v3408
    %v3666 = vunpack.c.l.b16 %v3409
    %v3667 = vunpack.c.l.b16 %v3410
    %v3668 = vunpack.c.l.b16 %v3411
    %v3669 = vunpack.c.l.b16 %v3412
    %v3670 = vunpack.c.l.b16 %v3413
    %v3671 = vunpack.c.l.b16 %v3414
    %v3672 = vunpack.c.l.b16 %v3415
    %v3673 = vunpack.c.l.b16 %v3416
    %v3674 = vunpack.c.l.b16 %v3417
    %v3675 = vunpack.c.l.b16 %v3418
    %v3676 = vunpack.c.l.b16 %v3419
    %v3677 = vunpack.c.l.b16 %v3420
    %v3678 = vunpack.c.l.b16 %v3421
    %v3679 = vunpack.c.l.b16 %v3422
    %v3680 = vunpack.c.l.b16 %v3423
    %v3681 = vunpack.c.l.b16 %v3424
    %v3682 = vunpack.c.l.b16 %v3425
    %v3683 = vunpack.c.l.b16 %v3426
    %v3684 = vunpack.c.l.b16 %v3427
    %v3685 = vunpack.c.l.b16 %v3428
    %v3686 = vunpack.c.l.b16 %v3429
    %v3687 = vunpack.c.l.b16 %v3430
    %v3688 = vunpack.c.l.b16 %v3431
    %v3689 = vunpack.c.l.b16 %v3432
    %v3690 = vunpack.c.l.b16 %v3433
    %v3691 = vunpack.c.l.b16 %v3434
    %v3692 = vunpack.c.l.b16 %v3435
    %v3693 = vunpack.c.l.b16 %v3436
    %v3694 = vunpack.c.l.b16 %v3437
    %v3695 = vunpack.c.l.b16 %v3438
    %v3696 = vunpack.c.l.b16 %v3439
    %v3697 = vpack.c.b16 %v3570, %v3569
    %v3698 = vpack.c.b16 %v3572, %v3571
    %v3699 = vpack.c.b16 %v3574, %v3573
    %v3700 = vpack.c.b16 %v3576, %v3575
    %v3701 = vpack.c.b16 %v3578, %v3577
    %v3702 = vpack.c.b16 %v3580, %v3579
    %v3703 = vpack.c.b16 %v3582, %v3581
    %v3704 = vpack.c.b16 %v3584, %v3583
    %v3705 = vpack.c.b16 %v3586, %v3585
    %v3706 = vpack.c.b16 %v3588, %v3587
    %v3707 = vpack.c.b16 %v3590, %v3589
    %v3708 = vpack.c.b16 %v3592, %v3591
    %v3709 = vpack.c.b16 %v3594, %v3593
    %v3710 = vpack.c.b16 %v3596, %v3595
    %v3711 = vpack.c.b16 %v3598, %v3597
    %v3712 = vpack.c.b16 %v3600, %v3599
    %v3713 = vpack.c.b16 %v3602, %v3601
    %v3714 = vpack.c.b16 %v3604, %v3603
    %v3715 = vpack.c.b16 %v3606, %v3605
    %v3716 = vpack.c.b16 %v3608, %v3607
    %v3717 = vpack.c.b16 %v3610, %v3609
    %v3718 = vpack.c.b16 %v3612, %v3611
    %v3719 = vpack.c.b16 %v3614, %v3613
    %v3720 = vpack.c.b16 %v3616, %v3615
    %v3721 = vpack.c.b16 %v3618, %v3617
    %v3722 = vpack.c.b16 %v3620, %v3619
    %v3723 = vpack.c.b16 %v3622, %v3621
    %v3724 = vpack.c.b16 %v3624, %v3623
    %v3725 = vpack.c.b16 %v3626, %v3625
    %v3726 = vpack.c.b16 %v3628, %v3627
    %v3727 = vpack.c.b16 %v3630, %v3629
    %v3728 = vpack.c.b16 %v3632, %v3631
    %v3729 = vpack.c.b16 %v3634, %v3633
    %v3730 = vpack.c.b16 %v3636, %v3635
    %v3731 = vpack.c.b16 %v3638, %v3637
    %v3732 = vpack.c.b16 %v3640, %v3639
    %v3733 = vpack.c.b16 %v3642, %v3641
    %v3734 = vpack.c.b16 %v3644, %v3643
    %v3735 = vpack.c.b16 %v3646, %v3645
    %v3736 = vpack.c.b16 %v3648, %v3647
    %v3737 = vpack.c.b16 %v3650, %v3649
    %v3738 = vpack.c.b16 %v3652, %v3651
    %v3739 = vpack.c.b16 %v3654, %v3653
    %v3740 = vpack.c.b16 %v3656, %v3655
    %v3741 = vpack.c.b16 %v3658, %v3657
    %v3742 = vpack.c.b16 %v3660, %v3659
    %v3743 = vpack.c.b16 %v3662, %v3661
    %v3744 = vpack.c.b16 %v3664, %v3663
    %v3745 = vpack.c.b16 %v3666, %v3665
    %v3746 = vpack.c.b16 %v3668, %v3667
    %v3747 = vpack.c.b16 %v3670, %v3669
    %v3748 = vpack.c.b16 %v3672, %v3671
    %v3749 = vpack.c.b16 %v3674, %v3673
    %v3750 = vpack.c.b16 %v3676, %v3675
    %v3751 = vpack.c.b16 %v3678, %v3677
    %v3752 = vpack.c.b16 %v3680, %v3679
    %v3753 = vpack.c.b16 %v3682, %v3681
    %v3754 = vpack.c.b16 %v3684, %v3683
    %v3755 = vpack.c.b16 %v3686, %v3685
    %v3756 = vpack.c.b16 %v3688, %v3687
    %v3757 = vpack.c.b16 %v3690, %v3689
    %v3758 = vpack.c.b16 %v3692, %v3691
    %v3759 = vpack.c.b16 %v3694, %v3693
    %v3760 = vpack.c.b16 %v3696, %v3695
    %3825 = vmatprep.subr.bf16.mxu0 0
    %3826 = vmatpush1.bf16.msra.mxu0 %v3697
    %3827 = vmatprep.subr.bf16.mxu0 0
    %3828 = vmatpush1.bf16.msra.mxu0 %v3698
    %3829 = vmatprep.subr.bf16.mxu0 0
    %3830 = vmatpush1.bf16.msra.mxu0 %v3699
    %3831 = vmatprep.subr.bf16.mxu0 0
    %3832 = vmatpush1.bf16.msra.mxu0 %v3700
    %3833 = vmatprep.subr.bf16.mxu0 0
    %3834 = vmatpush1.bf16.msra.mxu0 %v3701
    %3835 = vmatprep.subr.bf16.mxu0 0
    %3836 = vmatpush1.bf16.msra.mxu0 %v3702
    %3837 = vmatprep.subr.bf16.mxu0 0
    %3838 = vmatpush1.bf16.msra.mxu0 %v3703
    %3839 = vmatprep.subr.bf16.mxu0 0
    %3840 = vmatpush1.bf16.msra.mxu0 %v3704
    %3841 = vmatprep.subr.bf16.mxu0 0
    %3842 = vmatpush1.bf16.msra.mxu0 %v3705
    %3843 = vmatprep.subr.bf16.mxu0 0
    %3844 = vmatpush1.bf16.msra.mxu0 %v3706
    %3845 = vmatprep.subr.bf16.mxu0 0
    %3846 = vmatpush1.bf16.msra.mxu0 %v3707
    %3847 = vmatprep.subr.bf16.mxu0 0
    %3848 = vmatpush1.bf16.msra.mxu0 %v3708
    %3849 = vmatprep.subr.bf16.mxu0 0
    %3850 = vmatpush1.bf16.msra.mxu0 %v3709
    %3851 = vmatprep.subr.bf16.mxu0 0
    %3852 = vmatpush1.bf16.msra.mxu0 %v3710
    %3853 = vmatprep.subr.bf16.mxu0 0
    %3854 = vmatpush1.bf16.msra.mxu0 %v3711
    %3855 = vmatprep.subr.bf16.mxu0 0
    %3856 = vmatpush1.bf16.msra.mxu0 %v3712
    %3857 = vmatprep.mubr.bf16.mxu0 %v3305
    %3858 = vmatmul.mubr.bf16.gmra.mrb[0].mxu0 %v3304
    %v3859 = vpop.f32.mrb[0].mxu0
    %v3860 = vadd.f32 %v3440, %v3859
    %v3861 = vpop.f32.mrb[0].mxu0
    %v3862 = vpop.f32.mrb[0].mxu0
    %v3863 = vpop.f32.mrb[0].mxu0
    %3864 = vdwg.mxu0
    %3865 = vmatprep.subr.bf16.mxu0 0
    %3866 = vmatpush1.bf16.msra.mxu0 %v3713
    %3867 = vmatprep.subr.bf16.mxu0 0
    %3868 = vmatpush1.bf16.msra.mxu0 %v3714
    %3869 = vmatprep.subr.bf16.mxu0 0
    %3870 = vmatpush1.bf16.msra.mxu0 %v3715
    %3871 = vmatprep.subr.bf16.mxu0 0
    %3872 = vmatpush1.bf16.msra.mxu0 %v3716
    %3873 = vmatprep.subr.bf16.mxu0 0
    %3874 = vmatpush1.bf16.msra.mxu0 %v3717
    %3875 = vmatprep.subr.bf16.mxu0 0
    %3876 = vmatpush1.bf16.msra.mxu0 %v3718
    %3877 = vmatprep.subr.bf16.mxu0 0
    %3878 = vmatpush1.bf16.msra.mxu0 %v3719
    %3879 = vmatprep.subr.bf16.mxu0 0
    %3880 = vmatpush1.bf16.msra.mxu0 %v3720
    %3881 = vmatprep.subr.bf16.mxu0 0
    %3882 = vmatpush1.bf16.msra.mxu0 %v3721
    %3883 = vmatprep.subr.bf16.mxu0 0
    %3884 = vmatpush1.bf16.msra.mxu0 %v3722
    %3885 = vmatprep.subr.bf16.mxu0 0
    %3886 = vmatpush1.bf16.msra.mxu0 %v3723
    %3887 = vmatprep.subr.bf16.mxu0 0
    %3888 = vmatpush1.bf16.msra.mxu0 %v3724
    %3889 = vmatprep.subr.bf16.mxu0 0
    %3890 = vmatpush1.bf16.msra.mxu0 %v3725
    %3891 = vmatprep.subr.bf16.mxu0 0
    %3892 = vmatpush1.bf16.msra.mxu0 %v3726
    %3893 = vmatprep.subr.bf16.mxu0 0
    %3894 = vmatpush1.bf16.msra.mxu0 %v3727
    %3895 = vmatprep.subr.bf16.mxu0 0
    %3896 = vmatpush1.bf16.msra.mxu0 %v3728
    %3897 = vmatprep.mubr.bf16.mxu0 %v3307
    %3898 = vmatmul.mubr.bf16.gmra.mrb[0].mxu0 %v3306
    %v3899 = vpop.f32.mrb[0].mxu0
    %v3900 = vadd.f32 %v3860, %v3899
    %v3901 = vpop.f32.mrb[0].mxu0
    %v3902 = vpop.f32.mrb[0].mxu0
    %v3903 = vpop.f32.mrb[0].mxu0
    %3904 = vdwg.mxu0
    %3905 = vmatprep.subr.bf16.mxu0 0
    %3906 = vmatpush1.bf16.msra.mxu0 %v3729
    %3907 = vmatprep.subr.bf16.mxu0 0
    %3908 = vmatpush1.bf16.msra.mxu0 %v3730
    %3909 = vmatprep.subr.bf16.mxu0 0
    %3910 = vmatpush1.bf16.msra.mxu0 %v3731
    %3911 = vmatprep.subr.bf16.mxu0 0
    %3912 = vmatpush1.bf16.msra.mxu0 %v3732
    %3913 = vmatprep.subr.bf16.mxu0 0
    %3914 = vmatpush1.bf16.msra.mxu0 %v3733
    %3915 = vmatprep.subr.bf16.mxu0 0
    %3916 = vmatpush1.bf16.msra.mxu0 %v3734
    %3917 = vmatprep.subr.bf16.mxu0 0
    %3918 = vmatpush1.bf16.msra.mxu0 %v3735
    %3919 = vmatprep.subr.bf16.mxu0 0
    %3920 = vmatpush1.bf16.msra.mxu0 %v3736
    %3921 = vmatprep.subr.bf16.mxu0 0
    %3922 = vmatpush1.bf16.msra.mxu0 %v3737
    %3923 = vmatprep.subr.bf16.mxu0 0
    %3924 = vmatpush1.bf16.msra.mxu0 %v3738
    %3925 = vmatprep.subr.bf16.mxu0 0
    %3926 = vmatpush1.bf16.msra.mxu0 %v3739
    %3927 = vmatprep.subr.bf16.mxu0 0
    %3928 = vmatpush1.bf16.msra.mxu0 %v3740
    %3929 = vmatprep.subr.bf16.mxu0 0
    %3930 = vmatpush1.bf16.msra.mxu0 %v3741
    %3931 = vmatprep.subr.bf16.mxu0 0
    %3932 = vmatpush1.bf16.msra.mxu0 %v3742
    %3933 = vmatprep.subr.bf16.mxu0 0
    %3934 = vmatpush1.bf16.msra.mxu0 %v3743
    %3935 = vmatprep.subr.bf16.mxu0 0
    %3936 = vmatpush1.bf16.msra.mxu0 %v3744
    %3937 = vmatprep.mubr.bf16.mxu0 %v3309
    %3938 = vmatmul.mubr.bf16.gmra.mrb[0].mxu0 %v3308
    %v3939 = vpop.f32.mrb[0].mxu0
    %v3940 = vadd.f32 %v3900, %v3939
    %v3941 = vpop.f32.mrb[0].mxu0
    %v3942 = vpop.f32.mrb[0].mxu0
    %v3943 = vpop.f32.mrb[0].mxu0
    %3944 = vdwg.mxu0
    %3945 = vmatprep.subr.bf16.mxu0 0
    %3946 = vmatpush1.bf16.msra.mxu0 %v3745
    %3947 = vmatprep.subr.bf16.mxu0 0
    %3948 = vmatpush1.bf16.msra.mxu0 %v3746
    %3949 = vmatprep.subr.bf16.mxu0 0
    %3950 = vmatpush1.bf16.msra.mxu0 %v3747
    %3951 = vmatprep.subr.bf16.mxu0 0
    %3952 = vmatpush1.bf16.msra.mxu0 %v3748
    %3953 = vmatprep.subr.bf16.mxu0 0
    %3954 = vmatpush1.bf16.msra.mxu0 %v3749
    %3955 = vmatprep.subr.bf16.mxu0 0
    %3956 = vmatpush1.bf16.msra.mxu0 %v3750
    %3957 = vmatprep.subr.bf16.mxu0 0
    %3958 = vmatpush1.bf16.msra.mxu0 %v3751
    %3959 = vmatprep.subr.bf16.mxu0 0
    %3960 = vmatpush1.bf16.msra.mxu0 %v3752
    %3961 = vmatprep.subr.bf16.mxu0 0
    %3962 = vmatpush1.bf16.msra.mxu0 %v3753
    %3963 = vmatprep.subr.bf16.mxu0 0
    %3964 = vmatpush1.bf16.msra.mxu0 %v3754
    %3965 = vmatprep.subr.bf16.mxu0 0
    %3966 = vmatpush1.bf16.msra.mxu0 %v3755
    %3967 = vmatprep.subr.bf16.mxu0 0
    %3968 = vmatpush1.bf16.msra.mxu0 %v3756
    %3969 = vmatprep.subr.bf16.mxu0 0
    %3970 = vmatpush1.bf16.msra.mxu0 %v3757
    %3971 = vmatprep.subr.bf16.mxu0 0
    %3972 = vmatpush1.bf16.msra.mxu0 %v3758
    %3973 = vmatprep.subr.bf16.mxu0 0
    %3974 = vmatpush1.bf16.msra.mxu0 %v3759
    %3975 = vmatprep.subr.bf16.mxu0 0
    %3976 = vmatpush1.bf16.msra.mxu0 %v3760
    %3977 = vmatprep.mubr.bf16.mxu0 %v3311
    %3978 = vmatmul.mubr.bf16.gmra.mrb[0].mxu0 %v3310
    %v3979 = vpop.f32.mrb[0].mxu0
    %v3980 = vadd.f32 %v3940, %v3979
    %v3981 = vpop.f32.mrb[0].mxu0
    %v3982 = vpop.f32.mrb[0].mxu0
    %v3983 = vpop.f32.mrb[0].mxu0
    %3984 = vdwg.mxu0
    %v3985 = vmax.f32 %v3980, 0.0
    %v3986 = vld [vmem:[%s12] sm:$0xff]
    %v3987 = vld [vmem:[%s12 + $0x8] sm:$0xff]
    %v3988 = vld [vmem:[%s13] sm:$0xff]
    %v3989 = vld [vmem:[%s13 + $0x8] sm:$0xff]
    %v3990 = vld [vmem:[%s13 + $0x10] sm:$0xff]
    %v3991 = vld [vmem:[%s13 + $0x18] sm:$0xff]
    %v3992 = vld [vmem:[%s13 + $0x20] sm:$0xff]
    %v3993 = vld [vmem:[%s13 + $0x28] sm:$0xff]
    %vm3994 = vcmask 392192
    %v3996 = vsel %vm3994, %v3985, 0
    %3998 = vmatprep.subr.mxu0 0.0
    %3999 = vmatpush1.msra.mxu0 %v3988
    %4000 = vmatprep.subr.mxu0 0.0
    %4001 = vmatpush1.msra.mxu0 %v3989
    %4002 = vmatprep.subr.mxu0 0.0
    %4003 = vmatpush1.msra.mxu0 %v3990
    %4004 = vmatprep.subr.mxu0 0.0
    %4005 = vmatpush1.msra.mxu0 %v3991
    %4006 = vmatprep.subr.mxu0 0.0
    %4007 = vmatpush1.msra.mxu0 %v3992
    %4008 = vmatprep.subr.mxu0 0.0
    %4009 = vmatpush1.msra.mxu0 %v3993
    %4010 = vmatprep.subr.mxu0 0.0
    %4011 = vmatpush1.msra.mxu0 0.0
    %4012 = vmatprep.subr.mxu0 0.0
    %4013 = vmatpush1.msra.mxu0 0.0
    %4014 = vmatprep.subr.mxu0 0.0
    %4015 = vmatpush1.msra.mxu0 0.0
    %4016 = vmatprep.subr.mxu0 0.0
    %4017 = vmatpush1.msra.mxu0 0.0
    %4018 = vmatprep.subr.mxu0 0.0
    %4019 = vmatpush1.msra.mxu0 0.0
    %4020 = vmatprep.subr.mxu0 0.0
    %4021 = vmatpush1.msra.mxu0 0.0
    %4022 = vmatprep.subr.mxu0 0.0
    %4023 = vmatpush1.msra.mxu0 0.0
    %4024 = vmatprep.subr.mxu0 0.0
    %4025 = vmatpush1.msra.mxu0 0.0
    %4026 = vmatprep.subr.mxu0 0.0
    %4027 = vmatpush1.msra.mxu0 0.0
    %4028 = vmatprep.subr.mxu0 0.0
    %4029 = vmatpush1.msra.mxu0 0.0
    %4030 = vmatprep.subr.mxu0 0.0
    %4031 = vmatpush1.msra.mxu0 0.0
    %4032 = vmatprep.subr.mxu0 0.0
    %4033 = vmatpush1.msra.mxu0 0.0
    %4034 = vmatprep.subr.mxu0 0.0
    %4035 = vmatpush1.msra.mxu0 0.0
    %4036 = vmatprep.subr.mxu0 0.0
    %4037 = vmatpush1.msra.mxu0 0.0
    %4038 = vmatprep.subr.mxu0 0.0
    %4039 = vmatpush1.msra.mxu0 0.0
    %4040 = vmatprep.subr.mxu0 0.0
    %4041 = vmatpush1.msra.mxu0 0.0
    %4042 = vmatprep.subr.mxu0 0.0
    %4043 = vmatpush1.msra.mxu0 0.0
    %4044 = vmatprep.subr.mxu0 0.0
    %4045 = vmatpush1.msra.mxu0 0.0
    %4046 = vmatprep.subr.mxu0 0.0
    %4047 = vmatpush1.msra.mxu0 0.0
    %4048 = vmatprep.subr.mxu0 0.0
    %4049 = vmatpush1.msra.mxu0 0.0
    %4050 = vmatprep.subr.mxu0 0.0
    %4051 = vmatpush1.msra.mxu0 0.0
    %4052 = vmatprep.subr.mxu0 0.0
    %4053 = vmatpush1.msra.mxu0 0.0
    %4054 = vmatprep.subr.mxu0 0.0
    %4055 = vmatpush1.msra.mxu0 0.0
    %4056 = vmatprep.subr.mxu0 0.0
    %4057 = vmatpush1.msra.mxu0 0.0
    %4058 = vmatprep.subr.mxu0 0.0
    %4059 = vmatpush1.msra.mxu0 0.0
    %4060 = vmatprep.subr.mxu0 0.0
    %4061 = vmatpush1.msra.mxu0 0.0
    %4062 = vmatprep.mubr.f32.mxu0 0.0
    %4063 = vmatmul.mubr.f32.gmra.mrb[0].mxu0 %v3996
    %v4064 = vpop.f32.mrb[0].mxu0
    %v4065 = vadd.f32 0.0, %v4064
    %v4066 = vpop.f32.mrb[0].mxu0
    %4067 = vdwg.mxu0
    %vm4068 = vcmask 130048
    %v4070 = vsel %vm4068, %v236, 0
    %4072 = vmatprep.subr.mxu0 0.0
    %4073 = vmatpush1.msra.mxu0 %v3986
    %4074 = vmatprep.subr.mxu0 0.0
    %4075 = vmatpush1.msra.mxu0 %v3987
    %4076 = vmatprep.subr.mxu0 0.0
    %4077 = vmatpush1.msra.mxu0 0.0
    %4078 = vmatprep.subr.mxu0 0.0
    %4079 = vmatpush1.msra.mxu0 0.0
    %4080 = vmatprep.subr.mxu0 0.0
    %4081 = vmatpush1.msra.mxu0 0.0
    %4082 = vmatprep.subr.mxu0 0.0
    %4083 = vmatpush1.msra.mxu0 0.0
    %4084 = vmatprep.subr.mxu0 0.0
    %4085 = vmatpush1.msra.mxu0 0.0
    %4086 = vmatprep.subr.mxu0 0.0
    %4087 = vmatpush1.msra.mxu0 0.0
    %4088 = vmatprep.subr.mxu0 0.0
    %4089 = vmatpush1.msra.mxu0 0.0
    %4090 = vmatprep.subr.mxu0 0.0
    %4091 = vmatpush1.msra.mxu0 0.0
    %4092 = vmatprep.subr.mxu0 0.0
    %4093 = vmatpush1.msra.mxu0 0.0
    %4094 = vmatprep.subr.mxu0 0.0
    %4095 = vmatpush1.msra.mxu0 0.0
    %4096 = vmatprep.subr.mxu0 0.0
    %4097 = vmatpush1.msra.mxu0 0.0
    %4098 = vmatprep.subr.mxu0 0.0
    %4099 = vmatpush1.msra.mxu0 0.0
    %4100 = vmatprep.subr.mxu0 0.0
    %4101 = vmatpush1.msra.mxu0 0.0
    %4102 = vmatprep.subr.mxu0 0.0
    %4103 = vmatpush1.msra.mxu0 0.0
    %4104 = vmatprep.subr.mxu0 0.0
    %4105 = vmatpush1.msra.mxu0 0.0
    %4106 = vmatprep.subr.mxu0 0.0
    %4107 = vmatpush1.msra.mxu0 0.0
    %4108 = vmatprep.subr.mxu0 0.0
    %4109 = vmatpush1.msra.mxu0 0.0
    %4110 = vmatprep.subr.mxu0 0.0
    %4111 = vmatpush1.msra.mxu0 0.0
    %4112 = vmatprep.subr.mxu0 0.0
    %4113 = vmatpush1.msra.mxu0 0.0
    %4114 = vmatprep.subr.mxu0 0.0
    %4115 = vmatpush1.msra.mxu0 0.0
    %4116 = vmatprep.subr.mxu0 0.0
    %4117 = vmatpush1.msra.mxu0 0.0
    %4118 = vmatprep.subr.mxu0 0.0
    %4119 = vmatpush1.msra.mxu0 0.0
    %4120 = vmatprep.subr.mxu0 0.0
    %4121 = vmatpush1.msra.mxu0 0.0
    %4122 = vmatprep.subr.mxu0 0.0
    %4123 = vmatpush1.msra.mxu0 0.0
    %4124 = vmatprep.subr.mxu0 0.0
    %4125 = vmatpush1.msra.mxu0 0.0
    %4126 = vmatprep.subr.mxu0 0.0
    %4127 = vmatpush1.msra.mxu0 0.0
    %4128 = vmatprep.subr.mxu0 0.0
    %4129 = vmatpush1.msra.mxu0 0.0
    %4130 = vmatprep.subr.mxu0 0.0
    %4131 = vmatpush1.msra.mxu0 0.0
    %4132 = vmatprep.subr.mxu0 0.0
    %4133 = vmatpush1.msra.mxu0 0.0
    %4134 = vmatprep.subr.mxu0 0.0
    %4135 = vmatpush1.msra.mxu0 0.0
    %4136 = vmatprep.mubr.f32.mxu0 0.0
    %4137 = vmatmul.mubr.f32.gmra.mrb[0].mxu0 %v4070
    %v4138 = vpop.f32.mrb[0].mxu0
    %v4139 = vadd.f32 %v4065, %v4138
    %v4140 = vpop.f32.mrb[0].mxu0
    %4141 = vdwg.mxu0
    %v4142 = vld [vmem:[#allocation2] sm:$0x1]
    %v4143 = vadd.f32 %v4139, %v4142
    %vm4144 = vcmask 0
    %4145 = vst.msk [vmem:[#allocation6] sm:$0x1] %vm4144, %v4143
    // Predicated region
    $region66: #{tpu_custom_call.1} parent=1 // pred_check
      _
    $region67: #{tpu_custom_call.1} parent=1 // pred_check_branch
      %4147 = sbr.rel (0) target = $region69
    $region68: #{tpu_custom_call.1} parent=1 // pred_region
      %s4149 = ssub.s32 16, 16
      %4150 = vsyncadd [#allocation5], %s4149
      %s4152 = sshll.u32 [#allocation6], 4
      %s4153 = int_to_ptr.vmem [resolvable:$true] %s4152
      %4155 = dma.vmem_to_hbm [thread:$0]  %s4153, 16, %s15, [#allocation5]
    $region69: #{tpu_custom_call.1} parent=1 // pred_fallthru
      _
    // Predicated region
    $region70: #{tpu_custom_call.1} parent=1 // pred_check
      _
    $region71: #{tpu_custom_call.1} parent=1 // pred_check_branch
      %4157 = sbr.rel (0) target = $region73
    $region72: #{tpu_custom_call.1} parent=1 // pred_region
      %4158 = dma.done [#allocation5], 16
    $region73: #{tpu_custom_call.1} parent=1 // pred_fallthru
      _
    %4159 = vsyncpa [#allocation4], 1
    %4160 = vsyncpa [#allocation5], 1

</llo_original>
